<compile_context>
chip_gen: v7x
topology: tpu7x:2x2x1
jax: 0.10.0
libtpu: 0.0.40
codegen_flags: <defaults>
</compile_context>

<pallas_src>
import functools

import jax
import jax.numpy as jnp
from jax.experimental import pallas as pl
from jax.experimental.pallas import tpu as pltpu


def _lstm_kernel(x_ref, wih0_ref, whh0_ref, b0_ref, w1s_ref, b1_ref,
                 wfc_ref, bfc_ref,
                 out_ref,
                 xg_ref, h2all_ref,
                 *, seq_len, batch_pad, hidden):
    T, Bp, H = seq_len, batch_pad, hidden

    # Hoisted out of the recurrence: input-side gate contribution of layer 0 for ALL
    # timesteps in one MXU matmul, with b0 = (b_ih0 + b_hh0) folded in.
    xg_ref[...] = (
        jnp.dot(x_ref[...], wih0_ref[...], preferred_element_type=jnp.float32)
        + b0_ref[...])

    # Hoisted bias broadcast for layer 1.
    b1_b = jnp.broadcast_to(b1_ref[...], (Bp, 4 * H))

    def lstm_gates(g, c_prev):
        # PyTorch gate order: i, f, g, o.
        i = jax.nn.sigmoid(g[:, 0 * H:1 * H])
        f = jax.nn.sigmoid(g[:, 1 * H:2 * H])
        gg = jnp.tanh(g[:, 2 * H:3 * H])
        o = jax.nn.sigmoid(g[:, 3 * H:4 * H])
        c_new = f * c_prev + i * gg
        h_new = o * jnp.tanh(c_new)
        return h_new, c_new

    zeros = jnp.zeros((Bp, H), jnp.float32)   # PyTorch default h0 = c0 = 0
    h1, c1, h2, c2 = zeros, zeros, zeros, zeros

    # Fully unrolled time loop (equivalent to lax.fori_loop(0, T, ..., unroll=True),
    # but with static slice indices into the VMEM scratch buffers).
    for t in range(T):
        row = t * Bp
        # Layer 0: only the recurrent matmul is left on the serial critical path.
        g0 = (xg_ref[pl.ds(row, Bp), :]
              + jnp.dot(h1, whh0_ref[...], preferred_element_type=jnp.float32))
        h1, c1 = lstm_gates(g0, c1)
        # Layer 1: fused ih/hh matmul with pre-stacked weights (K = 2H = 256).
        xh = jnp.concatenate([h1, h2], axis=-1)                      # (Bp, 2H)
        g1 = (jnp.dot(xh, w1s_ref[...], preferred_element_type=jnp.float32)
              + b1_b)
        h2, c2 = lstm_gates(g1, c2)
        h2all_ref[pl.ds(row, Bp), :] = h2

    # FC head out of the recurrence: one batched matmul + one output store.
    y = (jnp.dot(h2all_ref[...], wfc_ref[...], preferred_element_type=jnp.float32)
         + bfc_ref[...])
    out_ref[...] = y.astype(out_ref.dtype)


def lstm_model_forward(x, params):
    """x: (B, T, D_in) float32 -> (B, T, D_out) float32 (PyTorch batch_first)."""
    B, T, D = x.shape
    H = params["whh0_T"].shape[0]
    Dout = params["wfc_T"].shape[1]
    Bp = ((B + 7) // 8) * 8                      # pad batch to the sublane granularity

    xp = x if Bp == B else jnp.pad(x, ((0, Bp - B), (0, 0), (0, 0)))
    # Time-major + flattened so that row index = t * Bp + b.
    x_flat = jnp.transpose(xp, (1, 0, 2)).reshape(T * Bp, D)

    # Stack layer-1 ih/hh weights once so the kernel does a single fused matmul per step.
    w1s = jnp.concatenate([params["wih1_T"], params["whh1_T"]], axis=0)   # (2H, 4H)

    def full_spec(shape):
        n = len(shape)
        return pl.BlockSpec(shape, lambda i, _n=n: (0,) * _n)

    out_flat = pl.pallas_call(
        functools.partial(_lstm_kernel, seq_len=T, batch_pad=Bp, hidden=H),
        out_shape=jax.ShapeDtypeStruct((T * Bp, Dout), x.dtype),
        grid_spec=pltpu.PrefetchScalarGridSpec(
            num_scalar_prefetch=0,
            grid=(1,),                           # single invocation; time loop is in-kernel
            in_specs=[
                full_spec((T * Bp, D)),          # x (time-major, batch-padded, flattened)
                full_spec(params["wih0_T"].shape),
                full_spec(params["whh0_T"].shape),
                full_spec(params["b0"].shape),
                full_spec(w1s.shape),
                full_spec(params["b1"].shape),
                full_spec(params["wfc_T"].shape),
                full_spec(params["bfc"].shape),
            ],
            out_specs=full_spec((T * Bp, Dout)),
            scratch_shapes=[
                pltpu.VMEM((T * Bp, 4 * H), jnp.float32),   # precomputed layer-0 x-gates
                pltpu.VMEM((T * Bp, H), jnp.float32),       # h2 for every timestep
            ],
        ),
        compiler_params=pltpu.CompilerParams(
            dimension_semantics=("arbitrary",),
        ),
    )(x_flat,
      params["wih0_T"], params["whh0_T"], params["b0"],
      w1s, params["b1"],
      params["wfc_T"], params["bfc"])

    out = out_flat.reshape(T, Bp, Dout).transpose(1, 0, 2)   # (Bp, T, Dout)
    return out[:B]


def lstm_model_ref(x, params):
    """Pure-JAX reference with identical semantics (for verification)."""
    B, T, _ = x.shape
    H = params["whh0_T"].shape[0]
    hi = jax.lax.Precision.HIGHEST

    def cell(x_t, h, c, wih_T, whh_T, b):
        g = jnp.dot(x_t, wih_T, precision=hi) + jnp.dot(h, whh_T, precision=hi) + b
        i = jax.nn.sigmoid(g[:, :H])
        f = jax.nn.sigmoid(g[:, H:2 * H])
        gg = jnp.tanh(g[:, 2 * H:3 * H])
        o = jax.nn.sigmoid(g[:, 3 * H:])
        c = f * c + i * gg
        h = o * jnp.tanh(c)
        return h, c

    h1 = jnp.zeros((B, H), jnp.float32)
    c1, h2, c2 = h1, h1, h1
    outs = []
    for t in range(T):
        x_t = x[:, t, :]
        h1, c1 = cell(x_t, h1, c1, params["wih0_T"], params["whh0_T"], params["b0"])
        h2, c2 = cell(h1, h2, c2, params["wih1_T"], params["whh1_T"], params["b1"])
        outs.append(jnp.dot(h2, params["wfc_T"], precision=hi) + params["bfc"])
    return jnp.stack(outs, axis=1)


if __name__ == "__main__":
    # Small shapes consistent with the module: hidden_size=128 (as in the spec),
    # batch=4, seq=8, input_size = output_size = 16.
    B, T, D, H = 4, 8, 16, 128

    key = jax.random.PRNGKey(0)
    keys = jax.random.split(key, 12)
    k = 1.0 / jnp.sqrt(jnp.float32(H))

    def u(kk, shape):
        return jax.random.uniform(kk, shape, jnp.float32, -k, k)

    params = {
        # layer 0: W_ih (4H, D), W_hh (4H, H) stored transposed for (B,K)x(K,N) dots
        "wih0_T": u(keys[0], (D, 4 * H)),
        "whh0_T": u(keys[1], (H, 4 * H)),
        "b0":     u(keys[2], (1, 4 * H)) + u(keys[3], (1, 4 * H)),   # b_ih0 + b_hh0
        # layer 1: W_ih (4H, H), W_hh (4H, H)
        "wih1_T": u(keys[4], (H, 4 * H)),
        "whh1_T": u(keys[5], (H, 4 * H)),
        "b1":     u(keys[6], (1, 4 * H)) + u(keys[7], (1, 4 * H)),   # b_ih1 + b_hh1
        # fc head: W (D_out, H), b (D_out,)
        "wfc_T":  u(keys[8], (H, D)),
        "bfc":    u(keys[9], (1, D)),
    }

    x = jax.random.normal(keys[10], (B, T, D), jnp.float32)

    # TODO(synk): the stateful `predict(x, h, c)` entry point (caller-provided h0/c0)
    # is not exposed; only the module's forward() (zero initial state) is implemented.
    fwd = jax.jit(lstm_model_forward)
    y = jax.block_until_ready(fwd(x, params))
    y_ref = lstm_model_ref(x, params)

    assert y.shape == (B, T, D), y.shape
    max_err = float(jnp.max(jnp.abs(y - y_ref)))
    assert jnp.allclose(y, y_ref, atol=1e-2, rtol=1e-2), max_err

    print("KERNEL_OK")
</pallas_src>

<mosaic_0001>
module attributes {stable_mosaic.version = 11 : i64} {
  func.func @_lstm_kernel(%arg0: i32, %arg1: memref<64x16xf32, #tpu.memory_space<vmem>>, %arg2: memref<16x512xf32, #tpu.memory_space<vmem>>, %arg3: memref<128x512xf32, #tpu.memory_space<vmem>>, %arg4: memref<1x512xf32, #tpu.memory_space<vmem>>, %arg5: memref<256x512xf32, #tpu.memory_space<vmem>>, %arg6: memref<1x512xf32, #tpu.memory_space<vmem>>, %arg7: memref<128x16xf32, #tpu.memory_space<vmem>>, %arg8: memref<1x16xf32, #tpu.memory_space<vmem>>, %arg9: memref<64x16xf32, #tpu.memory_space<vmem>>, %arg10: memref<64x512xf32, #tpu.memory_space<vmem>>, %arg11: memref<64x128xf32, #tpu.memory_space<vmem>>) attributes {dimension_semantics = [#tpu.dimension_semantics<arbitrary>], iteration_bounds = array<i64: 1>, scalar_prefetch = 0 : i64, scratch_operands = 2 : i64, tpu.core_type = #tpu.core_type<tc>, window_params = [{pipeline_mode = #tpu.pipeline_mode<synchronous>, transform_indices = @transform_0, window_bounds = array<i64: 64, 16>}, {pipeline_mode = #tpu.pipeline_mode<synchronous>, transform_indices = @transform_1, window_bounds = array<i64: 16, 512>}, {pipeline_mode = #tpu.pipeline_mode<synchronous>, transform_indices = @transform_2, window_bounds = array<i64: 128, 512>}, {pipeline_mode = #tpu.pipeline_mode<synchronous>, transform_indices = @transform_3, window_bounds = array<i64: 1, 512>}, {pipeline_mode = #tpu.pipeline_mode<synchronous>, transform_indices = @transform_4, window_bounds = array<i64: 256, 512>}, {pipeline_mode = #tpu.pipeline_mode<synchronous>, transform_indices = @transform_5, window_bounds = array<i64: 1, 512>}, {pipeline_mode = #tpu.pipeline_mode<synchronous>, transform_indices = @transform_6, window_bounds = array<i64: 128, 16>}, {pipeline_mode = #tpu.pipeline_mode<synchronous>, transform_indices = @transform_7, window_bounds = array<i64: 1, 16>}, {pipeline_mode = #tpu.pipeline_mode<synchronous>, transform_indices = @transform_8, window_bounds = array<i64: 64, 16>}]} {
    %c0 = arith.constant 0 : index
    %c0_0 = arith.constant 0 : index
    %0 = vector.load %arg1[%c0, %c0_0] : memref<64x16xf32, #tpu.memory_space<vmem>>, vector<64x16xf32>
    %c0_1 = arith.constant 0 : index
    %c0_2 = arith.constant 0 : index
    %1 = vector.load %arg2[%c0_1, %c0_2] : memref<16x512xf32, #tpu.memory_space<vmem>>, vector<16x512xf32>
    %cst = arith.constant dense<0.000000e+00> : vector<64x512xf32>
    %2 = tpu.matmul %0, %1, %cst {dimension_numbers = #tpu.dot_dimension_numbers<[1], [0], [0], [1], [0, 0, 1, 1], [], []>} : vector<64x16xf32>, vector<16x512xf32>, vector<64x512xf32> -> vector<64x512xf32>
    %c0_3 = arith.constant 0 : index
    %c0_4 = arith.constant 0 : index
    %3 = vector.load %arg4[%c0_3, %c0_4] : memref<1x512xf32, #tpu.memory_space<vmem>>, vector<1x512xf32>
    %4 = vector.broadcast %3 : vector<1x512xf32> to vector<64x512xf32>
    %5 = arith.addf %2, %4 : vector<64x512xf32>
    %c0_5 = arith.constant 0 : index
    %c0_6 = arith.constant 0 : index
    %6 = vector.load %arg10[%c0_5, %c0_6] : memref<64x512xf32, #tpu.memory_space<vmem>>, vector<64x512xf32>
    tpu.vector_store %arg10[%c0_5, %c0_6], %5 {strides = array<i32>} : memref<64x512xf32, #tpu.memory_space<vmem>>, vector<64x512xf32>,
    %c0_7 = arith.constant 0 : index
    %c0_8 = arith.constant 0 : index
    %7 = vector.load %arg6[%c0_7, %c0_8] : memref<1x512xf32, #tpu.memory_space<vmem>>, vector<1x512xf32>
    %8 = vector.shape_cast %7 : vector<1x512xf32> to vector<1x512xf32>
    %9 = vector.broadcast %8 : vector<1x512xf32> to vector<8x512xf32>
    %cst_9 = arith.constant 0.000000e+00 : f32
    %10 = vector.broadcast %cst_9 : f32 to vector<8x128xf32>
    %c0_10 = arith.constant 0 : index
    %c0_11 = arith.constant 0 : index
    %11 = vector.load %arg10[%c0_10, %c0_11] : memref<64x512xf32, #tpu.memory_space<vmem>>, vector<8x512xf32>
    %c0_12 = arith.constant 0 : index
    %c0_13 = arith.constant 0 : index
    %12 = vector.load %arg3[%c0_12, %c0_13] : memref<128x512xf32, #tpu.memory_space<vmem>>, vector<128x512xf32>
    %cst_14 = arith.constant dense<0.000000e+00> : vector<8x512xf32>
    %13 = tpu.matmul %10, %12, %cst_14 {dimension_numbers = #tpu.dot_dimension_numbers<[1], [0], [0], [1], [0, 0, 1, 1], [], []>} : vector<8x128xf32>, vector<128x512xf32>, vector<8x512xf32> -> vector<8x512xf32>
    %14 = arith.addf %11, %13 : vector<8x512xf32>
    %15 = vector.extract_strided_slice %14 {offsets = [0, 0], sizes = [8, 128], strides = [1, 1]} : vector<8x512xf32> to vector<8x128xf32>
    %16 = arith.negf %15 : vector<8x128xf32>
    %17 = math.exp %16 : vector<8x128xf32>
    %cst_15 = arith.constant 1.000000e+00 : f32
    %18 = vector.broadcast %cst_15 : f32 to vector<8x128xf32>
    %19 = arith.addf %18, %17 : vector<8x128xf32>
    %20 = arith.divf %18, %19 : vector<8x128xf32>
    %21 = vector.extract_strided_slice %14 {offsets = [0, 128], sizes = [8, 128], strides = [1, 1]} : vector<8x512xf32> to vector<8x128xf32>
    %22 = arith.negf %21 : vector<8x128xf32>
    %23 = math.exp %22 : vector<8x128xf32>
    %cst_16 = arith.constant 1.000000e+00 : f32
    %24 = vector.broadcast %cst_16 : f32 to vector<8x128xf32>
    %25 = arith.addf %24, %23 : vector<8x128xf32>
    %26 = arith.divf %24, %25 : vector<8x128xf32>
    %27 = vector.extract_strided_slice %14 {offsets = [0, 256], sizes = [8, 128], strides = [1, 1]} : vector<8x512xf32> to vector<8x128xf32>
    %28 = math.tanh %27 : vector<8x128xf32>
    %29 = vector.extract_strided_slice %14 {offsets = [0, 384], sizes = [8, 128], strides = [1, 1]} : vector<8x512xf32> to vector<8x128xf32>
    %30 = arith.negf %29 : vector<8x128xf32>
    %31 = math.exp %30 : vector<8x128xf32>
    %cst_17 = arith.constant 1.000000e+00 : f32
    %32 = vector.broadcast %cst_17 : f32 to vector<8x128xf32>
    %33 = arith.addf %32, %31 : vector<8x128xf32>
    %34 = arith.divf %32, %33 : vector<8x128xf32>
    %35 = arith.mulf %26, %10 : vector<8x128xf32>
    %36 = arith.mulf %20, %28 : vector<8x128xf32>
    %37 = arith.addf %35, %36 : vector<8x128xf32>
    %38 = math.tanh %37 : vector<8x128xf32>
    %39 = arith.mulf %34, %38 : vector<8x128xf32>
    %40 = tpu.concatenate %39, %10 in 1 : vector<8x128xf32>, vector<8x128xf32> -> vector<8x256xf32>
    %c0_18 = arith.constant 0 : index
    %c0_19 = arith.constant 0 : index
    %41 = vector.load %arg5[%c0_18, %c0_19] : memref<256x512xf32, #tpu.memory_space<vmem>>, vector<256x512xf32>
    %cst_20 = arith.constant dense<0.000000e+00> : vector<8x512xf32>
    %42 = tpu.matmul %40, %41, %cst_20 {dimension_numbers = #tpu.dot_dimension_numbers<[1], [0], [0], [1], [0, 0, 1, 1], [], []>} : vector<8x256xf32>, vector<256x512xf32>, vector<8x512xf32> -> vector<8x512xf32>
    %43 = arith.addf %42, %9 : vector<8x512xf32>
    %44 = vector.extract_strided_slice %43 {offsets = [0, 0], sizes = [8, 128], strides = [1, 1]} : vector<8x512xf32> to vector<8x128xf32>
    %45 = arith.negf %44 : vector<8x128xf32>
    %46 = math.exp %45 : vector<8x128xf32>
    %cst_21 = arith.constant 1.000000e+00 : f32
    %47 = vector.broadcast %cst_21 : f32 to vector<8x128xf32>
    %48 = arith.addf %47, %46 : vector<8x128xf32>
    %49 = arith.divf %47, %48 : vector<8x128xf32>
    %50 = vector.extract_strided_slice %43 {offsets = [0, 128], sizes = [8, 128], strides = [1, 1]} : vector<8x512xf32> to vector<8x128xf32>
    %51 = arith.negf %50 : vector<8x128xf32>
    %52 = math.exp %51 : vector<8x128xf32>
    %cst_22 = arith.constant 1.000000e+00 : f32
    %53 = vector.broadcast %cst_22 : f32 to vector<8x128xf32>
    %54 = arith.addf %53, %52 : vector<8x128xf32>
    %55 = arith.divf %53, %54 : vector<8x128xf32>
    %56 = vector.extract_strided_slice %43 {offsets = [0, 256], sizes = [8, 128], strides = [1, 1]} : vector<8x512xf32> to vector<8x128xf32>
    %57 = math.tanh %56 : vector<8x128xf32>
    %58 = vector.extract_strided_slice %43 {offsets = [0, 384], sizes = [8, 128], strides = [1, 1]} : vector<8x512xf32> to vector<8x128xf32>
    %59 = arith.negf %58 : vector<8x128xf32>
    %60 = math.exp %59 : vector<8x128xf32>
    %cst_23 = arith.constant 1.000000e+00 : f32
    %61 = vector.broadcast %cst_23 : f32 to vector<8x128xf32>
    %62 = arith.addf %61, %60 : vector<8x128xf32>
    %63 = arith.divf %61, %62 : vector<8x128xf32>
    %64 = arith.mulf %55, %10 : vector<8x128xf32>
    %65 = arith.mulf %49, %57 : vector<8x128xf32>
    %66 = arith.addf %64, %65 : vector<8x128xf32>
    %67 = math.tanh %66 : vector<8x128xf32>
    %68 = arith.mulf %63, %67 : vector<8x128xf32>
    %c0_24 = arith.constant 0 : index
    %c0_25 = arith.constant 0 : index
    %69 = vector.load %arg11[%c0_24, %c0_25] : memref<64x128xf32, #tpu.memory_space<vmem>>, vector<8x128xf32>
    tpu.vector_store %arg11[%c0_24, %c0_25], %68 {strides = array<i32>} : memref<64x128xf32, #tpu.memory_space<vmem>>, vector<8x128xf32>,
    %c8 = arith.constant 8 : index
    %c0_26 = arith.constant 0 : index
    %70 = vector.load %arg10[%c8, %c0_26] : memref<64x512xf32, #tpu.memory_space<vmem>>, vector<8x512xf32>
    %c0_27 = arith.constant 0 : index
    %c0_28 = arith.constant 0 : index
    %71 = vector.load %arg3[%c0_27, %c0_28] : memref<128x512xf32, #tpu.memory_space<vmem>>, vector<128x512xf32>
    %cst_29 = arith.constant dense<0.000000e+00> : vector<8x512xf32>
    %72 = tpu.matmul %39, %71, %cst_29 {dimension_numbers = #tpu.dot_dimension_numbers<[1], [0], [0], [1], [0, 0, 1, 1], [], []>} : vector<8x128xf32>, vector<128x512xf32>, vector<8x512xf32> -> vector<8x512xf32>
    %73 = arith.addf %70, %72 : vector<8x512xf32>
    %74 = vector.extract_strided_slice %73 {offsets = [0, 0], sizes = [8, 128], strides = [1, 1]} : vector<8x512xf32> to vector<8x128xf32>
    %75 = arith.negf %74 : vector<8x128xf32>
    %76 = math.exp %75 : vector<8x128xf32>
    %cst_30 = arith.constant 1.000000e+00 : f32
    %77 = vector.broadcast %cst_30 : f32 to vector<8x128xf32>
    %78 = arith.addf %77, %76 : vector<8x128xf32>
    %79 = arith.divf %77, %78 : vector<8x128xf32>
    %80 = vector.extract_strided_slice %73 {offsets = [0, 128], sizes = [8, 128], strides = [1, 1]} : vector<8x512xf32> to vector<8x128xf32>
    %81 = arith.negf %80 : vector<8x128xf32>
    %82 = math.exp %81 : vector<8x128xf32>
    %cst_31 = arith.constant 1.000000e+00 : f32
    %83 = vector.broadcast %cst_31 : f32 to vector<8x128xf32>
    %84 = arith.addf %83, %82 : vector<8x128xf32>
    %85 = arith.divf %83, %84 : vector<8x128xf32>
    %86 = vector.extract_strided_slice %73 {offsets = [0, 256], sizes = [8, 128], strides = [1, 1]} : vector<8x512xf32> to vector<8x128xf32>
    %87 = math.tanh %86 : vector<8x128xf32>
    %88 = vector.extract_strided_slice %73 {offsets = [0, 384], sizes = [8, 128], strides = [1, 1]} : vector<8x512xf32> to vector<8x128xf32>
    %89 = arith.negf %88 : vector<8x128xf32>
    %90 = math.exp %89 : vector<8x128xf32>
    %cst_32 = arith.constant 1.000000e+00 : f32
    %91 = vector.broadcast %cst_32 : f32 to vector<8x128xf32>
    %92 = arith.addf %91, %90 : vector<8x128xf32>
    %93 = arith.divf %91, %92 : vector<8x128xf32>
    %94 = arith.mulf %85, %37 : vector<8x128xf32>
    %95 = arith.mulf %79, %87 : vector<8x128xf32>
    %96 = arith.addf %94, %95 : vector<8x128xf32>
    %97 = math.tanh %96 : vector<8x128xf32>
    %98 = arith.mulf %93, %97 : vector<8x128xf32>
    %99 = tpu.concatenate %98, %68 in 1 : vector<8x128xf32>, vector<8x128xf32> -> vector<8x256xf32>
    %c0_33 = arith.constant 0 : index
    %c0_34 = arith.constant 0 : index
    %100 = vector.load %arg5[%c0_33, %c0_34] : memref<256x512xf32, #tpu.memory_space<vmem>>, vector<256x512xf32>
    %cst_35 = arith.constant dense<0.000000e+00> : vector<8x512xf32>
    %101 = tpu.matmul %99, %100, %cst_35 {dimension_numbers = #tpu.dot_dimension_numbers<[1], [0], [0], [1], [0, 0, 1, 1], [], []>} : vector<8x256xf32>, vector<256x512xf32>, vector<8x512xf32> -> vector<8x512xf32>
    %102 = arith.addf %101, %9 : vector<8x512xf32>
    %103 = vector.extract_strided_slice %102 {offsets = [0, 0], sizes = [8, 128], strides = [1, 1]} : vector<8x512xf32> to vector<8x128xf32>
    %104 = arith.negf %103 : vector<8x128xf32>
    %105 = math.exp %104 : vector<8x128xf32>
    %cst_36 = arith.constant 1.000000e+00 : f32
    %106 = vector.broadcast %cst_36 : f32 to vector<8x128xf32>
    %107 = arith.addf %106, %105 : vector<8x128xf32>
    %108 = arith.divf %106, %107 : vector<8x128xf32>
    %109 = vector.extract_strided_slice %102 {offsets = [0, 128], sizes = [8, 128], strides = [1, 1]} : vector<8x512xf32> to vector<8x128xf32>
    %110 = arith.negf %109 : vector<8x128xf32>
    %111 = math.exp %110 : vector<8x128xf32>
    %cst_37 = arith.constant 1.000000e+00 : f32
    %112 = vector.broadcast %cst_37 : f32 to vector<8x128xf32>
    %113 = arith.addf %112, %111 : vector<8x128xf32>
    %114 = arith.divf %112, %113 : vector<8x128xf32>
    %115 = vector.extract_strided_slice %102 {offsets = [0, 256], sizes = [8, 128], strides = [1, 1]} : vector<8x512xf32> to vector<8x128xf32>
    %116 = math.tanh %115 : vector<8x128xf32>
    %117 = vector.extract_strided_slice %102 {offsets = [0, 384], sizes = [8, 128], strides = [1, 1]} : vector<8x512xf32> to vector<8x128xf32>
    %118 = arith.negf %117 : vector<8x128xf32>
    %119 = math.exp %118 : vector<8x128xf32>
    %cst_38 = arith.constant 1.000000e+00 : f32
    %120 = vector.broadcast %cst_38 : f32 to vector<8x128xf32>
    %121 = arith.addf %120, %119 : vector<8x128xf32>
    %122 = arith.divf %120, %121 : vector<8x128xf32>
    %123 = arith.mulf %114, %66 : vector<8x128xf32>
    %124 = arith.mulf %108, %116 : vector<8x128xf32>
    %125 = arith.addf %123, %124 : vector<8x128xf32>
    %126 = math.tanh %125 : vector<8x128xf32>
    %127 = arith.mulf %122, %126 : vector<8x128xf32>
    %c8_39 = arith.constant 8 : index
    %c0_40 = arith.constant 0 : index
    %128 = vector.load %arg11[%c8_39, %c0_40] : memref<64x128xf32, #tpu.memory_space<vmem>>, vector<8x128xf32>
    tpu.vector_store %arg11[%c8_39, %c0_40], %127 {strides = array<i32>} : memref<64x128xf32, #tpu.memory_space<vmem>>, vector<8x128xf32>,
    %c16 = arith.constant 16 : index
    %c0_41 = arith.constant 0 : index
    %129 = vector.load %arg10[%c16, %c0_41] : memref<64x512xf32, #tpu.memory_space<vmem>>, vector<8x512xf32>
    %c0_42 = arith.constant 0 : index
    %c0_43 = arith.constant 0 : index
    %130 = vector.load %arg3[%c0_42, %c0_43] : memref<128x512xf32, #tpu.memory_space<vmem>>, vector<128x512xf32>
    %cst_44 = arith.constant dense<0.000000e+00> : vector<8x512xf32>
    %131 = tpu.matmul %98, %130, %cst_44 {dimension_numbers = #tpu.dot_dimension_numbers<[1], [0], [0], [1], [0, 0, 1, 1], [], []>} : vector<8x128xf32>, vector<128x512xf32>, vector<8x512xf32> -> vector<8x512xf32>
    %132 = arith.addf %129, %131 : vector<8x512xf32>
    %133 = vector.extract_strided_slice %132 {offsets = [0, 0], sizes = [8, 128], strides = [1, 1]} : vector<8x512xf32> to vector<8x128xf32>
    %134 = arith.negf %133 : vector<8x128xf32>
    %135 = math.exp %134 : vector<8x128xf32>
    %cst_45 = arith.constant 1.000000e+00 : f32
    %136 = vector.broadcast %cst_45 : f32 to vector<8x128xf32>
    %137 = arith.addf %136, %135 : vector<8x128xf32>
    %138 = arith.divf %136, %137 : vector<8x128xf32>
    %139 = vector.extract_strided_slice %132 {offsets = [0, 128], sizes = [8, 128], strides = [1, 1]} : vector<8x512xf32> to vector<8x128xf32>
    %140 = arith.negf %139 : vector<8x128xf32>
    %141 = math.exp %140 : vector<8x128xf32>
    %cst_46 = arith.constant 1.000000e+00 : f32
    %142 = vector.broadcast %cst_46 : f32 to vector<8x128xf32>
    %143 = arith.addf %142, %141 : vector<8x128xf32>
    %144 = arith.divf %142, %143 : vector<8x128xf32>
    %145 = vector.extract_strided_slice %132 {offsets = [0, 256], sizes = [8, 128], strides = [1, 1]} : vector<8x512xf32> to vector<8x128xf32>
    %146 = math.tanh %145 : vector<8x128xf32>
    %147 = vector.extract_strided_slice %132 {offsets = [0, 384], sizes = [8, 128], strides = [1, 1]} : vector<8x512xf32> to vector<8x128xf32>
    %148 = arith.negf %147 : vector<8x128xf32>
    %149 = math.exp %148 : vector<8x128xf32>
    %cst_47 = arith.constant 1.000000e+00 : f32
    %150 = vector.broadcast %cst_47 : f32 to vector<8x128xf32>
    %151 = arith.addf %150, %149 : vector<8x128xf32>
    %152 = arith.divf %150, %151 : vector<8x128xf32>
    %153 = arith.mulf %144, %96 : vector<8x128xf32>
    %154 = arith.mulf %138, %146 : vector<8x128xf32>
    %155 = arith.addf %153, %154 : vector<8x128xf32>
    %156 = math.tanh %155 : vector<8x128xf32>
    %157 = arith.mulf %152, %156 : vector<8x128xf32>
    %158 = tpu.concatenate %157, %127 in 1 : vector<8x128xf32>, vector<8x128xf32> -> vector<8x256xf32>
    %c0_48 = arith.constant 0 : index
    %c0_49 = arith.constant 0 : index
    %159 = vector.load %arg5[%c0_48, %c0_49] : memref<256x512xf32, #tpu.memory_space<vmem>>, vector<256x512xf32>
    %cst_50 = arith.constant dense<0.000000e+00> : vector<8x512xf32>
    %160 = tpu.matmul %158, %159, %cst_50 {dimension_numbers = #tpu.dot_dimension_numbers<[1], [0], [0], [1], [0, 0, 1, 1], [], []>} : vector<8x256xf32>, vector<256x512xf32>, vector<8x512xf32> -> vector<8x512xf32>
    %161 = arith.addf %160, %9 : vector<8x512xf32>
    %162 = vector.extract_strided_slice %161 {offsets = [0, 0], sizes = [8, 128], strides = [1, 1]} : vector<8x512xf32> to vector<8x128xf32>
    %163 = arith.negf %162 : vector<8x128xf32>
    %164 = math.exp %163 : vector<8x128xf32>
    %cst_51 = arith.constant 1.000000e+00 : f32
    %165 = vector.broadcast %cst_51 : f32 to vector<8x128xf32>
    %166 = arith.addf %165, %164 : vector<8x128xf32>
    %167 = arith.divf %165, %166 : vector<8x128xf32>
    %168 = vector.extract_strided_slice %161 {offsets = [0, 128], sizes = [8, 128], strides = [1, 1]} : vector<8x512xf32> to vector<8x128xf32>
    %169 = arith.negf %168 : vector<8x128xf32>
    %170 = math.exp %169 : vector<8x128xf32>
    %cst_52 = arith.constant 1.000000e+00 : f32
    %171 = vector.broadcast %cst_52 : f32 to vector<8x128xf32>
    %172 = arith.addf %171, %170 : vector<8x128xf32>
    %173 = arith.divf %171, %172 : vector<8x128xf32>
    %174 = vector.extract_strided_slice %161 {offsets = [0, 256], sizes = [8, 128], strides = [1, 1]} : vector<8x512xf32> to vector<8x128xf32>
    %175 = math.tanh %174 : vector<8x128xf32>
    %176 = vector.extract_strided_slice %161 {offsets = [0, 384], sizes = [8, 128], strides = [1, 1]} : vector<8x512xf32> to vector<8x128xf32>
    %177 = arith.negf %176 : vector<8x128xf32>
    %178 = math.exp %177 : vector<8x128xf32>
    %cst_53 = arith.constant 1.000000e+00 : f32
    %179 = vector.broadcast %cst_53 : f32 to vector<8x128xf32>
    %180 = arith.addf %179, %178 : vector<8x128xf32>
    %181 = arith.divf %179, %180 : vector<8x128xf32>
    %182 = arith.mulf %173, %125 : vector<8x128xf32>
    %183 = arith.mulf %167, %175 : vector<8x128xf32>
    %184 = arith.addf %182, %183 : vector<8x128xf32>
    %185 = math.tanh %184 : vector<8x128xf32>
    %186 = arith.mulf %181, %185 : vector<8x128xf32>
    %c16_54 = arith.constant 16 : index
    %c0_55 = arith.constant 0 : index
    %187 = vector.load %arg11[%c16_54, %c0_55] : memref<64x128xf32, #tpu.memory_space<vmem>>, vector<8x128xf32>
    tpu.vector_store %arg11[%c16_54, %c0_55], %186 {strides = array<i32>} : memref<64x128xf32, #tpu.memory_space<vmem>>, vector<8x128xf32>,
    %c24 = arith.constant 24 : index
    %c0_56 = arith.constant 0 : index
    %188 = vector.load %arg10[%c24, %c0_56] : memref<64x512xf32, #tpu.memory_space<vmem>>, vector<8x512xf32>
    %c0_57 = arith.constant 0 : index
    %c0_58 = arith.constant 0 : index
    %189 = vector.load %arg3[%c0_57, %c0_58] : memref<128x512xf32, #tpu.memory_space<vmem>>, vector<128x512xf32>
    %cst_59 = arith.constant dense<0.000000e+00> : vector<8x512xf32>
    %190 = tpu.matmul %157, %189, %cst_59 {dimension_numbers = #tpu.dot_dimension_numbers<[1], [0], [0], [1], [0, 0, 1, 1], [], []>} : vector<8x128xf32>, vector<128x512xf32>, vector<8x512xf32> -> vector<8x512xf32>
    %191 = arith.addf %188, %190 : vector<8x512xf32>
    %192 = vector.extract_strided_slice %191 {offsets = [0, 0], sizes = [8, 128], strides = [1, 1]} : vector<8x512xf32> to vector<8x128xf32>
    %193 = arith.negf %192 : vector<8x128xf32>
    %194 = math.exp %193 : vector<8x128xf32>
    %cst_60 = arith.constant 1.000000e+00 : f32
    %195 = vector.broadcast %cst_60 : f32 to vector<8x128xf32>
    %196 = arith.addf %195, %194 : vector<8x128xf32>
    %197 = arith.divf %195, %196 : vector<8x128xf32>
    %198 = vector.extract_strided_slice %191 {offsets = [0, 128], sizes = [8, 128], strides = [1, 1]} : vector<8x512xf32> to vector<8x128xf32>
    %199 = arith.negf %198 : vector<8x128xf32>
    %200 = math.exp %199 : vector<8x128xf32>
    %cst_61 = arith.constant 1.000000e+00 : f32
    %201 = vector.broadcast %cst_61 : f32 to vector<8x128xf32>
    %202 = arith.addf %201, %200 : vector<8x128xf32>
    %203 = arith.divf %201, %202 : vector<8x128xf32>
    %204 = vector.extract_strided_slice %191 {offsets = [0, 256], sizes = [8, 128], strides = [1, 1]} : vector<8x512xf32> to vector<8x128xf32>
    %205 = math.tanh %204 : vector<8x128xf32>
    %206 = vector.extract_strided_slice %191 {offsets = [0, 384], sizes = [8, 128], strides = [1, 1]} : vector<8x512xf32> to vector<8x128xf32>
    %207 = arith.negf %206 : vector<8x128xf32>
    %208 = math.exp %207 : vector<8x128xf32>
    %cst_62 = arith.constant 1.000000e+00 : f32
    %209 = vector.broadcast %cst_62 : f32 to vector<8x128xf32>
    %210 = arith.addf %209, %208 : vector<8x128xf32>
    %211 = arith.divf %209, %210 : vector<8x128xf32>
    %212 = arith.mulf %203, %155 : vector<8x128xf32>
    %213 = arith.mulf %197, %205 : vector<8x128xf32>
    %214 = arith.addf %212, %213 : vector<8x128xf32>
    %215 = math.tanh %214 : vector<8x128xf32>
    %216 = arith.mulf %211, %215 : vector<8x128xf32>
    %217 = tpu.concatenate %216, %186 in 1 : vector<8x128xf32>, vector<8x128xf32> -> vector<8x256xf32>
    %c0_63 = arith.constant 0 : index
    %c0_64 = arith.constant 0 : index
    %218 = vector.load %arg5[%c0_63, %c0_64] : memref<256x512xf32, #tpu.memory_space<vmem>>, vector<256x512xf32>
    %cst_65 = arith.constant dense<0.000000e+00> : vector<8x512xf32>
    %219 = tpu.matmul %217, %218, %cst_65 {dimension_numbers = #tpu.dot_dimension_numbers<[1], [0], [0], [1], [0, 0, 1, 1], [], []>} : vector<8x256xf32>, vector<256x512xf32>, vector<8x512xf32> -> vector<8x512xf32>
    %220 = arith.addf %219, %9 : vector<8x512xf32>
    %221 = vector.extract_strided_slice %220 {offsets = [0, 0], sizes = [8, 128], strides = [1, 1]} : vector<8x512xf32> to vector<8x128xf32>
    %222 = arith.negf %221 : vector<8x128xf32>
    %223 = math.exp %222 : vector<8x128xf32>
    %cst_66 = arith.constant 1.000000e+00 : f32
    %224 = vector.broadcast %cst_66 : f32 to vector<8x128xf32>
    %225 = arith.addf %224, %223 : vector<8x128xf32>
    %226 = arith.divf %224, %225 : vector<8x128xf32>
    %227 = vector.extract_strided_slice %220 {offsets = [0, 128], sizes = [8, 128], strides = [1, 1]} : vector<8x512xf32> to vector<8x128xf32>
    %228 = arith.negf %227 : vector<8x128xf32>
    %229 = math.exp %228 : vector<8x128xf32>
    %cst_67 = arith.constant 1.000000e+00 : f32
    %230 = vector.broadcast %cst_67 : f32 to vector<8x128xf32>
    %231 = arith.addf %230, %229 : vector<8x128xf32>
    %232 = arith.divf %230, %231 : vector<8x128xf32>
    %233 = vector.extract_strided_slice %220 {offsets = [0, 256], sizes = [8, 128], strides = [1, 1]} : vector<8x512xf32> to vector<8x128xf32>
    %234 = math.tanh %233 : vector<8x128xf32>
    %235 = vector.extract_strided_slice %220 {offsets = [0, 384], sizes = [8, 128], strides = [1, 1]} : vector<8x512xf32> to vector<8x128xf32>
    %236 = arith.negf %235 : vector<8x128xf32>
    %237 = math.exp %236 : vector<8x128xf32>
    %cst_68 = arith.constant 1.000000e+00 : f32
    %238 = vector.broadcast %cst_68 : f32 to vector<8x128xf32>
    %239 = arith.addf %238, %237 : vector<8x128xf32>
    %240 = arith.divf %238, %239 : vector<8x128xf32>
    %241 = arith.mulf %232, %184 : vector<8x128xf32>
    %242 = arith.mulf %226, %234 : vector<8x128xf32>
    %243 = arith.addf %241, %242 : vector<8x128xf32>
    %244 = math.tanh %243 : vector<8x128xf32>
    %245 = arith.mulf %240, %244 : vector<8x128xf32>
    %c24_69 = arith.constant 24 : index
    %c0_70 = arith.constant 0 : index
    %246 = vector.load %arg11[%c24_69, %c0_70] : memref<64x128xf32, #tpu.memory_space<vmem>>, vector<8x128xf32>
    tpu.vector_store %arg11[%c24_69, %c0_70], %245 {strides = array<i32>} : memref<64x128xf32, #tpu.memory_space<vmem>>, vector<8x128xf32>,
    %c32 = arith.constant 32 : index
    %c0_71 = arith.constant 0 : index
    %247 = vector.load %arg10[%c32, %c0_71] : memref<64x512xf32, #tpu.memory_space<vmem>>, vector<8x512xf32>
    %c0_72 = arith.constant 0 : index
    %c0_73 = arith.constant 0 : index
    %248 = vector.load %arg3[%c0_72, %c0_73] : memref<128x512xf32, #tpu.memory_space<vmem>>, vector<128x512xf32>
    %cst_74 = arith.constant dense<0.000000e+00> : vector<8x512xf32>
    %249 = tpu.matmul %216, %248, %cst_74 {dimension_numbers = #tpu.dot_dimension_numbers<[1], [0], [0], [1], [0, 0, 1, 1], [], []>} : vector<8x128xf32>, vector<128x512xf32>, vector<8x512xf32> -> vector<8x512xf32>
    %250 = arith.addf %247, %249 : vector<8x512xf32>
    %251 = vector.extract_strided_slice %250 {offsets = [0, 0], sizes = [8, 128], strides = [1, 1]} : vector<8x512xf32> to vector<8x128xf32>
    %252 = arith.negf %251 : vector<8x128xf32>
    %253 = math.exp %252 : vector<8x128xf32>
    %cst_75 = arith.constant 1.000000e+00 : f32
    %254 = vector.broadcast %cst_75 : f32 to vector<8x128xf32>
    %255 = arith.addf %254, %253 : vector<8x128xf32>
    %256 = arith.divf %254, %255 : vector<8x128xf32>
    %257 = vector.extract_strided_slice %250 {offsets = [0, 128], sizes = [8, 128], strides = [1, 1]} : vector<8x512xf32> to vector<8x128xf32>
    %258 = arith.negf %257 : vector<8x128xf32>
    %259 = math.exp %258 : vector<8x128xf32>
    %cst_76 = arith.constant 1.000000e+00 : f32
    %260 = vector.broadcast %cst_76 : f32 to vector<8x128xf32>
    %261 = arith.addf %260, %259 : vector<8x128xf32>
    %262 = arith.divf %260, %261 : vector<8x128xf32>
    %263 = vector.extract_strided_slice %250 {offsets = [0, 256], sizes = [8, 128], strides = [1, 1]} : vector<8x512xf32> to vector<8x128xf32>
    %264 = math.tanh %263 : vector<8x128xf32>
    %265 = vector.extract_strided_slice %250 {offsets = [0, 384], sizes = [8, 128], strides = [1, 1]} : vector<8x512xf32> to vector<8x128xf32>
    %266 = arith.negf %265 : vector<8x128xf32>
    %267 = math.exp %266 : vector<8x128xf32>
    %cst_77 = arith.constant 1.000000e+00 : f32
    %268 = vector.broadcast %cst_77 : f32 to vector<8x128xf32>
    %269 = arith.addf %268, %267 : vector<8x128xf32>
    %270 = arith.divf %268, %269 : vector<8x128xf32>
    %271 = arith.mulf %262, %214 : vector<8x128xf32>
    %272 = arith.mulf %256, %264 : vector<8x128xf32>
    %273 = arith.addf %271, %272 : vector<8x128xf32>
    %274 = math.tanh %273 : vector<8x128xf32>
    %275 = arith.mulf %270, %274 : vector<8x128xf32>
    %276 = tpu.concatenate %275, %245 in 1 : vector<8x128xf32>, vector<8x128xf32> -> vector<8x256xf32>
    %c0_78 = arith.constant 0 : index
    %c0_79 = arith.constant 0 : index
    %277 = vector.load %arg5[%c0_78, %c0_79] : memref<256x512xf32, #tpu.memory_space<vmem>>, vector<256x512xf32>
    %cst_80 = arith.constant dense<0.000000e+00> : vector<8x512xf32>
    %278 = tpu.matmul %276, %277, %cst_80 {dimension_numbers = #tpu.dot_dimension_numbers<[1], [0], [0], [1], [0, 0, 1, 1], [], []>} : vector<8x256xf32>, vector<256x512xf32>, vector<8x512xf32> -> vector<8x512xf32>
    %279 = arith.addf %278, %9 : vector<8x512xf32>
    %280 = vector.extract_strided_slice %279 {offsets = [0, 0], sizes = [8, 128], strides = [1, 1]} : vector<8x512xf32> to vector<8x128xf32>
    %281 = arith.negf %280 : vector<8x128xf32>
    %282 = math.exp %281 : vector<8x128xf32>
    %cst_81 = arith.constant 1.000000e+00 : f32
    %283 = vector.broadcast %cst_81 : f32 to vector<8x128xf32>
    %284 = arith.addf %283, %282 : vector<8x128xf32>
    %285 = arith.divf %283, %284 : vector<8x128xf32>
    %286 = vector.extract_strided_slice %279 {offsets = [0, 128], sizes = [8, 128], strides = [1, 1]} : vector<8x512xf32> to vector<8x128xf32>
    %287 = arith.negf %286 : vector<8x128xf32>
    %288 = math.exp %287 : vector<8x128xf32>
    %cst_82 = arith.constant 1.000000e+00 : f32
    %289 = vector.broadcast %cst_82 : f32 to vector<8x128xf32>
    %290 = arith.addf %289, %288 : vector<8x128xf32>
    %291 = arith.divf %289, %290 : vector<8x128xf32>
    %292 = vector.extract_strided_slice %279 {offsets = [0, 256], sizes = [8, 128], strides = [1, 1]} : vector<8x512xf32> to vector<8x128xf32>
    %293 = math.tanh %292 : vector<8x128xf32>
    %294 = vector.extract_strided_slice %279 {offsets = [0, 384], sizes = [8, 128], strides = [1, 1]} : vector<8x512xf32> to vector<8x128xf32>
    %295 = arith.negf %294 : vector<8x128xf32>
    %296 = math.exp %295 : vector<8x128xf32>
    %cst_83 = arith.constant 1.000000e+00 : f32
    %297 = vector.broadcast %cst_83 : f32 to vector<8x128xf32>
    %298 = arith.addf %297, %296 : vector<8x128xf32>
    %299 = arith.divf %297, %298 : vector<8x128xf32>
    %300 = arith.mulf %291, %243 : vector<8x128xf32>
    %301 = arith.mulf %285, %293 : vector<8x128xf32>
    %302 = arith.addf %300, %301 : vector<8x128xf32>
    %303 = math.tanh %302 : vector<8x128xf32>
    %304 = arith.mulf %299, %303 : vector<8x128xf32>
    %c32_84 = arith.constant 32 : index
    %c0_85 = arith.constant 0 : index
    %305 = vector.load %arg11[%c32_84, %c0_85] : memref<64x128xf32, #tpu.memory_space<vmem>>, vector<8x128xf32>
    tpu.vector_store %arg11[%c32_84, %c0_85], %304 {strides = array<i32>} : memref<64x128xf32, #tpu.memory_space<vmem>>, vector<8x128xf32>,
    %c40 = arith.constant 40 : index
    %c0_86 = arith.constant 0 : index
    %306 = vector.load %arg10[%c40, %c0_86] : memref<64x512xf32, #tpu.memory_space<vmem>>, vector<8x512xf32>
    %c0_87 = arith.constant 0 : index
    %c0_88 = arith.constant 0 : index
    %307 = vector.load %arg3[%c0_87, %c0_88] : memref<128x512xf32, #tpu.memory_space<vmem>>, vector<128x512xf32>
    %cst_89 = arith.constant dense<0.000000e+00> : vector<8x512xf32>
    %308 = tpu.matmul %275, %307, %cst_89 {dimension_numbers = #tpu.dot_dimension_numbers<[1], [0], [0], [1], [0, 0, 1, 1], [], []>} : vector<8x128xf32>, vector<128x512xf32>, vector<8x512xf32> -> vector<8x512xf32>
    %309 = arith.addf %306, %308 : vector<8x512xf32>
    %310 = vector.extract_strided_slice %309 {offsets = [0, 0], sizes = [8, 128], strides = [1, 1]} : vector<8x512xf32> to vector<8x128xf32>
    %311 = arith.negf %310 : vector<8x128xf32>
    %312 = math.exp %311 : vector<8x128xf32>
    %cst_90 = arith.constant 1.000000e+00 : f32
    %313 = vector.broadcast %cst_90 : f32 to vector<8x128xf32>
    %314 = arith.addf %313, %312 : vector<8x128xf32>
    %315 = arith.divf %313, %314 : vector<8x128xf32>
    %316 = vector.extract_strided_slice %309 {offsets = [0, 128], sizes = [8, 128], strides = [1, 1]} : vector<8x512xf32> to vector<8x128xf32>
    %317 = arith.negf %316 : vector<8x128xf32>
    %318 = math.exp %317 : vector<8x128xf32>
    %cst_91 = arith.constant 1.000000e+00 : f32
    %319 = vector.broadcast %cst_91 : f32 to vector<8x128xf32>
    %320 = arith.addf %319, %318 : vector<8x128xf32>
    %321 = arith.divf %319, %320 : vector<8x128xf32>
    %322 = vector.extract_strided_slice %309 {offsets = [0, 256], sizes = [8, 128], strides = [1, 1]} : vector<8x512xf32> to vector<8x128xf32>
    %323 = math.tanh %322 : vector<8x128xf32>
    %324 = vector.extract_strided_slice %309 {offsets = [0, 384], sizes = [8, 128], strides = [1, 1]} : vector<8x512xf32> to vector<8x128xf32>
    %325 = arith.negf %324 : vector<8x128xf32>
    %326 = math.exp %325 : vector<8x128xf32>
    %cst_92 = arith.constant 1.000000e+00 : f32
    %327 = vector.broadcast %cst_92 : f32 to vector<8x128xf32>
    %328 = arith.addf %327, %326 : vector<8x128xf32>
    %329 = arith.divf %327, %328 : vector<8x128xf32>
    %330 = arith.mulf %321, %273 : vector<8x128xf32>
    %331 = arith.mulf %315, %323 : vector<8x128xf32>
    %332 = arith.addf %330, %331 : vector<8x128xf32>
    %333 = math.tanh %332 : vector<8x128xf32>
    %334 = arith.mulf %329, %333 : vector<8x128xf32>
    %335 = tpu.concatenate %334, %304 in 1 : vector<8x128xf32>, vector<8x128xf32> -> vector<8x256xf32>
    %c0_93 = arith.constant 0 : index
    %c0_94 = arith.constant 0 : index
    %336 = vector.load %arg5[%c0_93, %c0_94] : memref<256x512xf32, #tpu.memory_space<vmem>>, vector<256x512xf32>
    %cst_95 = arith.constant dense<0.000000e+00> : vector<8x512xf32>
    %337 = tpu.matmul %335, %336, %cst_95 {dimension_numbers = #tpu.dot_dimension_numbers<[1], [0], [0], [1], [0, 0, 1, 1], [], []>} : vector<8x256xf32>, vector<256x512xf32>, vector<8x512xf32> -> vector<8x512xf32>
    %338 = arith.addf %337, %9 : vector<8x512xf32>
    %339 = vector.extract_strided_slice %338 {offsets = [0, 0], sizes = [8, 128], strides = [1, 1]} : vector<8x512xf32> to vector<8x128xf32>
    %340 = arith.negf %339 : vector<8x128xf32>
    %341 = math.exp %340 : vector<8x128xf32>
    %cst_96 = arith.constant 1.000000e+00 : f32
    %342 = vector.broadcast %cst_96 : f32 to vector<8x128xf32>
    %343 = arith.addf %342, %341 : vector<8x128xf32>
    %344 = arith.divf %342, %343 : vector<8x128xf32>
    %345 = vector.extract_strided_slice %338 {offsets = [0, 128], sizes = [8, 128], strides = [1, 1]} : vector<8x512xf32> to vector<8x128xf32>
    %346 = arith.negf %345 : vector<8x128xf32>
    %347 = math.exp %346 : vector<8x128xf32>
    %cst_97 = arith.constant 1.000000e+00 : f32
    %348 = vector.broadcast %cst_97 : f32 to vector<8x128xf32>
    %349 = arith.addf %348, %347 : vector<8x128xf32>
    %350 = arith.divf %348, %349 : vector<8x128xf32>
    %351 = vector.extract_strided_slice %338 {offsets = [0, 256], sizes = [8, 128], strides = [1, 1]} : vector<8x512xf32> to vector<8x128xf32>
    %352 = math.tanh %351 : vector<8x128xf32>
    %353 = vector.extract_strided_slice %338 {offsets = [0, 384], sizes = [8, 128], strides = [1, 1]} : vector<8x512xf32> to vector<8x128xf32>
    %354 = arith.negf %353 : vector<8x128xf32>
    %355 = math.exp %354 : vector<8x128xf32>
    %cst_98 = arith.constant 1.000000e+00 : f32
    %356 = vector.broadcast %cst_98 : f32 to vector<8x128xf32>
    %357 = arith.addf %356, %355 : vector<8x128xf32>
    %358 = arith.divf %356, %357 : vector<8x128xf32>
    %359 = arith.mulf %350, %302 : vector<8x128xf32>
    %360 = arith.mulf %344, %352 : vector<8x128xf32>
    %361 = arith.addf %359, %360 : vector<8x128xf32>
    %362 = math.tanh %361 : vector<8x128xf32>
    %363 = arith.mulf %358, %362 : vector<8x128xf32>
    %c40_99 = arith.constant 40 : index
    %c0_100 = arith.constant 0 : index
    %364 = vector.load %arg11[%c40_99, %c0_100] : memref<64x128xf32, #tpu.memory_space<vmem>>, vector<8x128xf32>
    tpu.vector_store %arg11[%c40_99, %c0_100], %363 {strides = array<i32>} : memref<64x128xf32, #tpu.memory_space<vmem>>, vector<8x128xf32>,
    %c48 = arith.constant 48 : index
    %c0_101 = arith.constant 0 : index
    %365 = vector.load %arg10[%c48, %c0_101] : memref<64x512xf32, #tpu.memory_space<vmem>>, vector<8x512xf32>
    %c0_102 = arith.constant 0 : index
    %c0_103 = arith.constant 0 : index
    %366 = vector.load %arg3[%c0_102, %c0_103] : memref<128x512xf32, #tpu.memory_space<vmem>>, vector<128x512xf32>
    %cst_104 = arith.constant dense<0.000000e+00> : vector<8x512xf32>
    %367 = tpu.matmul %334, %366, %cst_104 {dimension_numbers = #tpu.dot_dimension_numbers<[1], [0], [0], [1], [0, 0, 1, 1], [], []>} : vector<8x128xf32>, vector<128x512xf32>, vector<8x512xf32> -> vector<8x512xf32>
    %368 = arith.addf %365, %367 : vector<8x512xf32>
    %369 = vector.extract_strided_slice %368 {offsets = [0, 0], sizes = [8, 128], strides = [1, 1]} : vector<8x512xf32> to vector<8x128xf32>
    %370 = arith.negf %369 : vector<8x128xf32>
    %371 = math.exp %370 : vector<8x128xf32>
    %cst_105 = arith.constant 1.000000e+00 : f32
    %372 = vector.broadcast %cst_105 : f32 to vector<8x128xf32>
    %373 = arith.addf %372, %371 : vector<8x128xf32>
    %374 = arith.divf %372, %373 : vector<8x128xf32>
    %375 = vector.extract_strided_slice %368 {offsets = [0, 128], sizes = [8, 128], strides = [1, 1]} : vector<8x512xf32> to vector<8x128xf32>
    %376 = arith.negf %375 : vector<8x128xf32>
    %377 = math.exp %376 : vector<8x128xf32>
    %cst_106 = arith.constant 1.000000e+00 : f32
    %378 = vector.broadcast %cst_106 : f32 to vector<8x128xf32>
    %379 = arith.addf %378, %377 : vector<8x128xf32>
    %380 = arith.divf %378, %379 : vector<8x128xf32>
    %381 = vector.extract_strided_slice %368 {offsets = [0, 256], sizes = [8, 128], strides = [1, 1]} : vector<8x512xf32> to vector<8x128xf32>
    %382 = math.tanh %381 : vector<8x128xf32>
    %383 = vector.extract_strided_slice %368 {offsets = [0, 384], sizes = [8, 128], strides = [1, 1]} : vector<8x512xf32> to vector<8x128xf32>
    %384 = arith.negf %383 : vector<8x128xf32>
    %385 = math.exp %384 : vector<8x128xf32>
    %cst_107 = arith.constant 1.000000e+00 : f32
    %386 = vector.broadcast %cst_107 : f32 to vector<8x128xf32>
    %387 = arith.addf %386, %385 : vector<8x128xf32>
    %388 = arith.divf %386, %387 : vector<8x128xf32>
    %389 = arith.mulf %380, %332 : vector<8x128xf32>
    %390 = arith.mulf %374, %382 : vector<8x128xf32>
    %391 = arith.addf %389, %390 : vector<8x128xf32>
    %392 = math.tanh %391 : vector<8x128xf32>
    %393 = arith.mulf %388, %392 : vector<8x128xf32>
    %394 = tpu.concatenate %393, %363 in 1 : vector<8x128xf32>, vector<8x128xf32> -> vector<8x256xf32>
    %c0_108 = arith.constant 0 : index
    %c0_109 = arith.constant 0 : index
    %395 = vector.load %arg5[%c0_108, %c0_109] : memref<256x512xf32, #tpu.memory_space<vmem>>, vector<256x512xf32>
    %cst_110 = arith.constant dense<0.000000e+00> : vector<8x512xf32>
    %396 = tpu.matmul %394, %395, %cst_110 {dimension_numbers = #tpu.dot_dimension_numbers<[1], [0], [0], [1], [0, 0, 1, 1], [], []>} : vector<8x256xf32>, vector<256x512xf32>, vector<8x512xf32> -> vector<8x512xf32>
    %397 = arith.addf %396, %9 : vector<8x512xf32>
    %398 = vector.extract_strided_slice %397 {offsets = [0, 0], sizes = [8, 128], strides = [1, 1]} : vector<8x512xf32> to vector<8x128xf32>
    %399 = arith.negf %398 : vector<8x128xf32>
    %400 = math.exp %399 : vector<8x128xf32>
    %cst_111 = arith.constant 1.000000e+00 : f32
    %401 = vector.broadcast %cst_111 : f32 to vector<8x128xf32>
    %402 = arith.addf %401, %400 : vector<8x128xf32>
    %403 = arith.divf %401, %402 : vector<8x128xf32>
    %404 = vector.extract_strided_slice %397 {offsets = [0, 128], sizes = [8, 128], strides = [1, 1]} : vector<8x512xf32> to vector<8x128xf32>
    %405 = arith.negf %404 : vector<8x128xf32>
    %406 = math.exp %405 : vector<8x128xf32>
    %cst_112 = arith.constant 1.000000e+00 : f32
    %407 = vector.broadcast %cst_112 : f32 to vector<8x128xf32>
    %408 = arith.addf %407, %406 : vector<8x128xf32>
    %409 = arith.divf %407, %408 : vector<8x128xf32>
    %410 = vector.extract_strided_slice %397 {offsets = [0, 256], sizes = [8, 128], strides = [1, 1]} : vector<8x512xf32> to vector<8x128xf32>
    %411 = math.tanh %410 : vector<8x128xf32>
    %412 = vector.extract_strided_slice %397 {offsets = [0, 384], sizes = [8, 128], strides = [1, 1]} : vector<8x512xf32> to vector<8x128xf32>
    %413 = arith.negf %412 : vector<8x128xf32>
    %414 = math.exp %413 : vector<8x128xf32>
    %cst_113 = arith.constant 1.000000e+00 : f32
    %415 = vector.broadcast %cst_113 : f32 to vector<8x128xf32>
    %416 = arith.addf %415, %414 : vector<8x128xf32>
    %417 = arith.divf %415, %416 : vector<8x128xf32>
    %418 = arith.mulf %409, %361 : vector<8x128xf32>
    %419 = arith.mulf %403, %411 : vector<8x128xf32>
    %420 = arith.addf %418, %419 : vector<8x128xf32>
    %421 = math.tanh %420 : vector<8x128xf32>
    %422 = arith.mulf %417, %421 : vector<8x128xf32>
    %c48_114 = arith.constant 48 : index
    %c0_115 = arith.constant 0 : index
    %423 = vector.load %arg11[%c48_114, %c0_115] : memref<64x128xf32, #tpu.memory_space<vmem>>, vector<8x128xf32>
    tpu.vector_store %arg11[%c48_114, %c0_115], %422 {strides = array<i32>} : memref<64x128xf32, #tpu.memory_space<vmem>>, vector<8x128xf32>,
    %c56 = arith.constant 56 : index
    %c0_116 = arith.constant 0 : index
    %424 = vector.load %arg10[%c56, %c0_116] : memref<64x512xf32, #tpu.memory_space<vmem>>, vector<8x512xf32>
    %c0_117 = arith.constant 0 : index
    %c0_118 = arith.constant 0 : index
    %425 = vector.load %arg3[%c0_117, %c0_118] : memref<128x512xf32, #tpu.memory_space<vmem>>, vector<128x512xf32>
    %cst_119 = arith.constant dense<0.000000e+00> : vector<8x512xf32>
    %426 = tpu.matmul %393, %425, %cst_119 {dimension_numbers = #tpu.dot_dimension_numbers<[1], [0], [0], [1], [0, 0, 1, 1], [], []>} : vector<8x128xf32>, vector<128x512xf32>, vector<8x512xf32> -> vector<8x512xf32>
    %427 = arith.addf %424, %426 : vector<8x512xf32>
    %428 = vector.extract_strided_slice %427 {offsets = [0, 0], sizes = [8, 128], strides = [1, 1]} : vector<8x512xf32> to vector<8x128xf32>
    %429 = arith.negf %428 : vector<8x128xf32>
    %430 = math.exp %429 : vector<8x128xf32>
    %cst_120 = arith.constant 1.000000e+00 : f32
    %431 = vector.broadcast %cst_120 : f32 to vector<8x128xf32>
    %432 = arith.addf %431, %430 : vector<8x128xf32>
    %433 = arith.divf %431, %432 : vector<8x128xf32>
    %434 = vector.extract_strided_slice %427 {offsets = [0, 128], sizes = [8, 128], strides = [1, 1]} : vector<8x512xf32> to vector<8x128xf32>
    %435 = arith.negf %434 : vector<8x128xf32>
    %436 = math.exp %435 : vector<8x128xf32>
    %cst_121 = arith.constant 1.000000e+00 : f32
    %437 = vector.broadcast %cst_121 : f32 to vector<8x128xf32>
    %438 = arith.addf %437, %436 : vector<8x128xf32>
    %439 = arith.divf %437, %438 : vector<8x128xf32>
    %440 = vector.extract_strided_slice %427 {offsets = [0, 256], sizes = [8, 128], strides = [1, 1]} : vector<8x512xf32> to vector<8x128xf32>
    %441 = math.tanh %440 : vector<8x128xf32>
    %442 = vector.extract_strided_slice %427 {offsets = [0, 384], sizes = [8, 128], strides = [1, 1]} : vector<8x512xf32> to vector<8x128xf32>
    %443 = arith.negf %442 : vector<8x128xf32>
    %444 = math.exp %443 : vector<8x128xf32>
    %cst_122 = arith.constant 1.000000e+00 : f32
    %445 = vector.broadcast %cst_122 : f32 to vector<8x128xf32>
    %446 = arith.addf %445, %444 : vector<8x128xf32>
    %447 = arith.divf %445, %446 : vector<8x128xf32>
    %448 = arith.mulf %439, %391 : vector<8x128xf32>
    %449 = arith.mulf %433, %441 : vector<8x128xf32>
    %450 = arith.addf %448, %449 : vector<8x128xf32>
    %451 = math.tanh %450 : vector<8x128xf32>
    %452 = arith.mulf %447, %451 : vector<8x128xf32>
    %453 = tpu.concatenate %452, %422 in 1 : vector<8x128xf32>, vector<8x128xf32> -> vector<8x256xf32>
    %c0_123 = arith.constant 0 : index
    %c0_124 = arith.constant 0 : index
    %454 = vector.load %arg5[%c0_123, %c0_124] : memref<256x512xf32, #tpu.memory_space<vmem>>, vector<256x512xf32>
    %cst_125 = arith.constant dense<0.000000e+00> : vector<8x512xf32>
    %455 = tpu.matmul %453, %454, %cst_125 {dimension_numbers = #tpu.dot_dimension_numbers<[1], [0], [0], [1], [0, 0, 1, 1], [], []>} : vector<8x256xf32>, vector<256x512xf32>, vector<8x512xf32> -> vector<8x512xf32>
    %456 = arith.addf %455, %9 : vector<8x512xf32>
    %457 = vector.extract_strided_slice %456 {offsets = [0, 0], sizes = [8, 128], strides = [1, 1]} : vector<8x512xf32> to vector<8x128xf32>
    %458 = arith.negf %457 : vector<8x128xf32>
    %459 = math.exp %458 : vector<8x128xf32>
    %cst_126 = arith.constant 1.000000e+00 : f32
    %460 = vector.broadcast %cst_126 : f32 to vector<8x128xf32>
    %461 = arith.addf %460, %459 : vector<8x128xf32>
    %462 = arith.divf %460, %461 : vector<8x128xf32>
    %463 = vector.extract_strided_slice %456 {offsets = [0, 128], sizes = [8, 128], strides = [1, 1]} : vector<8x512xf32> to vector<8x128xf32>
    %464 = arith.negf %463 : vector<8x128xf32>
    %465 = math.exp %464 : vector<8x128xf32>
    %cst_127 = arith.constant 1.000000e+00 : f32
    %466 = vector.broadcast %cst_127 : f32 to vector<8x128xf32>
    %467 = arith.addf %466, %465 : vector<8x128xf32>
    %468 = arith.divf %466, %467 : vector<8x128xf32>
    %469 = vector.extract_strided_slice %456 {offsets = [0, 256], sizes = [8, 128], strides = [1, 1]} : vector<8x512xf32> to vector<8x128xf32>
    %470 = math.tanh %469 : vector<8x128xf32>
    %471 = vector.extract_strided_slice %456 {offsets = [0, 384], sizes = [8, 128], strides = [1, 1]} : vector<8x512xf32> to vector<8x128xf32>
    %472 = arith.negf %471 : vector<8x128xf32>
    %473 = math.exp %472 : vector<8x128xf32>
    %cst_128 = arith.constant 1.000000e+00 : f32
    %474 = vector.broadcast %cst_128 : f32 to vector<8x128xf32>
    %475 = arith.addf %474, %473 : vector<8x128xf32>
    %476 = arith.divf %474, %475 : vector<8x128xf32>
    %477 = arith.mulf %468, %420 : vector<8x128xf32>
    %478 = arith.mulf %462, %470 : vector<8x128xf32>
    %479 = arith.addf %477, %478 : vector<8x128xf32>
    %480 = math.tanh %479 : vector<8x128xf32>
    %481 = arith.mulf %476, %480 : vector<8x128xf32>
    %c56_129 = arith.constant 56 : index
    %c0_130 = arith.constant 0 : index
    %482 = vector.load %arg11[%c56_129, %c0_130] : memref<64x128xf32, #tpu.memory_space<vmem>>, vector<8x128xf32>
    tpu.vector_store %arg11[%c56_129, %c0_130], %481 {strides = array<i32>} : memref<64x128xf32, #tpu.memory_space<vmem>>, vector<8x128xf32>,
    %c0_131 = arith.constant 0 : index
    %c0_132 = arith.constant 0 : index
    %483 = vector.load %arg11[%c0_131, %c0_132] : memref<64x128xf32, #tpu.memory_space<vmem>>, vector<64x128xf32>
    %c0_133 = arith.constant 0 : index
    %c0_134 = arith.constant 0 : index
    %484 = vector.load %arg7[%c0_133, %c0_134] : memref<128x16xf32, #tpu.memory_space<vmem>>, vector<128x16xf32>
    %cst_135 = arith.constant dense<0.000000e+00> : vector<64x16xf32>
    %485 = tpu.matmul %483, %484, %cst_135 {dimension_numbers = #tpu.dot_dimension_numbers<[1], [0], [0], [1], [0, 0, 1, 1], [], []>} : vector<64x128xf32>, vector<128x16xf32>, vector<64x16xf32> -> vector<64x16xf32>
    %c0_136 = arith.constant 0 : index
    %c0_137 = arith.constant 0 : index
    %486 = vector.load %arg8[%c0_136, %c0_137] : memref<1x16xf32, #tpu.memory_space<vmem>>, vector<1x16xf32>
    %487 = vector.broadcast %486 : vector<1x16xf32> to vector<64x16xf32>
    %488 = arith.addf %485, %487 : vector<64x16xf32>
    %c0_138 = arith.constant 0 : index
    %c0_139 = arith.constant 0 : index
    %489 = vector.load %arg9[%c0_138, %c0_139] : memref<64x16xf32, #tpu.memory_space<vmem>>, vector<64x16xf32>
    tpu.vector_store %arg9[%c0_138, %c0_139], %488 {strides = array<i32>} : memref<64x16xf32, #tpu.memory_space<vmem>>, vector<64x16xf32>,
    return
  }
  func.func @transform_0(%arg0: i32) -> (i32, i32) {
    %c0_i32 = arith.constant 0 : i32
    %c0_i32_0 = arith.constant 0 : i32
    %c0_i32_1 = arith.constant 0 : i32
    return %c0_i32, %c0_i32_0 : i32, i32
  }
  func.func @transform_1(%arg0: i32) -> (i32, i32) {
    %c0_i32 = arith.constant 0 : i32
    %c0_i32_0 = arith.constant 0 : i32
    %c0_i32_1 = arith.constant 0 : i32
    return %c0_i32, %c0_i32_0 : i32, i32
  }
  func.func @transform_2(%arg0: i32) -> (i32, i32) {
    %c0_i32 = arith.constant 0 : i32
    %c0_i32_0 = arith.constant 0 : i32
    %c0_i32_1 = arith.constant 0 : i32
    return %c0_i32, %c0_i32_0 : i32, i32
  }
  func.func @transform_3(%arg0: i32) -> (i32, i32) {
    %c0_i32 = arith.constant 0 : i32
    %c0_i32_0 = arith.constant 0 : i32
    %c0_i32_1 = arith.constant 0 : i32
    return %c0_i32, %c0_i32_0 : i32, i32
  }
  func.func @transform_4(%arg0: i32) -> (i32, i32) {
    %c0_i32 = arith.constant 0 : i32
    %c0_i32_0 = arith.constant 0 : i32
    %c0_i32_1 = arith.constant 0 : i32
    return %c0_i32, %c0_i32_0 : i32, i32
  }
  func.func @transform_5(%arg0: i32) -> (i32, i32) {
    %c0_i32 = arith.constant 0 : i32
    %c0_i32_0 = arith.constant 0 : i32
    %c0_i32_1 = arith.constant 0 : i32
    return %c0_i32, %c0_i32_0 : i32, i32
  }
  func.func @transform_6(%arg0: i32) -> (i32, i32) {
    %c0_i32 = arith.constant 0 : i32
    %c0_i32_0 = arith.constant 0 : i32
    %c0_i32_1 = arith.constant 0 : i32
    return %c0_i32, %c0_i32_0 : i32, i32
  }
  func.func @transform_7(%arg0: i32) -> (i32, i32) {
    %c0_i32 = arith.constant 0 : i32
    %c0_i32_0 = arith.constant 0 : i32
    %c0_i32_1 = arith.constant 0 : i32
    return %c0_i32, %c0_i32_0 : i32, i32
  }
  func.func @transform_8(%arg0: i32) -> (i32, i32) {
    %c0_i32 = arith.constant 0 : i32
    %c0_i32_0 = arith.constant 0 : i32
    %c0_i32_1 = arith.constant 0 : i32
    return %c0_i32, %c0_i32_0 : i32, i32
  }
}

</mosaic_0001>

<llo_original>
// kernel: lstm_model_forward.1
$region0: #{lstm_model_forward.1}
  #allocation0 [shape = 'u32[]', space=smem, size = 0x4, offset = 0x4, fixed_abs, tag = 'smem constant byte address 0x4 - core index']
  #allocation1 [shape = 'u32[144,128]{1,0:T(1,128)}', space=vmem, size = 0x12000, scoped, tag = 'internal scratch']
  #allocation2 [shape = 'f32[64,512]{1,0:T(8,128)}', space=vmem, size = 0x20000, scoped, tag = 'scratch operand']
  #allocation3 [shape = 'f32[64,128]{1,0:T(8,128)}', space=vmem, size = 0x8000, scoped, tag = 'scratch operand']
  %s0 = inlined_call_operand.vmem [shape: f32[64,16], index: 0, kind: input, shape index: {}]
  %s1 = inlined_call_operand.vmem [shape: f32[16,512], index: 1, kind: input, shape index: {}]
  %s2 = inlined_call_operand.vmem [shape: f32[128,512], index: 2, kind: input, shape index: {}]
  %s3 = inlined_call_operand.vmem [shape: f32[1,512], index: 3, kind: input, shape index: {}]
  %s4 = inlined_call_operand.vmem [shape: f32[256,512], index: 4, kind: input, shape index: {}]
  %s5 = inlined_call_operand.vmem [shape: f32[1,512], index: 5, kind: input, shape index: {}]
  %s6 = inlined_call_operand.vmem [shape: f32[128,16], index: 6, kind: input, shape index: {}]
  %s7 = inlined_call_operand.vmem [shape: f32[1,16], index: 7, kind: input, shape index: {}]
  %s8 = inlined_call_operand.vmem [shape: f32[64,16], index: 8, kind: output, shape index: {}]
  %s9 = sld [smem:[#allocation0]]
  $region42: #{lstm_model_forward.1} parent=0
    _
  %s11 = ssub.s32 1, %s9
  %s12 = scalar_select 0, %s11, %s9
  // Predicated region
  $region2: #{lstm_model_forward.1} parent=0 // pred_check
    _
  $region3: #{lstm_model_forward.1} parent=0 // pred_check_branch
    %14 = sbr.rel (0) target = $region5
  $region4: #{lstm_model_forward.1} parent=0 // pred_region
    _
  $region5: #{lstm_model_forward.1} parent=0 // pred_fallthru
    _
  // Predicated region
  $region6: #{lstm_model_forward.1} parent=0 // pred_check
    _
  $region7: #{lstm_model_forward.1} parent=0 // pred_check_branch
    %16 = sbr.rel (0) target = $region9
  $region8: #{lstm_model_forward.1} parent=0 // pred_region
    _
  $region9: #{lstm_model_forward.1} parent=0 // pred_fallthru
    _
  // Predicated region
  $region10: #{lstm_model_forward.1} parent=0 // pred_check
    _
  $region11: #{lstm_model_forward.1} parent=0 // pred_check_branch
    %18 = sbr.rel (0) target = $region13
  $region12: #{lstm_model_forward.1} parent=0 // pred_region
    _
  $region13: #{lstm_model_forward.1} parent=0 // pred_fallthru
    _
  // Predicated region
  $region14: #{lstm_model_forward.1} parent=0 // pred_check
    _
  $region15: #{lstm_model_forward.1} parent=0 // pred_check_branch
    %20 = sbr.rel (0) target = $region17
  $region16: #{lstm_model_forward.1} parent=0 // pred_region
    _
  $region17: #{lstm_model_forward.1} parent=0 // pred_fallthru
    _
  // Predicated region
  $region18: #{lstm_model_forward.1} parent=0 // pred_check
    _
  $region19: #{lstm_model_forward.1} parent=0 // pred_check_branch
    %22 = sbr.rel (0) target = $region21
  $region20: #{lstm_model_forward.1} parent=0 // pred_region
    _
  $region21: #{lstm_model_forward.1} parent=0 // pred_fallthru
    _
  // Predicated region
  $region22: #{lstm_model_forward.1} parent=0 // pred_check
    _
  $region23: #{lstm_model_forward.1} parent=0 // pred_check_branch
    %24 = sbr.rel (0) target = $region25
  $region24: #{lstm_model_forward.1} parent=0 // pred_region
    _
  $region25: #{lstm_model_forward.1} parent=0 // pred_fallthru
    _
  // Predicated region
  $region26: #{lstm_model_forward.1} parent=0 // pred_check
    _
  $region27: #{lstm_model_forward.1} parent=0 // pred_check_branch
    %26 = sbr.rel (0) target = $region29
  $region28: #{lstm_model_forward.1} parent=0 // pred_region
    _
  $region29: #{lstm_model_forward.1} parent=0 // pred_fallthru
    _
  // Predicated region
  $region30: #{lstm_model_forward.1} parent=0 // pred_check
    _
  $region31: #{lstm_model_forward.1} parent=0 // pred_check_branch
    %28 = sbr.rel (0) target = $region33
  $region32: #{lstm_model_forward.1} parent=0 // pred_region
    _
  $region33: #{lstm_model_forward.1} parent=0 // pred_fallthru
    _
  %v29 = vld [vmem:[%s0] sm:$0xff]
  %v30 = vld [vmem:[%s0 + $0x8] sm:$0xff]
  %v31 = vld [vmem:[%s0 + $0x10] sm:$0xff]
  %v32 = vld [vmem:[%s0 + $0x18] sm:$0xff]
  %v33 = vld [vmem:[%s0 + $0x20] sm:$0xff]
  %v34 = vld [vmem:[%s0 + $0x28] sm:$0xff]
  %v35 = vld [vmem:[%s0 + $0x30] sm:$0xff]
  %v36 = vld [vmem:[%s0 + $0x38] sm:$0xff]
  %v37 = vld [vmem:[%s1] sm:$0xff]
  %v38 = vld [vmem:[%s1 + $0x8] sm:$0xff]
  %v39 = vld [vmem:[%s1 + $0x10] sm:$0xff]
  %v40 = vld [vmem:[%s1 + $0x18] sm:$0xff]
  %v41 = vld [vmem:[%s1 + $0x20] sm:$0xff]
  %v42 = vld [vmem:[%s1 + $0x28] sm:$0xff]
  %v43 = vld [vmem:[%s1 + $0x30] sm:$0xff]
  %v44 = vld [vmem:[%s1 + $0x38] sm:$0xff]
  %v45 = vld [vmem:[%s3] sm:$0xf]
  %v47 = vlaneseq
  %v48 = vshrl.u32 %v47, 7
  %v49 = vsub.s32 0, %v48
  %v50 = vrot.slane %v45, %v49
  %v51 = vlaneseq
  %v52 = vshrl.u32 %v51, 7
  %v53 = vsub.s32 1, %v52
  %v54 = vrot.slane %v45, %v53
  %v55 = vlaneseq
  %v56 = vshrl.u32 %v55, 7
  %v57 = vsub.s32 2, %v56
  %v58 = vrot.slane %v45, %v57
  %v59 = vlaneseq
  %v60 = vshrl.u32 %v59, 7
  %v61 = vsub.s32 3, %v60
  %v62 = vrot.slane %v45, %v61
  %vm67 = vcmask 130048
  %v69 = vsel %vm67, %v29, 0
  %v72 = vsel %vm67, %v30, 0
  %v75 = vsel %vm67, %v31, 0
  %v78 = vsel %vm67, %v32, 0
  %v81 = vsel %vm67, %v33, 0
  %v84 = vsel %vm67, %v34, 0
  %v87 = vsel %vm67, %v35, 0
  %v90 = vsel %vm67, %v36, 0
  %92 = vmatprep.subr.mxu0 %v38
  %93 = vmatpush1.msra.mxu0 %v37
  %94 = vmatprep.subr.mxu0 %v42
  %95 = vmatpush1.msra.mxu0 %v41
  %96 = vmatprep.subr.mxu0 0.0
  %97 = vmatpush1.msra.mxu0 0.0
  %98 = vmatprep.subr.mxu0 0.0
  %99 = vmatpush1.msra.mxu0 0.0
  %100 = vmatprep.subr.mxu0 0.0
  %101 = vmatpush1.msra.mxu0 0.0
  %102 = vmatprep.subr.mxu0 0.0
  %103 = vmatpush1.msra.mxu0 0.0
  %104 = vmatprep.subr.mxu0 0.0
  %105 = vmatpush1.msra.mxu0 0.0
  %106 = vmatprep.subr.mxu0 0.0
  %107 = vmatpush1.msra.mxu0 0.0
  %108 = vmatprep.subr.mxu0 0.0
  %109 = vmatpush1.msra.mxu0 0.0
  %110 = vmatprep.subr.mxu0 0.0
  %111 = vmatpush1.msra.mxu0 0.0
  %112 = vmatprep.subr.mxu0 0.0
  %113 = vmatpush1.msra.mxu0 0.0
  %114 = vmatprep.subr.mxu0 0.0
  %115 = vmatpush1.msra.mxu0 0.0
  %116 = vmatprep.subr.mxu0 0.0
  %117 = vmatpush1.msra.mxu0 0.0
  %118 = vmatprep.subr.mxu0 0.0
  %119 = vmatpush1.msra.mxu0 0.0
  %120 = vmatprep.subr.mxu0 0.0
  %121 = vmatpush1.msra.mxu0 0.0
  %122 = vmatprep.subr.mxu0 0.0
  %123 = vmatpush1.msra.mxu0 0.0
  %124 = vmatprep.subr.mxu0 0.0
  %125 = vmatpush1.msra.mxu0 0.0
  %126 = vmatprep.subr.mxu0 0.0
  %127 = vmatpush1.msra.mxu0 0.0
  %128 = vmatprep.subr.mxu0 0.0
  %129 = vmatpush1.msra.mxu0 0.0
  %130 = vmatprep.subr.mxu0 0.0
  %131 = vmatpush1.msra.mxu0 0.0
  %132 = vmatprep.subr.mxu0 0.0
  %133 = vmatpush1.msra.mxu0 0.0
  %134 = vmatprep.subr.mxu0 0.0
  %135 = vmatpush1.msra.mxu0 0.0
  %136 = vmatprep.subr.mxu0 0.0
  %137 = vmatpush1.msra.mxu0 0.0
  %138 = vmatprep.subr.mxu0 0.0
  %139 = vmatpush1.msra.mxu0 0.0
  %140 = vmatprep.subr.mxu0 0.0
  %141 = vmatpush1.msra.mxu0 0.0
  %142 = vmatprep.subr.mxu0 0.0
  %143 = vmatpush1.msra.mxu0 0.0
  %144 = vmatprep.subr.mxu0 0.0
  %145 = vmatpush1.msra.mxu0 0.0
  %146 = vmatprep.subr.mxu0 0.0
  %147 = vmatpush1.msra.mxu0 0.0
  %148 = vmatprep.subr.mxu0 0.0
  %149 = vmatpush1.msra.mxu0 0.0
  %150 = vmatprep.subr.mxu0 0.0
  %151 = vmatpush1.msra.mxu0 0.0
  %152 = vmatprep.subr.mxu0 0.0
  %153 = vmatpush1.msra.mxu0 0.0
  %154 = vmatprep.subr.mxu0 0.0
  %155 = vmatpush1.msra.mxu0 0.0
  %156 = vmatprep.mubr.f32.mxu0 0.0
  %157 = vmatmul.mubr.f32.gmra.mrb[0].mxu0 %v69
  %v158 = vpop.f32.mrb[0].mxu0
  %v159 = vadd.f32 %v50, %v158
  %v160 = vpop.f32.mrb[0].mxu0
  %v161 = vadd.f32 %v54, %v160
  %162 = vmatprep.mubr.f32.mxu0 0.0
  %163 = vmatmul.mubr.f32.gmra.mrb[0].mxu0 %v72
  %v164 = vpop.f32.mrb[0].mxu0
  %v165 = vadd.f32 %v50, %v164
  %v166 = vpop.f32.mrb[0].mxu0
  %v167 = vadd.f32 %v54, %v166
  %168 = vmatprep.mubr.f32.mxu0 0.0
  %169 = vmatmul.mubr.f32.gmra.mrb[0].mxu0 %v75
  %v170 = vpop.f32.mrb[0].mxu0
  %v171 = vadd.f32 %v50, %v170
  %v172 = vpop.f32.mrb[0].mxu0
  %v173 = vadd.f32 %v54, %v172
  %174 = vmatprep.mubr.f32.mxu0 0.0
  %175 = vmatmul.mubr.f32.gmra.mrb[0].mxu0 %v78
  %v176 = vpop.f32.mrb[0].mxu0
  %v177 = vadd.f32 %v50, %v176
  %v178 = vpop.f32.mrb[0].mxu0
  %v179 = vadd.f32 %v54, %v178
  %180 = vmatprep.mubr.f32.mxu0 0.0
  %181 = vmatmul.mubr.f32.gmra.mrb[0].mxu0 %v81
  %v182 = vpop.f32.mrb[0].mxu0
  %v183 = vadd.f32 %v50, %v182
  %v184 = vpop.f32.mrb[0].mxu0
  %v185 = vadd.f32 %v54, %v184
  %186 = vmatprep.mubr.f32.mxu0 0.0
  %187 = vmatmul.mubr.f32.gmra.mrb[0].mxu0 %v84
  %v188 = vpop.f32.mrb[0].mxu0
  %v189 = vadd.f32 %v50, %v188
  %v190 = vpop.f32.mrb[0].mxu0
  %v191 = vadd.f32 %v54, %v190
  %192 = vmatprep.mubr.f32.mxu0 0.0
  %193 = vmatmul.mubr.f32.gmra.mrb[0].mxu0 %v87
  %v194 = vpop.f32.mrb[0].mxu0
  %v195 = vadd.f32 %v50, %v194
  %v196 = vpop.f32.mrb[0].mxu0
  %v197 = vadd.f32 %v54, %v196
  %198 = vmatprep.mubr.f32.mxu0 0.0
  %199 = vmatmul.mubr.f32.gmra.mrb[0].mxu0 %v90
  %v200 = vpop.f32.mrb[0].mxu0
  %v201 = vadd.f32 %v50, %v200
  %v202 = vpop.f32.mrb[0].mxu0
  %v203 = vadd.f32 %v54, %v202
  %204 = vdwg.mxu0
  %205 = vmatprep.subr.mxu0 %v40
  %206 = vmatpush1.msra.mxu0 %v39
  %207 = vmatprep.subr.mxu0 %v44
  %208 = vmatpush1.msra.mxu0 %v43
  %209 = vmatprep.subr.mxu0 0.0
  %210 = vmatpush1.msra.mxu0 0.0
  %211 = vmatprep.subr.mxu0 0.0
  %212 = vmatpush1.msra.mxu0 0.0
  %213 = vmatprep.subr.mxu0 0.0
  %214 = vmatpush1.msra.mxu0 0.0
  %215 = vmatprep.subr.mxu0 0.0
  %216 = vmatpush1.msra.mxu0 0.0
  %217 = vmatprep.subr.mxu0 0.0
  %218 = vmatpush1.msra.mxu0 0.0
  %219 = vmatprep.subr.mxu0 0.0
  %220 = vmatpush1.msra.mxu0 0.0
  %221 = vmatprep.subr.mxu0 0.0
  %222 = vmatpush1.msra.mxu0 0.0
  %223 = vmatprep.subr.mxu0 0.0
  %224 = vmatpush1.msra.mxu0 0.0
  %225 = vmatprep.subr.mxu0 0.0
  %226 = vmatpush1.msra.mxu0 0.0
  %227 = vmatprep.subr.mxu0 0.0
  %228 = vmatpush1.msra.mxu0 0.0
  %229 = vmatprep.subr.mxu0 0.0
  %230 = vmatpush1.msra.mxu0 0.0
  %231 = vmatprep.subr.mxu0 0.0
  %232 = vmatpush1.msra.mxu0 0.0
  %233 = vmatprep.subr.mxu0 0.0
  %234 = vmatpush1.msra.mxu0 0.0
  %235 = vmatprep.subr.mxu0 0.0
  %236 = vmatpush1.msra.mxu0 0.0
  %237 = vmatprep.subr.mxu0 0.0
  %238 = vmatpush1.msra.mxu0 0.0
  %239 = vmatprep.subr.mxu0 0.0
  %240 = vmatpush1.msra.mxu0 0.0
  %241 = vmatprep.subr.mxu0 0.0
  %242 = vmatpush1.msra.mxu0 0.0
  %243 = vmatprep.subr.mxu0 0.0
  %244 = vmatpush1.msra.mxu0 0.0
  %245 = vmatprep.subr.mxu0 0.0
  %246 = vmatpush1.msra.mxu0 0.0
  %247 = vmatprep.subr.mxu0 0.0
  %248 = vmatpush1.msra.mxu0 0.0
  %249 = vmatprep.subr.mxu0 0.0
  %250 = vmatpush1.msra.mxu0 0.0
  %251 = vmatprep.subr.mxu0 0.0
  %252 = vmatpush1.msra.mxu0 0.0
  %253 = vmatprep.subr.mxu0 0.0
  %254 = vmatpush1.msra.mxu0 0.0
  %255 = vmatprep.subr.mxu0 0.0
  %256 = vmatpush1.msra.mxu0 0.0
  %257 = vmatprep.subr.mxu0 0.0
  %258 = vmatpush1.msra.mxu0 0.0
  %259 = vmatprep.subr.mxu0 0.0
  %260 = vmatpush1.msra.mxu0 0.0
  %261 = vmatprep.subr.mxu0 0.0
  %262 = vmatpush1.msra.mxu0 0.0
  %263 = vmatprep.subr.mxu0 0.0
  %264 = vmatpush1.msra.mxu0 0.0
  %265 = vmatprep.subr.mxu0 0.0
  %266 = vmatpush1.msra.mxu0 0.0
  %267 = vmatprep.subr.mxu0 0.0
  %268 = vmatpush1.msra.mxu0 0.0
  %269 = vmatprep.mubr.f32.mxu0 0.0
  %270 = vmatmul.mubr.f32.gmra.mrb[0].mxu0 %v69
  %v271 = vpop.f32.mrb[0].mxu0
  %v272 = vadd.f32 %v58, %v271
  %v273 = vpop.f32.mrb[0].mxu0
  %v274 = vadd.f32 %v62, %v273
  %275 = vmatprep.mubr.f32.mxu0 0.0
  %276 = vmatmul.mubr.f32.gmra.mrb[0].mxu0 %v72
  %v277 = vpop.f32.mrb[0].mxu0
  %v278 = vadd.f32 %v58, %v277
  %v279 = vpop.f32.mrb[0].mxu0
  %v280 = vadd.f32 %v62, %v279
  %281 = vmatprep.mubr.f32.mxu0 0.0
  %282 = vmatmul.mubr.f32.gmra.mrb[0].mxu0 %v75
  %v283 = vpop.f32.mrb[0].mxu0
  %v284 = vadd.f32 %v58, %v283
  %v285 = vpop.f32.mrb[0].mxu0
  %v286 = vadd.f32 %v62, %v285
  %287 = vmatprep.mubr.f32.mxu0 0.0
  %288 = vmatmul.mubr.f32.gmra.mrb[0].mxu0 %v78
  %v289 = vpop.f32.mrb[0].mxu0
  %v290 = vadd.f32 %v58, %v289
  %v291 = vpop.f32.mrb[0].mxu0
  %v292 = vadd.f32 %v62, %v291
  %293 = vmatprep.mubr.f32.mxu0 0.0
  %294 = vmatmul.mubr.f32.gmra.mrb[0].mxu0 %v81
  %v295 = vpop.f32.mrb[0].mxu0
  %v296 = vadd.f32 %v58, %v295
  %v297 = vpop.f32.mrb[0].mxu0
  %v298 = vadd.f32 %v62, %v297
  %299 = vmatprep.mubr.f32.mxu0 0.0
  %300 = vmatmul.mubr.f32.gmra.mrb[0].mxu0 %v84
  %v301 = vpop.f32.mrb[0].mxu0
  %v302 = vadd.f32 %v58, %v301
  %v303 = vpop.f32.mrb[0].mxu0
  %v304 = vadd.f32 %v62, %v303
  %305 = vmatprep.mubr.f32.mxu0 0.0
  %306 = vmatmul.mubr.f32.gmra.mrb[0].mxu0 %v87
  %v307 = vpop.f32.mrb[0].mxu0
  %v308 = vadd.f32 %v58, %v307
  %v309 = vpop.f32.mrb[0].mxu0
  %v310 = vadd.f32 %v62, %v309
  %311 = vmatprep.mubr.f32.mxu0 0.0
  %312 = vmatmul.mubr.f32.gmra.mrb[0].mxu0 %v90
  %v313 = vpop.f32.mrb[0].mxu0
  %v314 = vadd.f32 %v58, %v313
  %v315 = vpop.f32.mrb[0].mxu0
  %v316 = vadd.f32 %v62, %v315
  %317 = vdwg.mxu0
  %318 = vst [vmem:[#allocation2] sm:$0xff] %v159
  %319 = vst [vmem:[#allocation2 + $0x8] sm:$0xff] %v161
  %320 = vst [vmem:[#allocation2 + $0x10] sm:$0xff] %v272
  %321 = vst [vmem:[#allocation2 + $0x18] sm:$0xff] %v274
  %322 = vst [vmem:[#allocation2 + $0x20] sm:$0xff] %v165
  %323 = vst [vmem:[#allocation2 + $0x28] sm:$0xff] %v167
  %324 = vst [vmem:[#allocation2 + $0x30] sm:$0xff] %v278
  %325 = vst [vmem:[#allocation2 + $0x38] sm:$0xff] %v280
  %326 = vst [vmem:[#allocation2 + $0x40] sm:$0xff] %v171
  %327 = vst [vmem:[#allocation2 + $0x48] sm:$0xff] %v173
  %328 = vst [vmem:[#allocation2 + $0x50] sm:$0xff] %v284
  %329 = vst [vmem:[#allocation2 + $0x58] sm:$0xff] %v286
  %330 = vst [vmem:[#allocation2 + $0x60] sm:$0xff] %v177
  %331 = vst [vmem:[#allocation2 + $0x68] sm:$0xff] %v179
  %332 = vst [vmem:[#allocation2 + $0x70] sm:$0xff] %v290
  %333 = vst [vmem:[#allocation2 + $0x78] sm:$0xff] %v292
  %334 = vst [vmem:[#allocation2 + $0x80] sm:$0xff] %v183
  %335 = vst [vmem:[#allocation2 + $0x88] sm:$0xff] %v185
  %336 = vst [vmem:[#allocation2 + $0x90] sm:$0xff] %v296
  %337 = vst [vmem:[#allocation2 + $0x98] sm:$0xff] %v298
  %338 = vst [vmem:[#allocation2 + $0xa0] sm:$0xff] %v189
  %339 = vst [vmem:[#allocation2 + $0xa8] sm:$0xff] %v191
  %340 = vst [vmem:[#allocation2 + $0xb0] sm:$0xff] %v302
  %341 = vst [vmem:[#allocation2 + $0xb8] sm:$0xff] %v304
  %342 = vst [vmem:[#allocation2 + $0xc0] sm:$0xff] %v195
  %343 = vst [vmem:[#allocation2 + $0xc8] sm:$0xff] %v197
  %344 = vst [vmem:[#allocation2 + $0xd0] sm:$0xff] %v308
  %345 = vst [vmem:[#allocation2 + $0xd8] sm:$0xff] %v310
  %346 = vst [vmem:[#allocation2 + $0xe0] sm:$0xff] %v201
  %347 = vst [vmem:[#allocation2 + $0xe8] sm:$0xff] %v203
  %348 = vst [vmem:[#allocation2 + $0xf0] sm:$0xff] %v314
  %349 = vst [vmem:[#allocation2 + $0xf8] sm:$0xff] %v316
  %v350 = vld [vmem:[%s5] sm:$0xf]
  %v352 = vlaneseq
  %v353 = vshrl.u32 %v352, 7
  %v354 = vsub.s32 0, %v353
  %v355 = vrot.slane %v350, %v354
  %v356 = vlaneseq
  %v357 = vshrl.u32 %v356, 7
  %v358 = vsub.s32 1, %v357
  %v359 = vrot.slane %v350, %v358
  %v360 = vlaneseq
  %v361 = vshrl.u32 %v360, 7
  %v362 = vsub.s32 2, %v361
  %v363 = vrot.slane %v350, %v362
  %v364 = vlaneseq
  %v365 = vshrl.u32 %v364, 7
  %v366 = vsub.s32 3, %v365
  %v367 = vrot.slane %v350, %v366
  %v372 = vld [vmem:[#allocation2] sm:$0xff]
  %v373 = vld [vmem:[#allocation2 + $0x8] sm:$0xff]
  %v374 = vld [vmem:[#allocation2 + $0x10] sm:$0xff]
  %v375 = vld [vmem:[#allocation2 + $0x18] sm:$0xff]
  %v376 = vld [vmem:[%s2] sm:$0xff]
  %v377 = vld [vmem:[%s2 + $0x8] sm:$0xff]
  %v378 = vld [vmem:[%s2 + $0x10] sm:$0xff]
  %v379 = vld [vmem:[%s2 + $0x18] sm:$0xff]
  %v380 = vld [vmem:[%s2 + $0x20] sm:$0xff]
  %v381 = vld [vmem:[%s2 + $0x28] sm:$0xff]
  %v382 = vld [vmem:[%s2 + $0x30] sm:$0xff]
  %v383 = vld [vmem:[%s2 + $0x38] sm:$0xff]
  %v384 = vld [vmem:[%s2 + $0x40] sm:$0xff]
  %v385 = vld [vmem:[%s2 + $0x48] sm:$0xff]
  %v386 = vld [vmem:[%s2 + $0x50] sm:$0xff]
  %v387 = vld [vmem:[%s2 + $0x58] sm:$0xff]
  %v388 = vld [vmem:[%s2 + $0x60] sm:$0xff]
  %v389 = vld [vmem:[%s2 + $0x68] sm:$0xff]
  %v390 = vld [vmem:[%s2 + $0x70] sm:$0xff]
  %v391 = vld [vmem:[%s2 + $0x78] sm:$0xff]
  %v392 = vld [vmem:[%s2 + $0x80] sm:$0xff]
  %v393 = vld [vmem:[%s2 + $0x88] sm:$0xff]
  %v394 = vld [vmem:[%s2 + $0x90] sm:$0xff]
  %v395 = vld [vmem:[%s2 + $0x98] sm:$0xff]
  %v396 = vld [vmem:[%s2 + $0xa0] sm:$0xff]
  %v397 = vld [vmem:[%s2 + $0xa8] sm:$0xff]
  %v398 = vld [vmem:[%s2 + $0xb0] sm:$0xff]
  %v399 = vld [vmem:[%s2 + $0xb8] sm:$0xff]
  %v400 = vld [vmem:[%s2 + $0xc0] sm:$0xff]
  %v401 = vld [vmem:[%s2 + $0xc8] sm:$0xff]
  %v402 = vld [vmem:[%s2 + $0xd0] sm:$0xff]
  %v403 = vld [vmem:[%s2 + $0xd8] sm:$0xff]
  %v404 = vld [vmem:[%s2 + $0xe0] sm:$0xff]
  %v405 = vld [vmem:[%s2 + $0xe8] sm:$0xff]
  %v406 = vld [vmem:[%s2 + $0xf0] sm:$0xff]
  %v407 = vld [vmem:[%s2 + $0xf8] sm:$0xff]
  %v408 = vld [vmem:[%s2 + $0x100] sm:$0xff]
  %v409 = vld [vmem:[%s2 + $0x108] sm:$0xff]
  %v410 = vld [vmem:[%s2 + $0x110] sm:$0xff]
  %v411 = vld [vmem:[%s2 + $0x118] sm:$0xff]
  %v412 = vld [vmem:[%s2 + $0x120] sm:$0xff]
  %v413 = vld [vmem:[%s2 + $0x128] sm:$0xff]
  %v414 = vld [vmem:[%s2 + $0x130] sm:$0xff]
  %v415 = vld [vmem:[%s2 + $0x138] sm:$0xff]
  %v416 = vld [vmem:[%s2 + $0x140] sm:$0xff]
  %v417 = vld [vmem:[%s2 + $0x148] sm:$0xff]
  %v418 = vld [vmem:[%s2 + $0x150] sm:$0xff]
  %v419 = vld [vmem:[%s2 + $0x158] sm:$0xff]
  %v420 = vld [vmem:[%s2 + $0x160] sm:$0xff]
  %v421 = vld [vmem:[%s2 + $0x168] sm:$0xff]
  %v422 = vld [vmem:[%s2 + $0x170] sm:$0xff]
  %v423 = vld [vmem:[%s2 + $0x178] sm:$0xff]
  %v424 = vld [vmem:[%s2 + $0x180] sm:$0xff]
  %v425 = vld [vmem:[%s2 + $0x188] sm:$0xff]
  %v426 = vld [vmem:[%s2 + $0x190] sm:$0xff]
  %v427 = vld [vmem:[%s2 + $0x198] sm:$0xff]
  %v428 = vld [vmem:[%s2 + $0x1a0] sm:$0xff]
  %v429 = vld [vmem:[%s2 + $0x1a8] sm:$0xff]
  %v430 = vld [vmem:[%s2 + $0x1b0] sm:$0xff]
  %v431 = vld [vmem:[%s2 + $0x1b8] sm:$0xff]
  %v432 = vld [vmem:[%s2 + $0x1c0] sm:$0xff]
  %v433 = vld [vmem:[%s2 + $0x1c8] sm:$0xff]
  %v434 = vld [vmem:[%s2 + $0x1d0] sm:$0xff]
  %v435 = vld [vmem:[%s2 + $0x1d8] sm:$0xff]
  %v436 = vld [vmem:[%s2 + $0x1e0] sm:$0xff]
  %v437 = vld [vmem:[%s2 + $0x1e8] sm:$0xff]
  %v438 = vld [vmem:[%s2 + $0x1f0] sm:$0xff]
  %v439 = vld [vmem:[%s2 + $0x1f8] sm:$0xff]
  %440 = vmatprep.subr.mxu0 %v377
  %441 = vmatpush1.msra.mxu0 %v376
  %442 = vmatprep.subr.mxu0 %v381
  %443 = vmatpush1.msra.mxu0 %v380
  %444 = vmatprep.subr.mxu0 %v385
  %445 = vmatpush1.msra.mxu0 %v384
  %446 = vmatprep.subr.mxu0 %v389
  %447 = vmatpush1.msra.mxu0 %v388
  %448 = vmatprep.subr.mxu0 %v393
  %449 = vmatpush1.msra.mxu0 %v392
  %450 = vmatprep.subr.mxu0 %v397
  %451 = vmatpush1.msra.mxu0 %v396
  %452 = vmatprep.subr.mxu0 %v401
  %453 = vmatpush1.msra.mxu0 %v400
  %454 = vmatprep.subr.mxu0 %v405
  %455 = vmatpush1.msra.mxu0 %v404
  %456 = vmatprep.subr.mxu0 %v409
  %457 = vmatpush1.msra.mxu0 %v408
  %458 = vmatprep.subr.mxu0 %v413
  %459 = vmatpush1.msra.mxu0 %v412
  %460 = vmatprep.subr.mxu0 %v417
  %461 = vmatpush1.msra.mxu0 %v416
  %462 = vmatprep.subr.mxu0 %v421
  %463 = vmatpush1.msra.mxu0 %v420
  %464 = vmatprep.subr.mxu0 %v425
  %465 = vmatpush1.msra.mxu0 %v424
  %466 = vmatprep.subr.mxu0 %v429
  %467 = vmatpush1.msra.mxu0 %v428
  %468 = vmatprep.subr.mxu0 %v433
  %469 = vmatpush1.msra.mxu0 %v432
  %470 = vmatprep.subr.mxu0 %v437
  %471 = vmatpush1.msra.mxu0 %v436
  %472 = vmatprep.subr.mxu0 0.0
  %473 = vmatpush1.msra.mxu0 0.0
  %474 = vmatprep.subr.mxu0 0.0
  %475 = vmatpush1.msra.mxu0 0.0
  %476 = vmatprep.subr.mxu0 0.0
  %477 = vmatpush1.msra.mxu0 0.0
  %478 = vmatprep.subr.mxu0 0.0
  %479 = vmatpush1.msra.mxu0 0.0
  %480 = vmatprep.subr.mxu0 0.0
  %481 = vmatpush1.msra.mxu0 0.0
  %482 = vmatprep.subr.mxu0 0.0
  %483 = vmatpush1.msra.mxu0 0.0
  %484 = vmatprep.subr.mxu0 0.0
  %485 = vmatpush1.msra.mxu0 0.0
  %486 = vmatprep.subr.mxu0 0.0
  %487 = vmatpush1.msra.mxu0 0.0
  %488 = vmatprep.subr.mxu0 0.0
  %489 = vmatpush1.msra.mxu0 0.0
  %490 = vmatprep.subr.mxu0 0.0
  %491 = vmatpush1.msra.mxu0 0.0
  %492 = vmatprep.subr.mxu0 0.0
  %493 = vmatpush1.msra.mxu0 0.0
  %494 = vmatprep.subr.mxu0 0.0
  %495 = vmatpush1.msra.mxu0 0.0
  %496 = vmatprep.subr.mxu0 0.0
  %497 = vmatpush1.msra.mxu0 0.0
  %498 = vmatprep.subr.mxu0 0.0
  %499 = vmatpush1.msra.mxu0 0.0
  %500 = vmatprep.subr.mxu0 0.0
  %501 = vmatpush1.msra.mxu0 0.0
  %502 = vmatprep.subr.mxu0 0.0
  %503 = vmatpush1.msra.mxu0 0.0
  %504 = vmatprep.mubr.f32.mxu0 0.0
  %505 = vmatmul.mubr.f32.gmra.mrb[0].mxu0 0.0
  %v506 = vpop.f32.mrb[0].mxu0
  %v507 = vadd.f32 0.0, %v506
  %v508 = vpop.f32.mrb[0].mxu0
  %v509 = vadd.f32 0.0, %v508
  %510 = vdwg.mxu0
  %511 = vmatprep.subr.mxu0 %v379
  %512 = vmatpush1.msra.mxu0 %v378
  %513 = vmatprep.subr.mxu0 %v383
  %514 = vmatpush1.msra.mxu0 %v382
  %515 = vmatprep.subr.mxu0 %v387
  %516 = vmatpush1.msra.mxu0 %v386
  %517 = vmatprep.subr.mxu0 %v391
  %518 = vmatpush1.msra.mxu0 %v390
  %519 = vmatprep.subr.mxu0 %v395
  %520 = vmatpush1.msra.mxu0 %v394
  %521 = vmatprep.subr.mxu0 %v399
  %522 = vmatpush1.msra.mxu0 %v398
  %523 = vmatprep.subr.mxu0 %v403
  %524 = vmatpush1.msra.mxu0 %v402
  %525 = vmatprep.subr.mxu0 %v407
  %526 = vmatpush1.msra.mxu0 %v406
  %527 = vmatprep.subr.mxu0 %v411
  %528 = vmatpush1.msra.mxu0 %v410
  %529 = vmatprep.subr.mxu0 %v415
  %530 = vmatpush1.msra.mxu0 %v414
  %531 = vmatprep.subr.mxu0 %v419
  %532 = vmatpush1.msra.mxu0 %v418
  %533 = vmatprep.subr.mxu0 %v423
  %534 = vmatpush1.msra.mxu0 %v422
  %535 = vmatprep.subr.mxu0 %v427
  %536 = vmatpush1.msra.mxu0 %v426
  %537 = vmatprep.subr.mxu0 %v431
  %538 = vmatpush1.msra.mxu0 %v430
  %539 = vmatprep.subr.mxu0 %v435
  %540 = vmatpush1.msra.mxu0 %v434
  %541 = vmatprep.subr.mxu0 %v439
  %542 = vmatpush1.msra.mxu0 %v438
  %543 = vmatprep.subr.mxu0 0.0
  %544 = vmatpush1.msra.mxu0 0.0
  %545 = vmatprep.subr.mxu0 0.0
  %546 = vmatpush1.msra.mxu0 0.0
  %547 = vmatprep.subr.mxu0 0.0
  %548 = vmatpush1.msra.mxu0 0.0
  %549 = vmatprep.subr.mxu0 0.0
  %550 = vmatpush1.msra.mxu0 0.0
  %551 = vmatprep.subr.mxu0 0.0
  %552 = vmatpush1.msra.mxu0 0.0
  %553 = vmatprep.subr.mxu0 0.0
  %554 = vmatpush1.msra.mxu0 0.0
  %555 = vmatprep.subr.mxu0 0.0
  %556 = vmatpush1.msra.mxu0 0.0
  %557 = vmatprep.subr.mxu0 0.0
  %558 = vmatpush1.msra.mxu0 0.0
  %559 = vmatprep.subr.mxu0 0.0
  %560 = vmatpush1.msra.mxu0 0.0
  %561 = vmatprep.subr.mxu0 0.0
  %562 = vmatpush1.msra.mxu0 0.0
  %563 = vmatprep.subr.mxu0 0.0
  %564 = vmatpush1.msra.mxu0 0.0
  %565 = vmatprep.subr.mxu0 0.0
  %566 = vmatpush1.msra.mxu0 0.0
  %567 = vmatprep.subr.mxu0 0.0
  %568 = vmatpush1.msra.mxu0 0.0
  %569 = vmatprep.subr.mxu0 0.0
  %570 = vmatpush1.msra.mxu0 0.0
  %571 = vmatprep.subr.mxu0 0.0
  %572 = vmatpush1.msra.mxu0 0.0
  %573 = vmatprep.subr.mxu0 0.0
  %574 = vmatpush1.msra.mxu0 0.0
  %575 = vmatprep.mubr.f32.mxu0 0.0
  %576 = vmatmul.mubr.f32.gmra.mrb[0].mxu0 0.0
  %v577 = vpop.f32.mrb[0].mxu0
  %v578 = vadd.f32 0.0, %v577
  %v579 = vpop.f32.mrb[0].mxu0
  %v580 = vadd.f32 0.0, %v579
  %581 = vdwg.mxu0
  %v582 = vadd.f32 %v372, %v507
  %v583 = vadd.f32 %v373, %v509
  %v584 = vadd.f32 %v374, %v578
  %v585 = vadd.f32 %v375, %v580
  %v586 = vxor.u32 %v582, 2147483648
  %v587 = vmul.f32 %v586, 1.442695
  %v588 = vpow.pop %v587
  %v589 = vadd.f32 %v588, 1.0
  %v590 = vrcp.pop %v589
  %v591 = vmul.f32 1.0, %v590
  %v592 = vxor.u32 %v583, 2147483648
  %v593 = vmul.f32 %v592, 1.442695
  %v594 = vpow.pop %v593
  %v595 = vadd.f32 %v594, 1.0
  %v596 = vrcp.pop %v595
  %v597 = vmul.f32 1.0, %v596
  %v598 = vtanh.pop %v584
  %v599 = vxor.u32 %v585, 2147483648
  %v600 = vmul.f32 %v599, 1.442695
  %v601 = vpow.pop %v600
  %v602 = vadd.f32 %v601, 1.0
  %v603 = vrcp.pop %v602
  %v604 = vmul.f32 1.0, %v603
  %v605 = vmul.f32 %v597, 0.0
  %v606 = vmul.f32 %v591, %v598
  %v607 = vadd.f32 %v605, %v606
  %v608 = vtanh.pop %v607
  %v609 = vmul.f32 %v604, %v608
  %v610 = vld [vmem:[%s4] sm:$0xff]
  %v611 = vld [vmem:[%s4 + $0x8] sm:$0xff]
  %v612 = vld [vmem:[%s4 + $0x10] sm:$0xff]
  %v613 = vld [vmem:[%s4 + $0x18] sm:$0xff]
  %v614 = vld [vmem:[%s4 + $0x20] sm:$0xff]
  %v615 = vld [vmem:[%s4 + $0x28] sm:$0xff]
  %v616 = vld [vmem:[%s4 + $0x30] sm:$0xff]
  %v617 = vld [vmem:[%s4 + $0x38] sm:$0xff]
  %v618 = vld [vmem:[%s4 + $0x40] sm:$0xff]
  %v619 = vld [vmem:[%s4 + $0x48] sm:$0xff]
  %v620 = vld [vmem:[%s4 + $0x50] sm:$0xff]
  %v621 = vld [vmem:[%s4 + $0x58] sm:$0xff]
  %v622 = vld [vmem:[%s4 + $0x60] sm:$0xff]
  %v623 = vld [vmem:[%s4 + $0x68] sm:$0xff]
  %v624 = vld [vmem:[%s4 + $0x70] sm:$0xff]
  %v625 = vld [vmem:[%s4 + $0x78] sm:$0xff]
  %v626 = vld [vmem:[%s4 + $0x80] sm:$0xff]
  %v627 = vld [vmem:[%s4 + $0x88] sm:$0xff]
  %v628 = vld [vmem:[%s4 + $0x90] sm:$0xff]
  %v629 = vld [vmem:[%s4 + $0x98] sm:$0xff]
  %v630 = vld [vmem:[%s4 + $0xa0] sm:$0xff]
  %v631 = vld [vmem:[%s4 + $0xa8] sm:$0xff]
  %v632 = vld [vmem:[%s4 + $0xb0] sm:$0xff]
  %v633 = vld [vmem:[%s4 + $0xb8] sm:$0xff]
  %v634 = vld [vmem:[%s4 + $0xc0] sm:$0xff]
  %v635 = vld [vmem:[%s4 + $0xc8] sm:$0xff]
  %v636 = vld [vmem:[%s4 + $0xd0] sm:$0xff]
  %v637 = vld [vmem:[%s4 + $0xd8] sm:$0xff]
  %v638 = vld [vmem:[%s4 + $0xe0] sm:$0xff]
  %v639 = vld [vmem:[%s4 + $0xe8] sm:$0xff]
  %v640 = vld [vmem:[%s4 + $0xf0] sm:$0xff]
  %v641 = vld [vmem:[%s4 + $0xf8] sm:$0xff]
  %v642 = vld [vmem:[%s4 + $0x100] sm:$0xff]
  %v643 = vld [vmem:[%s4 + $0x108] sm:$0xff]
  %v644 = vld [vmem:[%s4 + $0x110] sm:$0xff]
  %v645 = vld [vmem:[%s4 + $0x118] sm:$0xff]
  %v646 = vld [vmem:[%s4 + $0x120] sm:$0xff]
  %v647 = vld [vmem:[%s4 + $0x128] sm:$0xff]
  %v648 = vld [vmem:[%s4 + $0x130] sm:$0xff]
  %v649 = vld [vmem:[%s4 + $0x138] sm:$0xff]
  %v650 = vld [vmem:[%s4 + $0x140] sm:$0xff]
  %v651 = vld [vmem:[%s4 + $0x148] sm:$0xff]
  %v652 = vld [vmem:[%s4 + $0x150] sm:$0xff]
  %v653 = vld [vmem:[%s4 + $0x158] sm:$0xff]
  %v654 = vld [vmem:[%s4 + $0x160] sm:$0xff]
  %v655 = vld [vmem:[%s4 + $0x168] sm:$0xff]
  %v656 = vld [vmem:[%s4 + $0x170] sm:$0xff]
  %v657 = vld [vmem:[%s4 + $0x178] sm:$0xff]
  %v658 = vld [vmem:[%s4 + $0x180] sm:$0xff]
  %v659 = vld [vmem:[%s4 + $0x188] sm:$0xff]
  %v660 = vld [vmem:[%s4 + $0x190] sm:$0xff]
  %v661 = vld [vmem:[%s4 + $0x198] sm:$0xff]
  %v662 = vld [vmem:[%s4 + $0x1a0] sm:$0xff]
  %v663 = vld [vmem:[%s4 + $0x1a8] sm:$0xff]
  %v664 = vld [vmem:[%s4 + $0x1b0] sm:$0xff]
  %v665 = vld [vmem:[%s4 + $0x1b8] sm:$0xff]
  %v666 = vld [vmem:[%s4 + $0x1c0] sm:$0xff]
  %v667 = vld [vmem:[%s4 + $0x1c8] sm:$0xff]
  %v668 = vld [vmem:[%s4 + $0x1d0] sm:$0xff]
  %v669 = vld [vmem:[%s4 + $0x1d8] sm:$0xff]
  %v670 = vld [vmem:[%s4 + $0x1e0] sm:$0xff]
  %v671 = vld [vmem:[%s4 + $0x1e8] sm:$0xff]
  %v672 = vld [vmem:[%s4 + $0x1f0] sm:$0xff]
  %v673 = vld [vmem:[%s4 + $0x1f8] sm:$0xff]
  %v674 = vld [vmem:[%s4 + $0x200] sm:$0xff]
  %v675 = vld [vmem:[%s4 + $0x208] sm:$0xff]
  %v676 = vld [vmem:[%s4 + $0x210] sm:$0xff]
  %v677 = vld [vmem:[%s4 + $0x218] sm:$0xff]
  %v678 = vld [vmem:[%s4 + $0x220] sm:$0xff]
  %v679 = vld [vmem:[%s4 + $0x228] sm:$0xff]
  %v680 = vld [vmem:[%s4 + $0x230] sm:$0xff]
  %v681 = vld [vmem:[%s4 + $0x238] sm:$0xff]
  %v682 = vld [vmem:[%s4 + $0x240] sm:$0xff]
  %v683 = vld [vmem:[%s4 + $0x248] sm:$0xff]
  %v684 = vld [vmem:[%s4 + $0x250] sm:$0xff]
  %v685 = vld [vmem:[%s4 + $0x258] sm:$0xff]
  %v686 = vld [vmem:[%s4 + $0x260] sm:$0xff]
  %v687 = vld [vmem:[%s4 + $0x268] sm:$0xff]
  %v688 = vld [vmem:[%s4 + $0x270] sm:$0xff]
  %v689 = vld [vmem:[%s4 + $0x278] sm:$0xff]
  %v690 = vld [vmem:[%s4 + $0x280] sm:$0xff]
  %v691 = vld [vmem:[%s4 + $0x288] sm:$0xff]
  %v692 = vld [vmem:[%s4 + $0x290] sm:$0xff]
  %v693 = vld [vmem:[%s4 + $0x298] sm:$0xff]
  %v694 = vld [vmem:[%s4 + $0x2a0] sm:$0xff]
  %v695 = vld [vmem:[%s4 + $0x2a8] sm:$0xff]
  %v696 = vld [vmem:[%s4 + $0x2b0] sm:$0xff]
  %v697 = vld [vmem:[%s4 + $0x2b8] sm:$0xff]
  %v698 = vld [vmem:[%s4 + $0x2c0] sm:$0xff]
  %v699 = vld [vmem:[%s4 + $0x2c8] sm:$0xff]
  %v700 = vld [vmem:[%s4 + $0x2d0] sm:$0xff]
  %v701 = vld [vmem:[%s4 + $0x2d8] sm:$0xff]
  %v702 = vld [vmem:[%s4 + $0x2e0] sm:$0xff]
  %v703 = vld [vmem:[%s4 + $0x2e8] sm:$0xff]
  %v704 = vld [vmem:[%s4 + $0x2f0] sm:$0xff]
  %v705 = vld [vmem:[%s4 + $0x2f8] sm:$0xff]
  %v706 = vld [vmem:[%s4 + $0x300] sm:$0xff]
  %v707 = vld [vmem:[%s4 + $0x308] sm:$0xff]
  %v708 = vld [vmem:[%s4 + $0x310] sm:$0xff]
  %v709 = vld [vmem:[%s4 + $0x318] sm:$0xff]
  %v710 = vld [vmem:[%s4 + $0x320] sm:$0xff]
  %v711 = vld [vmem:[%s4 + $0x328] sm:$0xff]
  %v712 = vld [vmem:[%s4 + $0x330] sm:$0xff]
  %v713 = vld [vmem:[%s4 + $0x338] sm:$0xff]
  %v714 = vld [vmem:[%s4 + $0x340] sm:$0xff]
  %v715 = vld [vmem:[%s4 + $0x348] sm:$0xff]
  %v716 = vld [vmem:[%s4 + $0x350] sm:$0xff]
  %v717 = vld [vmem:[%s4 + $0x358] sm:$0xff]
  %v718 = vld [vmem:[%s4 + $0x360] sm:$0xff]
  %v719 = vld [vmem:[%s4 + $0x368] sm:$0xff]
  %v720 = vld [vmem:[%s4 + $0x370] sm:$0xff]
  %v721 = vld [vmem:[%s4 + $0x378] sm:$0xff]
  %v722 = vld [vmem:[%s4 + $0x380] sm:$0xff]
  %v723 = vld [vmem:[%s4 + $0x388] sm:$0xff]
  %v724 = vld [vmem:[%s4 + $0x390] sm:$0xff]
  %v725 = vld [vmem:[%s4 + $0x398] sm:$0xff]
  %v726 = vld [vmem:[%s4 + $0x3a0] sm:$0xff]
  %v727 = vld [vmem:[%s4 + $0x3a8] sm:$0xff]
  %v728 = vld [vmem:[%s4 + $0x3b0] sm:$0xff]
  %v729 = vld [vmem:[%s4 + $0x3b8] sm:$0xff]
  %v730 = vld [vmem:[%s4 + $0x3c0] sm:$0xff]
  %v731 = vld [vmem:[%s4 + $0x3c8] sm:$0xff]
  %v732 = vld [vmem:[%s4 + $0x3d0] sm:$0xff]
  %v733 = vld [vmem:[%s4 + $0x3d8] sm:$0xff]
  %v734 = vld [vmem:[%s4 + $0x3e0] sm:$0xff]
  %v735 = vld [vmem:[%s4 + $0x3e8] sm:$0xff]
  %v736 = vld [vmem:[%s4 + $0x3f0] sm:$0xff]
  %v737 = vld [vmem:[%s4 + $0x3f8] sm:$0xff]
  %738 = vmatprep.subr.mxu0 %v611
  %739 = vmatpush1.msra.mxu0 %v610
  %740 = vmatprep.subr.mxu0 %v615
  %741 = vmatpush1.msra.mxu0 %v614
  %742 = vmatprep.subr.mxu0 %v619
  %743 = vmatpush1.msra.mxu0 %v618
  %744 = vmatprep.subr.mxu0 %v623
  %745 = vmatpush1.msra.mxu0 %v622
  %746 = vmatprep.subr.mxu0 %v627
  %747 = vmatpush1.msra.mxu0 %v626
  %748 = vmatprep.subr.mxu0 %v631
  %749 = vmatpush1.msra.mxu0 %v630
  %750 = vmatprep.subr.mxu0 %v635
  %751 = vmatpush1.msra.mxu0 %v634
  %752 = vmatprep.subr.mxu0 %v639
  %753 = vmatpush1.msra.mxu0 %v638
  %754 = vmatprep.subr.mxu0 %v643
  %755 = vmatpush1.msra.mxu0 %v642
  %756 = vmatprep.subr.mxu0 %v647
  %757 = vmatpush1.msra.mxu0 %v646
  %758 = vmatprep.subr.mxu0 %v651
  %759 = vmatpush1.msra.mxu0 %v650
  %760 = vmatprep.subr.mxu0 %v655
  %761 = vmatpush1.msra.mxu0 %v654
  %762 = vmatprep.subr.mxu0 %v659
  %763 = vmatpush1.msra.mxu0 %v658
  %764 = vmatprep.subr.mxu0 %v663
  %765 = vmatpush1.msra.mxu0 %v662
  %766 = vmatprep.subr.mxu0 %v667
  %767 = vmatpush1.msra.mxu0 %v666
  %768 = vmatprep.subr.mxu0 %v671
  %769 = vmatpush1.msra.mxu0 %v670
  %770 = vmatprep.subr.mxu0 %v675
  %771 = vmatpush1.msra.mxu0 %v674
  %772 = vmatprep.subr.mxu0 %v679
  %773 = vmatpush1.msra.mxu0 %v678
  %774 = vmatprep.subr.mxu0 %v683
  %775 = vmatpush1.msra.mxu0 %v682
  %776 = vmatprep.subr.mxu0 %v687
  %777 = vmatpush1.msra.mxu0 %v686
  %778 = vmatprep.subr.mxu0 %v691
  %779 = vmatpush1.msra.mxu0 %v690
  %780 = vmatprep.subr.mxu0 %v695
  %781 = vmatpush1.msra.mxu0 %v694
  %782 = vmatprep.subr.mxu0 %v699
  %783 = vmatpush1.msra.mxu0 %v698
  %784 = vmatprep.subr.mxu0 %v703
  %785 = vmatpush1.msra.mxu0 %v702
  %786 = vmatprep.subr.mxu0 %v707
  %787 = vmatpush1.msra.mxu0 %v706
  %788 = vmatprep.subr.mxu0 %v711
  %789 = vmatpush1.msra.mxu0 %v710
  %790 = vmatprep.subr.mxu0 %v715
  %791 = vmatpush1.msra.mxu0 %v714
  %792 = vmatprep.subr.mxu0 %v719
  %793 = vmatpush1.msra.mxu0 %v718
  %794 = vmatprep.subr.mxu0 %v723
  %795 = vmatpush1.msra.mxu0 %v722
  %796 = vmatprep.subr.mxu0 %v727
  %797 = vmatpush1.msra.mxu0 %v726
  %798 = vmatprep.subr.mxu0 %v731
  %799 = vmatpush1.msra.mxu0 %v730
  %800 = vmatprep.subr.mxu0 %v735
  %801 = vmatpush1.msra.mxu0 %v734
  %802 = vmatprep.mubr.f32.mxu0 0.0
  %803 = vmatmul.mubr.f32.gmra.mrb[0].mxu0 %v609
  %v804 = vpop.f32.mrb[0].mxu0
  %v805 = vadd.f32 %v355, %v804
  %v806 = vpop.f32.mrb[0].mxu0
  %v807 = vadd.f32 %v359, %v806
  %808 = vdwg.mxu0
  %809 = vmatprep.subr.mxu0 %v613
  %810 = vmatpush1.msra.mxu0 %v612
  %811 = vmatprep.subr.mxu0 %v617
  %812 = vmatpush1.msra.mxu0 %v616
  %813 = vmatprep.subr.mxu0 %v621
  %814 = vmatpush1.msra.mxu0 %v620
  %815 = vmatprep.subr.mxu0 %v625
  %816 = vmatpush1.msra.mxu0 %v624
  %817 = vmatprep.subr.mxu0 %v629
  %818 = vmatpush1.msra.mxu0 %v628
  %819 = vmatprep.subr.mxu0 %v633
  %820 = vmatpush1.msra.mxu0 %v632
  %821 = vmatprep.subr.mxu0 %v637
  %822 = vmatpush1.msra.mxu0 %v636
  %823 = vmatprep.subr.mxu0 %v641
  %824 = vmatpush1.msra.mxu0 %v640
  %825 = vmatprep.subr.mxu0 %v645
  %826 = vmatpush1.msra.mxu0 %v644
  %827 = vmatprep.subr.mxu0 %v649
  %828 = vmatpush1.msra.mxu0 %v648
  %829 = vmatprep.subr.mxu0 %v653
  %830 = vmatpush1.msra.mxu0 %v652
  %831 = vmatprep.subr.mxu0 %v657
  %832 = vmatpush1.msra.mxu0 %v656
  %833 = vmatprep.subr.mxu0 %v661
  %834 = vmatpush1.msra.mxu0 %v660
  %835 = vmatprep.subr.mxu0 %v665
  %836 = vmatpush1.msra.mxu0 %v664
  %837 = vmatprep.subr.mxu0 %v669
  %838 = vmatpush1.msra.mxu0 %v668
  %839 = vmatprep.subr.mxu0 %v673
  %840 = vmatpush1.msra.mxu0 %v672
  %841 = vmatprep.subr.mxu0 %v677
  %842 = vmatpush1.msra.mxu0 %v676
  %843 = vmatprep.subr.mxu0 %v681
  %844 = vmatpush1.msra.mxu0 %v680
  %845 = vmatprep.subr.mxu0 %v685
  %846 = vmatpush1.msra.mxu0 %v684
  %847 = vmatprep.subr.mxu0 %v689
  %848 = vmatpush1.msra.mxu0 %v688
  %849 = vmatprep.subr.mxu0 %v693
  %850 = vmatpush1.msra.mxu0 %v692
  %851 = vmatprep.subr.mxu0 %v697
  %852 = vmatpush1.msra.mxu0 %v696
  %853 = vmatprep.subr.mxu0 %v701
  %854 = vmatpush1.msra.mxu0 %v700
  %855 = vmatprep.subr.mxu0 %v705
  %856 = vmatpush1.msra.mxu0 %v704
  %857 = vmatprep.subr.mxu0 %v709
  %858 = vmatpush1.msra.mxu0 %v708
  %859 = vmatprep.subr.mxu0 %v713
  %860 = vmatpush1.msra.mxu0 %v712
  %861 = vmatprep.subr.mxu0 %v717
  %862 = vmatpush1.msra.mxu0 %v716
  %863 = vmatprep.subr.mxu0 %v721
  %864 = vmatpush1.msra.mxu0 %v720
  %865 = vmatprep.subr.mxu0 %v725
  %866 = vmatpush1.msra.mxu0 %v724
  %867 = vmatprep.subr.mxu0 %v729
  %868 = vmatpush1.msra.mxu0 %v728
  %869 = vmatprep.subr.mxu0 %v733
  %870 = vmatpush1.msra.mxu0 %v732
  %871 = vmatprep.subr.mxu0 %v737
  %872 = vmatpush1.msra.mxu0 %v736
  %873 = vmatprep.mubr.f32.mxu0 0.0
  %874 = vmatmul.mubr.f32.gmra.mrb[0].mxu0 %v609
  %v875 = vpop.f32.mrb[0].mxu0
  %v876 = vadd.f32 %v363, %v875
  %v877 = vpop.f32.mrb[0].mxu0
  %v878 = vadd.f32 %v367, %v877
  %879 = vdwg.mxu0
  %v880 = vxor.u32 %v805, 2147483648
  %v881 = vmul.f32 %v880, 1.442695
  %v882 = vpow.pop %v881
  %v883 = vadd.f32 %v882, 1.0
  %v884 = vrcp.pop %v883
  %v885 = vmul.f32 1.0, %v884
  %v886 = vxor.u32 %v807, 2147483648
  %v887 = vmul.f32 %v886, 1.442695
  %v888 = vpow.pop %v887
  %v889 = vadd.f32 %v888, 1.0
  %v890 = vrcp.pop %v889
  %v891 = vmul.f32 1.0, %v890
  %v892 = vtanh.pop %v876
  %v893 = vxor.u32 %v878, 2147483648
  %v894 = vmul.f32 %v893, 1.442695
  %v895 = vpow.pop %v894
  %v896 = vadd.f32 %v895, 1.0
  %v897 = vrcp.pop %v896
  %v898 = vmul.f32 1.0, %v897
  %v899 = vmul.f32 %v891, 0.0
  %v900 = vmul.f32 %v885, %v892
  %v901 = vadd.f32 %v899, %v900
  %v902 = vtanh.pop %v901
  %v903 = vmul.f32 %v898, %v902
  %904 = vst [vmem:[#allocation3] sm:$0xff] %v903
  %v905 = vld [vmem:[#allocation2 + $0x20] sm:$0xff]
  %v906 = vld [vmem:[#allocation2 + $0x28] sm:$0xff]
  %v907 = vld [vmem:[#allocation2 + $0x30] sm:$0xff]
  %v908 = vld [vmem:[#allocation2 + $0x38] sm:$0xff]
  %v909 = vld [vmem:[%s2] sm:$0xff]
  %v910 = vld [vmem:[%s2 + $0x8] sm:$0xff]
  %v911 = vld [vmem:[%s2 + $0x10] sm:$0xff]
  %v912 = vld [vmem:[%s2 + $0x18] sm:$0xff]
  %v913 = vld [vmem:[%s2 + $0x20] sm:$0xff]
  %v914 = vld [vmem:[%s2 + $0x28] sm:$0xff]
  %v915 = vld [vmem:[%s2 + $0x30] sm:$0xff]
  %v916 = vld [vmem:[%s2 + $0x38] sm:$0xff]
  %v917 = vld [vmem:[%s2 + $0x40] sm:$0xff]
  %v918 = vld [vmem:[%s2 + $0x48] sm:$0xff]
  %v919 = vld [vmem:[%s2 + $0x50] sm:$0xff]
  %v920 = vld [vmem:[%s2 + $0x58] sm:$0xff]
  %v921 = vld [vmem:[%s2 + $0x60] sm:$0xff]
  %v922 = vld [vmem:[%s2 + $0x68] sm:$0xff]
  %v923 = vld [vmem:[%s2 + $0x70] sm:$0xff]
  %v924 = vld [vmem:[%s2 + $0x78] sm:$0xff]
  %v925 = vld [vmem:[%s2 + $0x80] sm:$0xff]
  %v926 = vld [vmem:[%s2 + $0x88] sm:$0xff]
  %v927 = vld [vmem:[%s2 + $0x90] sm:$0xff]
  %v928 = vld [vmem:[%s2 + $0x98] sm:$0xff]
  %v929 = vld [vmem:[%s2 + $0xa0] sm:$0xff]
  %v930 = vld [vmem:[%s2 + $0xa8] sm:$0xff]
  %v931 = vld [vmem:[%s2 + $0xb0] sm:$0xff]
  %v932 = vld [vmem:[%s2 + $0xb8] sm:$0xff]
  %v933 = vld [vmem:[%s2 + $0xc0] sm:$0xff]
  %v934 = vld [vmem:[%s2 + $0xc8] sm:$0xff]
  %v935 = vld [vmem:[%s2 + $0xd0] sm:$0xff]
  %v936 = vld [vmem:[%s2 + $0xd8] sm:$0xff]
  %v937 = vld [vmem:[%s2 + $0xe0] sm:$0xff]
  %v938 = vld [vmem:[%s2 + $0xe8] sm:$0xff]
  %v939 = vld [vmem:[%s2 + $0xf0] sm:$0xff]
  %v940 = vld [vmem:[%s2 + $0xf8] sm:$0xff]
  %v941 = vld [vmem:[%s2 + $0x100] sm:$0xff]
  %v942 = vld [vmem:[%s2 + $0x108] sm:$0xff]
  %v943 = vld [vmem:[%s2 + $0x110] sm:$0xff]
  %v944 = vld [vmem:[%s2 + $0x118] sm:$0xff]
  %v945 = vld [vmem:[%s2 + $0x120] sm:$0xff]
  %v946 = vld [vmem:[%s2 + $0x128] sm:$0xff]
  %v947 = vld [vmem:[%s2 + $0x130] sm:$0xff]
  %v948 = vld [vmem:[%s2 + $0x138] sm:$0xff]
  %v949 = vld [vmem:[%s2 + $0x140] sm:$0xff]
  %v950 = vld [vmem:[%s2 + $0x148] sm:$0xff]
  %v951 = vld [vmem:[%s2 + $0x150] sm:$0xff]
  %v952 = vld [vmem:[%s2 + $0x158] sm:$0xff]
  %v953 = vld [vmem:[%s2 + $0x160] sm:$0xff]
  %v954 = vld [vmem:[%s2 + $0x168] sm:$0xff]
  %v955 = vld [vmem:[%s2 + $0x170] sm:$0xff]
  %v956 = vld [vmem:[%s2 + $0x178] sm:$0xff]
  %v957 = vld [vmem:[%s2 + $0x180] sm:$0xff]
  %v958 = vld [vmem:[%s2 + $0x188] sm:$0xff]
  %v959 = vld [vmem:[%s2 + $0x190] sm:$0xff]
  %v960 = vld [vmem:[%s2 + $0x198] sm:$0xff]
  %v961 = vld [vmem:[%s2 + $0x1a0] sm:$0xff]
  %v962 = vld [vmem:[%s2 + $0x1a8] sm:$0xff]
  %v963 = vld [vmem:[%s2 + $0x1b0] sm:$0xff]
  %v964 = vld [vmem:[%s2 + $0x1b8] sm:$0xff]
  %v965 = vld [vmem:[%s2 + $0x1c0] sm:$0xff]
  %v966 = vld [vmem:[%s2 + $0x1c8] sm:$0xff]
  %v967 = vld [vmem:[%s2 + $0x1d0] sm:$0xff]
  %v968 = vld [vmem:[%s2 + $0x1d8] sm:$0xff]
  %v969 = vld [vmem:[%s2 + $0x1e0] sm:$0xff]
  %v970 = vld [vmem:[%s2 + $0x1e8] sm:$0xff]
  %v971 = vld [vmem:[%s2 + $0x1f0] sm:$0xff]
  %v972 = vld [vmem:[%s2 + $0x1f8] sm:$0xff]
  %973 = vmatprep.subr.mxu0 %v910
  %974 = vmatpush1.msra.mxu0 %v909
  %975 = vmatprep.subr.mxu0 %v914
  %976 = vmatpush1.msra.mxu0 %v913
  %977 = vmatprep.subr.mxu0 %v918
  %978 = vmatpush1.msra.mxu0 %v917
  %979 = vmatprep.subr.mxu0 %v922
  %980 = vmatpush1.msra.mxu0 %v921
  %981 = vmatprep.subr.mxu0 %v926
  %982 = vmatpush1.msra.mxu0 %v925
  %983 = vmatprep.subr.mxu0 %v930
  %984 = vmatpush1.msra.mxu0 %v929
  %985 = vmatprep.subr.mxu0 %v934
  %986 = vmatpush1.msra.mxu0 %v933
  %987 = vmatprep.subr.mxu0 %v938
  %988 = vmatpush1.msra.mxu0 %v937
  %989 = vmatprep.subr.mxu0 %v942
  %990 = vmatpush1.msra.mxu0 %v941
  %991 = vmatprep.subr.mxu0 %v946
  %992 = vmatpush1.msra.mxu0 %v945
  %993 = vmatprep.subr.mxu0 %v950
  %994 = vmatpush1.msra.mxu0 %v949
  %995 = vmatprep.subr.mxu0 %v954
  %996 = vmatpush1.msra.mxu0 %v953
  %997 = vmatprep.subr.mxu0 %v958
  %998 = vmatpush1.msra.mxu0 %v957
  %999 = vmatprep.subr.mxu0 %v962
  %1000 = vmatpush1.msra.mxu0 %v961
  %1001 = vmatprep.subr.mxu0 %v966
  %1002 = vmatpush1.msra.mxu0 %v965
  %1003 = vmatprep.subr.mxu0 %v970
  %1004 = vmatpush1.msra.mxu0 %v969
  %1005 = vmatprep.subr.mxu0 0.0
  %1006 = vmatpush1.msra.mxu0 0.0
  %1007 = vmatprep.subr.mxu0 0.0
  %1008 = vmatpush1.msra.mxu0 0.0
  %1009 = vmatprep.subr.mxu0 0.0
  %1010 = vmatpush1.msra.mxu0 0.0
  %1011 = vmatprep.subr.mxu0 0.0
  %1012 = vmatpush1.msra.mxu0 0.0
  %1013 = vmatprep.subr.mxu0 0.0
  %1014 = vmatpush1.msra.mxu0 0.0
  %1015 = vmatprep.subr.mxu0 0.0
  %1016 = vmatpush1.msra.mxu0 0.0
  %1017 = vmatprep.subr.mxu0 0.0
  %1018 = vmatpush1.msra.mxu0 0.0
  %1019 = vmatprep.subr.mxu0 0.0
  %1020 = vmatpush1.msra.mxu0 0.0
  %1021 = vmatprep.subr.mxu0 0.0
  %1022 = vmatpush1.msra.mxu0 0.0
  %1023 = vmatprep.subr.mxu0 0.0
  %1024 = vmatpush1.msra.mxu0 0.0
  %1025 = vmatprep.subr.mxu0 0.0
  %1026 = vmatpush1.msra.mxu0 0.0
  %1027 = vmatprep.subr.mxu0 0.0
  %1028 = vmatpush1.msra.mxu0 0.0
  %1029 = vmatprep.subr.mxu0 0.0
  %1030 = vmatpush1.msra.mxu0 0.0
  %1031 = vmatprep.subr.mxu0 0.0
  %1032 = vmatpush1.msra.mxu0 0.0
  %1033 = vmatprep.subr.mxu0 0.0
  %1034 = vmatpush1.msra.mxu0 0.0
  %1035 = vmatprep.subr.mxu0 0.0
  %1036 = vmatpush1.msra.mxu0 0.0
  %1037 = vmatprep.mubr.f32.mxu0 0.0
  %1038 = vmatmul.mubr.f32.gmra.mrb[0].mxu0 %v609
  %v1039 = vpop.f32.mrb[0].mxu0
  %v1040 = vadd.f32 0.0, %v1039
  %v1041 = vpop.f32.mrb[0].mxu0
  %v1042 = vadd.f32 0.0, %v1041
  %1043 = vdwg.mxu0
  %1044 = vmatprep.subr.mxu0 %v912
  %1045 = vmatpush1.msra.mxu0 %v911
  %1046 = vmatprep.subr.mxu0 %v916
  %1047 = vmatpush1.msra.mxu0 %v915
  %1048 = vmatprep.subr.mxu0 %v920
  %1049 = vmatpush1.msra.mxu0 %v919
  %1050 = vmatprep.subr.mxu0 %v924
  %1051 = vmatpush1.msra.mxu0 %v923
  %1052 = vmatprep.subr.mxu0 %v928
  %1053 = vmatpush1.msra.mxu0 %v927
  %1054 = vmatprep.subr.mxu0 %v932
  %1055 = vmatpush1.msra.mxu0 %v931
  %1056 = vmatprep.subr.mxu0 %v936
  %1057 = vmatpush1.msra.mxu0 %v935
  %1058 = vmatprep.subr.mxu0 %v940
  %1059 = vmatpush1.msra.mxu0 %v939
  %1060 = vmatprep.subr.mxu0 %v944
  %1061 = vmatpush1.msra.mxu0 %v943
  %1062 = vmatprep.subr.mxu0 %v948
  %1063 = vmatpush1.msra.mxu0 %v947
  %1064 = vmatprep.subr.mxu0 %v952
  %1065 = vmatpush1.msra.mxu0 %v951
  %1066 = vmatprep.subr.mxu0 %v956
  %1067 = vmatpush1.msra.mxu0 %v955
  %1068 = vmatprep.subr.mxu0 %v960
  %1069 = vmatpush1.msra.mxu0 %v959
  %1070 = vmatprep.subr.mxu0 %v964
  %1071 = vmatpush1.msra.mxu0 %v963
  %1072 = vmatprep.subr.mxu0 %v968
  %1073 = vmatpush1.msra.mxu0 %v967
  %1074 = vmatprep.subr.mxu0 %v972
  %1075 = vmatpush1.msra.mxu0 %v971
  %1076 = vmatprep.subr.mxu0 0.0
  %1077 = vmatpush1.msra.mxu0 0.0
  %1078 = vmatprep.subr.mxu0 0.0
  %1079 = vmatpush1.msra.mxu0 0.0
  %1080 = vmatprep.subr.mxu0 0.0
  %1081 = vmatpush1.msra.mxu0 0.0
  %1082 = vmatprep.subr.mxu0 0.0
  %1083 = vmatpush1.msra.mxu0 0.0
  %1084 = vmatprep.subr.mxu0 0.0
  %1085 = vmatpush1.msra.mxu0 0.0
  %1086 = vmatprep.subr.mxu0 0.0
  %1087 = vmatpush1.msra.mxu0 0.0
  %1088 = vmatprep.subr.mxu0 0.0
  %1089 = vmatpush1.msra.mxu0 0.0
  %1090 = vmatprep.subr.mxu0 0.0
  %1091 = vmatpush1.msra.mxu0 0.0
  %1092 = vmatprep.subr.mxu0 0.0
  %1093 = vmatpush1.msra.mxu0 0.0
  %1094 = vmatprep.subr.mxu0 0.0
  %1095 = vmatpush1.msra.mxu0 0.0
  %1096 = vmatprep.subr.mxu0 0.0
  %1097 = vmatpush1.msra.mxu0 0.0
  %1098 = vmatprep.subr.mxu0 0.0
  %1099 = vmatpush1.msra.mxu0 0.0
  %1100 = vmatprep.subr.mxu0 0.0
  %1101 = vmatpush1.msra.mxu0 0.0
  %1102 = vmatprep.subr.mxu0 0.0
  %1103 = vmatpush1.msra.mxu0 0.0
  %1104 = vmatprep.subr.mxu0 0.0
  %1105 = vmatpush1.msra.mxu0 0.0
  %1106 = vmatprep.subr.mxu0 0.0
  %1107 = vmatpush1.msra.mxu0 0.0
  %1108 = vmatprep.mubr.f32.mxu0 0.0
  %1109 = vmatmul.mubr.f32.gmra.mrb[0].mxu0 %v609
  %v1110 = vpop.f32.mrb[0].mxu0
  %v1111 = vadd.f32 0.0, %v1110
  %v1112 = vpop.f32.mrb[0].mxu0
  %v1113 = vadd.f32 0.0, %v1112
  %1114 = vdwg.mxu0
  %v1115 = vadd.f32 %v905, %v1040
  %v1116 = vadd.f32 %v906, %v1042
  %v1117 = vadd.f32 %v907, %v1111
  %v1118 = vadd.f32 %v908, %v1113
  %v1119 = vxor.u32 %v1115, 2147483648
  %v1120 = vmul.f32 %v1119, 1.442695
  %v1121 = vpow.pop %v1120
  %v1122 = vadd.f32 %v1121, 1.0
  %v1123 = vrcp.pop %v1122
  %v1124 = vmul.f32 1.0, %v1123
  %v1125 = vxor.u32 %v1116, 2147483648
  %v1126 = vmul.f32 %v1125, 1.442695
  %v1127 = vpow.pop %v1126
  %v1128 = vadd.f32 %v1127, 1.0
  %v1129 = vrcp.pop %v1128
  %v1130 = vmul.f32 1.0, %v1129
  %v1131 = vtanh.pop %v1117
  %v1132 = vxor.u32 %v1118, 2147483648
  %v1133 = vmul.f32 %v1132, 1.442695
  %v1134 = vpow.pop %v1133
  %v1135 = vadd.f32 %v1134, 1.0
  %v1136 = vrcp.pop %v1135
  %v1137 = vmul.f32 1.0, %v1136
  %v1138 = vmul.f32 %v1130, %v607
  %v1139 = vmul.f32 %v1124, %v1131
  %v1140 = vadd.f32 %v1138, %v1139
  %v1141 = vtanh.pop %v1140
  %v1142 = vmul.f32 %v1137, %v1141
  %v1143 = vld [vmem:[%s4] sm:$0xff]
  %v1144 = vld [vmem:[%s4 + $0x8] sm:$0xff]
  %v1145 = vld [vmem:[%s4 + $0x10] sm:$0xff]
  %v1146 = vld [vmem:[%s4 + $0x18] sm:$0xff]
  %v1147 = vld [vmem:[%s4 + $0x20] sm:$0xff]
  %v1148 = vld [vmem:[%s4 + $0x28] sm:$0xff]
  %v1149 = vld [vmem:[%s4 + $0x30] sm:$0xff]
  %v1150 = vld [vmem:[%s4 + $0x38] sm:$0xff]
  %v1151 = vld [vmem:[%s4 + $0x40] sm:$0xff]
  %v1152 = vld [vmem:[%s4 + $0x48] sm:$0xff]
  %v1153 = vld [vmem:[%s4 + $0x50] sm:$0xff]
  %v1154 = vld [vmem:[%s4 + $0x58] sm:$0xff]
  %v1155 = vld [vmem:[%s4 + $0x60] sm:$0xff]
  %v1156 = vld [vmem:[%s4 + $0x68] sm:$0xff]
  %v1157 = vld [vmem:[%s4 + $0x70] sm:$0xff]
  %v1158 = vld [vmem:[%s4 + $0x78] sm:$0xff]
  %v1159 = vld [vmem:[%s4 + $0x80] sm:$0xff]
  %v1160 = vld [vmem:[%s4 + $0x88] sm:$0xff]
  %v1161 = vld [vmem:[%s4 + $0x90] sm:$0xff]
  %v1162 = vld [vmem:[%s4 + $0x98] sm:$0xff]
  %v1163 = vld [vmem:[%s4 + $0xa0] sm:$0xff]
  %v1164 = vld [vmem:[%s4 + $0xa8] sm:$0xff]
  %v1165 = vld [vmem:[%s4 + $0xb0] sm:$0xff]
  %v1166 = vld [vmem:[%s4 + $0xb8] sm:$0xff]
  %v1167 = vld [vmem:[%s4 + $0xc0] sm:$0xff]
  %v1168 = vld [vmem:[%s4 + $0xc8] sm:$0xff]
  %v1169 = vld [vmem:[%s4 + $0xd0] sm:$0xff]
  %v1170 = vld [vmem:[%s4 + $0xd8] sm:$0xff]
  %v1171 = vld [vmem:[%s4 + $0xe0] sm:$0xff]
  %v1172 = vld [vmem:[%s4 + $0xe8] sm:$0xff]
  %v1173 = vld [vmem:[%s4 + $0xf0] sm:$0xff]
  %v1174 = vld [vmem:[%s4 + $0xf8] sm:$0xff]
  %v1175 = vld [vmem:[%s4 + $0x100] sm:$0xff]
  %v1176 = vld [vmem:[%s4 + $0x108] sm:$0xff]
  %v1177 = vld [vmem:[%s4 + $0x110] sm:$0xff]
  %v1178 = vld [vmem:[%s4 + $0x118] sm:$0xff]
  %v1179 = vld [vmem:[%s4 + $0x120] sm:$0xff]
  %v1180 = vld [vmem:[%s4 + $0x128] sm:$0xff]
  %v1181 = vld [vmem:[%s4 + $0x130] sm:$0xff]
  %v1182 = vld [vmem:[%s4 + $0x138] sm:$0xff]
  %v1183 = vld [vmem:[%s4 + $0x140] sm:$0xff]
  %v1184 = vld [vmem:[%s4 + $0x148] sm:$0xff]
  %v1185 = vld [vmem:[%s4 + $0x150] sm:$0xff]
  %v1186 = vld [vmem:[%s4 + $0x158] sm:$0xff]
  %v1187 = vld [vmem:[%s4 + $0x160] sm:$0xff]
  %v1188 = vld [vmem:[%s4 + $0x168] sm:$0xff]
  %v1189 = vld [vmem:[%s4 + $0x170] sm:$0xff]
  %v1190 = vld [vmem:[%s4 + $0x178] sm:$0xff]
  %v1191 = vld [vmem:[%s4 + $0x180] sm:$0xff]
  %v1192 = vld [vmem:[%s4 + $0x188] sm:$0xff]
  %v1193 = vld [vmem:[%s4 + $0x190] sm:$0xff]
  %v1194 = vld [vmem:[%s4 + $0x198] sm:$0xff]
  %v1195 = vld [vmem:[%s4 + $0x1a0] sm:$0xff]
  %v1196 = vld [vmem:[%s4 + $0x1a8] sm:$0xff]
  %v1197 = vld [vmem:[%s4 + $0x1b0] sm:$0xff]
  %v1198 = vld [vmem:[%s4 + $0x1b8] sm:$0xff]
  %v1199 = vld [vmem:[%s4 + $0x1c0] sm:$0xff]
  %v1200 = vld [vmem:[%s4 + $0x1c8] sm:$0xff]
  %v1201 = vld [vmem:[%s4 + $0x1d0] sm:$0xff]
  %v1202 = vld [vmem:[%s4 + $0x1d8] sm:$0xff]
  %v1203 = vld [vmem:[%s4 + $0x1e0] sm:$0xff]
  %v1204 = vld [vmem:[%s4 + $0x1e8] sm:$0xff]
  %v1205 = vld [vmem:[%s4 + $0x1f0] sm:$0xff]
  %v1206 = vld [vmem:[%s4 + $0x1f8] sm:$0xff]
  %v1207 = vld [vmem:[%s4 + $0x200] sm:$0xff]
  %v1208 = vld [vmem:[%s4 + $0x208] sm:$0xff]
  %v1209 = vld [vmem:[%s4 + $0x210] sm:$0xff]
  %v1210 = vld [vmem:[%s4 + $0x218] sm:$0xff]
  %v1211 = vld [vmem:[%s4 + $0x220] sm:$0xff]
  %v1212 = vld [vmem:[%s4 + $0x228] sm:$0xff]
  %v1213 = vld [vmem:[%s4 + $0x230] sm:$0xff]
  %v1214 = vld [vmem:[%s4 + $0x238] sm:$0xff]
  %v1215 = vld [vmem:[%s4 + $0x240] sm:$0xff]
  %v1216 = vld [vmem:[%s4 + $0x248] sm:$0xff]
  %v1217 = vld [vmem:[%s4 + $0x250] sm:$0xff]
  %v1218 = vld [vmem:[%s4 + $0x258] sm:$0xff]
  %v1219 = vld [vmem:[%s4 + $0x260] sm:$0xff]
  %v1220 = vld [vmem:[%s4 + $0x268] sm:$0xff]
  %v1221 = vld [vmem:[%s4 + $0x270] sm:$0xff]
  %v1222 = vld [vmem:[%s4 + $0x278] sm:$0xff]
  %v1223 = vld [vmem:[%s4 + $0x280] sm:$0xff]
  %v1224 = vld [vmem:[%s4 + $0x288] sm:$0xff]
  %v1225 = vld [vmem:[%s4 + $0x290] sm:$0xff]
  %v1226 = vld [vmem:[%s4 + $0x298] sm:$0xff]
  %v1227 = vld [vmem:[%s4 + $0x2a0] sm:$0xff]
  %v1228 = vld [vmem:[%s4 + $0x2a8] sm:$0xff]
  %v1229 = vld [vmem:[%s4 + $0x2b0] sm:$0xff]
  %v1230 = vld [vmem:[%s4 + $0x2b8] sm:$0xff]
  %v1231 = vld [vmem:[%s4 + $0x2c0] sm:$0xff]
  %v1232 = vld [vmem:[%s4 + $0x2c8] sm:$0xff]
  %v1233 = vld [vmem:[%s4 + $0x2d0] sm:$0xff]
  %v1234 = vld [vmem:[%s4 + $0x2d8] sm:$0xff]
  %v1235 = vld [vmem:[%s4 + $0x2e0] sm:$0xff]
  %v1236 = vld [vmem:[%s4 + $0x2e8] sm:$0xff]
  %v1237 = vld [vmem:[%s4 + $0x2f0] sm:$0xff]
  %v1238 = vld [vmem:[%s4 + $0x2f8] sm:$0xff]
  %v1239 = vld [vmem:[%s4 + $0x300] sm:$0xff]
  %v1240 = vld [vmem:[%s4 + $0x308] sm:$0xff]
  %v1241 = vld [vmem:[%s4 + $0x310] sm:$0xff]
  %v1242 = vld [vmem:[%s4 + $0x318] sm:$0xff]
  %v1243 = vld [vmem:[%s4 + $0x320] sm:$0xff]
  %v1244 = vld [vmem:[%s4 + $0x328] sm:$0xff]
  %v1245 = vld [vmem:[%s4 + $0x330] sm:$0xff]
  %v1246 = vld [vmem:[%s4 + $0x338] sm:$0xff]
  %v1247 = vld [vmem:[%s4 + $0x340] sm:$0xff]
  %v1248 = vld [vmem:[%s4 + $0x348] sm:$0xff]
  %v1249 = vld [vmem:[%s4 + $0x350] sm:$0xff]
  %v1250 = vld [vmem:[%s4 + $0x358] sm:$0xff]
  %v1251 = vld [vmem:[%s4 + $0x360] sm:$0xff]
  %v1252 = vld [vmem:[%s4 + $0x368] sm:$0xff]
  %v1253 = vld [vmem:[%s4 + $0x370] sm:$0xff]
  %v1254 = vld [vmem:[%s4 + $0x378] sm:$0xff]
  %v1255 = vld [vmem:[%s4 + $0x380] sm:$0xff]
  %v1256 = vld [vmem:[%s4 + $0x388] sm:$0xff]
  %v1257 = vld [vmem:[%s4 + $0x390] sm:$0xff]
  %v1258 = vld [vmem:[%s4 + $0x398] sm:$0xff]
  %v1259 = vld [vmem:[%s4 + $0x3a0] sm:$0xff]
  %v1260 = vld [vmem:[%s4 + $0x3a8] sm:$0xff]
  %v1261 = vld [vmem:[%s4 + $0x3b0] sm:$0xff]
  %v1262 = vld [vmem:[%s4 + $0x3b8] sm:$0xff]
  %v1263 = vld [vmem:[%s4 + $0x3c0] sm:$0xff]
  %v1264 = vld [vmem:[%s4 + $0x3c8] sm:$0xff]
  %v1265 = vld [vmem:[%s4 + $0x3d0] sm:$0xff]
  %v1266 = vld [vmem:[%s4 + $0x3d8] sm:$0xff]
  %v1267 = vld [vmem:[%s4 + $0x3e0] sm:$0xff]
  %v1268 = vld [vmem:[%s4 + $0x3e8] sm:$0xff]
  %v1269 = vld [vmem:[%s4 + $0x3f0] sm:$0xff]
  %v1270 = vld [vmem:[%s4 + $0x3f8] sm:$0xff]
  %1271 = vmatprep.subr.mxu0 %v1144
  %1272 = vmatpush1.msra.mxu0 %v1143
  %1273 = vmatprep.subr.mxu0 %v1148
  %1274 = vmatpush1.msra.mxu0 %v1147
  %1275 = vmatprep.subr.mxu0 %v1152
  %1276 = vmatpush1.msra.mxu0 %v1151
  %1277 = vmatprep.subr.mxu0 %v1156
  %1278 = vmatpush1.msra.mxu0 %v1155
  %1279 = vmatprep.subr.mxu0 %v1160
  %1280 = vmatpush1.msra.mxu0 %v1159
  %1281 = vmatprep.subr.mxu0 %v1164
  %1282 = vmatpush1.msra.mxu0 %v1163
  %1283 = vmatprep.subr.mxu0 %v1168
  %1284 = vmatpush1.msra.mxu0 %v1167
  %1285 = vmatprep.subr.mxu0 %v1172
  %1286 = vmatpush1.msra.mxu0 %v1171
  %1287 = vmatprep.subr.mxu0 %v1176
  %1288 = vmatpush1.msra.mxu0 %v1175
  %1289 = vmatprep.subr.mxu0 %v1180
  %1290 = vmatpush1.msra.mxu0 %v1179
  %1291 = vmatprep.subr.mxu0 %v1184
  %1292 = vmatpush1.msra.mxu0 %v1183
  %1293 = vmatprep.subr.mxu0 %v1188
  %1294 = vmatpush1.msra.mxu0 %v1187
  %1295 = vmatprep.subr.mxu0 %v1192
  %1296 = vmatpush1.msra.mxu0 %v1191
  %1297 = vmatprep.subr.mxu0 %v1196
  %1298 = vmatpush1.msra.mxu0 %v1195
  %1299 = vmatprep.subr.mxu0 %v1200
  %1300 = vmatpush1.msra.mxu0 %v1199
  %1301 = vmatprep.subr.mxu0 %v1204
  %1302 = vmatpush1.msra.mxu0 %v1203
  %1303 = vmatprep.subr.mxu0 %v1208
  %1304 = vmatpush1.msra.mxu0 %v1207
  %1305 = vmatprep.subr.mxu0 %v1212
  %1306 = vmatpush1.msra.mxu0 %v1211
  %1307 = vmatprep.subr.mxu0 %v1216
  %1308 = vmatpush1.msra.mxu0 %v1215
  %1309 = vmatprep.subr.mxu0 %v1220
  %1310 = vmatpush1.msra.mxu0 %v1219
  %1311 = vmatprep.subr.mxu0 %v1224
  %1312 = vmatpush1.msra.mxu0 %v1223
  %1313 = vmatprep.subr.mxu0 %v1228
  %1314 = vmatpush1.msra.mxu0 %v1227
  %1315 = vmatprep.subr.mxu0 %v1232
  %1316 = vmatpush1.msra.mxu0 %v1231
  %1317 = vmatprep.subr.mxu0 %v1236
  %1318 = vmatpush1.msra.mxu0 %v1235
  %1319 = vmatprep.subr.mxu0 %v1240
  %1320 = vmatpush1.msra.mxu0 %v1239
  %1321 = vmatprep.subr.mxu0 %v1244
  %1322 = vmatpush1.msra.mxu0 %v1243
  %1323 = vmatprep.subr.mxu0 %v1248
  %1324 = vmatpush1.msra.mxu0 %v1247
  %1325 = vmatprep.subr.mxu0 %v1252
  %1326 = vmatpush1.msra.mxu0 %v1251
  %1327 = vmatprep.subr.mxu0 %v1256
  %1328 = vmatpush1.msra.mxu0 %v1255
  %1329 = vmatprep.subr.mxu0 %v1260
  %1330 = vmatpush1.msra.mxu0 %v1259
  %1331 = vmatprep.subr.mxu0 %v1264
  %1332 = vmatpush1.msra.mxu0 %v1263
  %1333 = vmatprep.subr.mxu0 %v1268
  %1334 = vmatpush1.msra.mxu0 %v1267
  %1335 = vmatprep.mubr.f32.mxu0 %v903
  %1336 = vmatmul.mubr.f32.gmra.mrb[0].mxu0 %v1142
  %v1337 = vpop.f32.mrb[0].mxu0
  %v1338 = vadd.f32 %v355, %v1337
  %v1339 = vpop.f32.mrb[0].mxu0
  %v1340 = vadd.f32 %v359, %v1339
  %1341 = vdwg.mxu0
  %1342 = vmatprep.subr.mxu0 %v1146
  %1343 = vmatpush1.msra.mxu0 %v1145
  %1344 = vmatprep.subr.mxu0 %v1150
  %1345 = vmatpush1.msra.mxu0 %v1149
  %1346 = vmatprep.subr.mxu0 %v1154
  %1347 = vmatpush1.msra.mxu0 %v1153
  %1348 = vmatprep.subr.mxu0 %v1158
  %1349 = vmatpush1.msra.mxu0 %v1157
  %1350 = vmatprep.subr.mxu0 %v1162
  %1351 = vmatpush1.msra.mxu0 %v1161
  %1352 = vmatprep.subr.mxu0 %v1166
  %1353 = vmatpush1.msra.mxu0 %v1165
  %1354 = vmatprep.subr.mxu0 %v1170
  %1355 = vmatpush1.msra.mxu0 %v1169
  %1356 = vmatprep.subr.mxu0 %v1174
  %1357 = vmatpush1.msra.mxu0 %v1173
  %1358 = vmatprep.subr.mxu0 %v1178
  %1359 = vmatpush1.msra.mxu0 %v1177
  %1360 = vmatprep.subr.mxu0 %v1182
  %1361 = vmatpush1.msra.mxu0 %v1181
  %1362 = vmatprep.subr.mxu0 %v1186
  %1363 = vmatpush1.msra.mxu0 %v1185
  %1364 = vmatprep.subr.mxu0 %v1190
  %1365 = vmatpush1.msra.mxu0 %v1189
  %1366 = vmatprep.subr.mxu0 %v1194
  %1367 = vmatpush1.msra.mxu0 %v1193
  %1368 = vmatprep.subr.mxu0 %v1198
  %1369 = vmatpush1.msra.mxu0 %v1197
  %1370 = vmatprep.subr.mxu0 %v1202
  %1371 = vmatpush1.msra.mxu0 %v1201
  %1372 = vmatprep.subr.mxu0 %v1206
  %1373 = vmatpush1.msra.mxu0 %v1205
  %1374 = vmatprep.subr.mxu0 %v1210
  %1375 = vmatpush1.msra.mxu0 %v1209
  %1376 = vmatprep.subr.mxu0 %v1214
  %1377 = vmatpush1.msra.mxu0 %v1213
  %1378 = vmatprep.subr.mxu0 %v1218
  %1379 = vmatpush1.msra.mxu0 %v1217
  %1380 = vmatprep.subr.mxu0 %v1222
  %1381 = vmatpush1.msra.mxu0 %v1221
  %1382 = vmatprep.subr.mxu0 %v1226
  %1383 = vmatpush1.msra.mxu0 %v1225
  %1384 = vmatprep.subr.mxu0 %v1230
  %1385 = vmatpush1.msra.mxu0 %v1229
  %1386 = vmatprep.subr.mxu0 %v1234
  %1387 = vmatpush1.msra.mxu0 %v1233
  %1388 = vmatprep.subr.mxu0 %v1238
  %1389 = vmatpush1.msra.mxu0 %v1237
  %1390 = vmatprep.subr.mxu0 %v1242
  %1391 = vmatpush1.msra.mxu0 %v1241
  %1392 = vmatprep.subr.mxu0 %v1246
  %1393 = vmatpush1.msra.mxu0 %v1245
  %1394 = vmatprep.subr.mxu0 %v1250
  %1395 = vmatpush1.msra.mxu0 %v1249
  %1396 = vmatprep.subr.mxu0 %v1254
  %1397 = vmatpush1.msra.mxu0 %v1253
  %1398 = vmatprep.subr.mxu0 %v1258
  %1399 = vmatpush1.msra.mxu0 %v1257
  %1400 = vmatprep.subr.mxu0 %v1262
  %1401 = vmatpush1.msra.mxu0 %v1261
  %1402 = vmatprep.subr.mxu0 %v1266
  %1403 = vmatpush1.msra.mxu0 %v1265
  %1404 = vmatprep.subr.mxu0 %v1270
  %1405 = vmatpush1.msra.mxu0 %v1269
  %1406 = vmatprep.mubr.f32.mxu0 %v903
  %1407 = vmatmul.mubr.f32.gmra.mrb[0].mxu0 %v1142
  %v1408 = vpop.f32.mrb[0].mxu0
  %v1409 = vadd.f32 %v363, %v1408
  %v1410 = vpop.f32.mrb[0].mxu0
  %v1411 = vadd.f32 %v367, %v1410
  %1412 = vdwg.mxu0
  %v1413 = vxor.u32 %v1338, 2147483648
  %v1414 = vmul.f32 %v1413, 1.442695
  %v1415 = vpow.pop %v1414
  %v1416 = vadd.f32 %v1415, 1.0
  %v1417 = vrcp.pop %v1416
  %v1418 = vmul.f32 1.0, %v1417
  %v1419 = vxor.u32 %v1340, 2147483648
  %v1420 = vmul.f32 %v1419, 1.442695
  %v1421 = vpow.pop %v1420
  %v1422 = vadd.f32 %v1421, 1.0
  %v1423 = vrcp.pop %v1422
  %v1424 = vmul.f32 1.0, %v1423
  %v1425 = vtanh.pop %v1409
  %v1426 = vxor.u32 %v1411, 2147483648
  %v1427 = vmul.f32 %v1426, 1.442695
  %v1428 = vpow.pop %v1427
  %v1429 = vadd.f32 %v1428, 1.0
  %v1430 = vrcp.pop %v1429
  %v1431 = vmul.f32 1.0, %v1430
  %v1432 = vmul.f32 %v1424, %v901
  %v1433 = vmul.f32 %v1418, %v1425
  %v1434 = vadd.f32 %v1432, %v1433
  %v1435 = vtanh.pop %v1434
  %v1436 = vmul.f32 %v1431, %v1435
  %1437 = vst [vmem:[#allocation3 + $0x8] sm:$0xff] %v1436
  %v1438 = vld [vmem:[#allocation2 + $0x40] sm:$0xff]
  %v1439 = vld [vmem:[#allocation2 + $0x48] sm:$0xff]
  %v1440 = vld [vmem:[#allocation2 + $0x50] sm:$0xff]
  %v1441 = vld [vmem:[#allocation2 + $0x58] sm:$0xff]
  %v1442 = vld [vmem:[%s2] sm:$0xff]
  %v1443 = vld [vmem:[%s2 + $0x8] sm:$0xff]
  %v1444 = vld [vmem:[%s2 + $0x10] sm:$0xff]
  %v1445 = vld [vmem:[%s2 + $0x18] sm:$0xff]
  %v1446 = vld [vmem:[%s2 + $0x20] sm:$0xff]
  %v1447 = vld [vmem:[%s2 + $0x28] sm:$0xff]
  %v1448 = vld [vmem:[%s2 + $0x30] sm:$0xff]
  %v1449 = vld [vmem:[%s2 + $0x38] sm:$0xff]
  %v1450 = vld [vmem:[%s2 + $0x40] sm:$0xff]
  %v1451 = vld [vmem:[%s2 + $0x48] sm:$0xff]
  %v1452 = vld [vmem:[%s2 + $0x50] sm:$0xff]
  %v1453 = vld [vmem:[%s2 + $0x58] sm:$0xff]
  %v1454 = vld [vmem:[%s2 + $0x60] sm:$0xff]
  %v1455 = vld [vmem:[%s2 + $0x68] sm:$0xff]
  %v1456 = vld [vmem:[%s2 + $0x70] sm:$0xff]
  %v1457 = vld [vmem:[%s2 + $0x78] sm:$0xff]
  %v1458 = vld [vmem:[%s2 + $0x80] sm:$0xff]
  %v1459 = vld [vmem:[%s2 + $0x88] sm:$0xff]
  %v1460 = vld [vmem:[%s2 + $0x90] sm:$0xff]
  %v1461 = vld [vmem:[%s2 + $0x98] sm:$0xff]
  %v1462 = vld [vmem:[%s2 + $0xa0] sm:$0xff]
  %v1463 = vld [vmem:[%s2 + $0xa8] sm:$0xff]
  %v1464 = vld [vmem:[%s2 + $0xb0] sm:$0xff]
  %v1465 = vld [vmem:[%s2 + $0xb8] sm:$0xff]
  %v1466 = vld [vmem:[%s2 + $0xc0] sm:$0xff]
  %v1467 = vld [vmem:[%s2 + $0xc8] sm:$0xff]
  %v1468 = vld [vmem:[%s2 + $0xd0] sm:$0xff]
  %v1469 = vld [vmem:[%s2 + $0xd8] sm:$0xff]
  %v1470 = vld [vmem:[%s2 + $0xe0] sm:$0xff]
  %v1471 = vld [vmem:[%s2 + $0xe8] sm:$0xff]
  %v1472 = vld [vmem:[%s2 + $0xf0] sm:$0xff]
  %v1473 = vld [vmem:[%s2 + $0xf8] sm:$0xff]
  %v1474 = vld [vmem:[%s2 + $0x100] sm:$0xff]
  %v1475 = vld [vmem:[%s2 + $0x108] sm:$0xff]
  %v1476 = vld [vmem:[%s2 + $0x110] sm:$0xff]
  %v1477 = vld [vmem:[%s2 + $0x118] sm:$0xff]
  %v1478 = vld [vmem:[%s2 + $0x120] sm:$0xff]
  %v1479 = vld [vmem:[%s2 + $0x128] sm:$0xff]
  %v1480 = vld [vmem:[%s2 + $0x130] sm:$0xff]
  %v1481 = vld [vmem:[%s2 + $0x138] sm:$0xff]
  %v1482 = vld [vmem:[%s2 + $0x140] sm:$0xff]
  %v1483 = vld [vmem:[%s2 + $0x148] sm:$0xff]
  %v1484 = vld [vmem:[%s2 + $0x150] sm:$0xff]
  %v1485 = vld [vmem:[%s2 + $0x158] sm:$0xff]
  %v1486 = vld [vmem:[%s2 + $0x160] sm:$0xff]
  %v1487 = vld [vmem:[%s2 + $0x168] sm:$0xff]
  %v1488 = vld [vmem:[%s2 + $0x170] sm:$0xff]
  %v1489 = vld [vmem:[%s2 + $0x178] sm:$0xff]
  %v1490 = vld [vmem:[%s2 + $0x180] sm:$0xff]
  %v1491 = vld [vmem:[%s2 + $0x188] sm:$0xff]
  %v1492 = vld [vmem:[%s2 + $0x190] sm:$0xff]
  %v1493 = vld [vmem:[%s2 + $0x198] sm:$0xff]
  %v1494 = vld [vmem:[%s2 + $0x1a0] sm:$0xff]
  %v1495 = vld [vmem:[%s2 + $0x1a8] sm:$0xff]
  %v1496 = vld [vmem:[%s2 + $0x1b0] sm:$0xff]
  %v1497 = vld [vmem:[%s2 + $0x1b8] sm:$0xff]
  %v1498 = vld [vmem:[%s2 + $0x1c0] sm:$0xff]
  %v1499 = vld [vmem:[%s2 + $0x1c8] sm:$0xff]
  %v1500 = vld [vmem:[%s2 + $0x1d0] sm:$0xff]
  %v1501 = vld [vmem:[%s2 + $0x1d8] sm:$0xff]
  %v1502 = vld [vmem:[%s2 + $0x1e0] sm:$0xff]
  %v1503 = vld [vmem:[%s2 + $0x1e8] sm:$0xff]
  %v1504 = vld [vmem:[%s2 + $0x1f0] sm:$0xff]
  %v1505 = vld [vmem:[%s2 + $0x1f8] sm:$0xff]
  %1506 = vmatprep.subr.mxu0 %v1443
  %1507 = vmatpush1.msra.mxu0 %v1442
  %1508 = vmatprep.subr.mxu0 %v1447
  %1509 = vmatpush1.msra.mxu0 %v1446
  %1510 = vmatprep.subr.mxu0 %v1451
  %1511 = vmatpush1.msra.mxu0 %v1450
  %1512 = vmatprep.subr.mxu0 %v1455
  %1513 = vmatpush1.msra.mxu0 %v1454
  %1514 = vmatprep.subr.mxu0 %v1459
  %1515 = vmatpush1.msra.mxu0 %v1458
  %1516 = vmatprep.subr.mxu0 %v1463
  %1517 = vmatpush1.msra.mxu0 %v1462
  %1518 = vmatprep.subr.mxu0 %v1467
  %1519 = vmatpush1.msra.mxu0 %v1466
  %1520 = vmatprep.subr.mxu0 %v1471
  %1521 = vmatpush1.msra.mxu0 %v1470
  %1522 = vmatprep.subr.mxu0 %v1475
  %1523 = vmatpush1.msra.mxu0 %v1474
  %1524 = vmatprep.subr.mxu0 %v1479
  %1525 = vmatpush1.msra.mxu0 %v1478
  %1526 = vmatprep.subr.mxu0 %v1483
  %1527 = vmatpush1.msra.mxu0 %v1482
  %1528 = vmatprep.subr.mxu0 %v1487
  %1529 = vmatpush1.msra.mxu0 %v1486
  %1530 = vmatprep.subr.mxu0 %v1491
  %1531 = vmatpush1.msra.mxu0 %v1490
  %1532 = vmatprep.subr.mxu0 %v1495
  %1533 = vmatpush1.msra.mxu0 %v1494
  %1534 = vmatprep.subr.mxu0 %v1499
  %1535 = vmatpush1.msra.mxu0 %v1498
  %1536 = vmatprep.subr.mxu0 %v1503
  %1537 = vmatpush1.msra.mxu0 %v1502
  %1538 = vmatprep.subr.mxu0 0.0
  %1539 = vmatpush1.msra.mxu0 0.0
  %1540 = vmatprep.subr.mxu0 0.0
  %1541 = vmatpush1.msra.mxu0 0.0
  %1542 = vmatprep.subr.mxu0 0.0
  %1543 = vmatpush1.msra.mxu0 0.0
  %1544 = vmatprep.subr.mxu0 0.0
  %1545 = vmatpush1.msra.mxu0 0.0
  %1546 = vmatprep.subr.mxu0 0.0
  %1547 = vmatpush1.msra.mxu0 0.0
  %1548 = vmatprep.subr.mxu0 0.0
  %1549 = vmatpush1.msra.mxu0 0.0
  %1550 = vmatprep.subr.mxu0 0.0
  %1551 = vmatpush1.msra.mxu0 0.0
  %1552 = vmatprep.subr.mxu0 0.0
  %1553 = vmatpush1.msra.mxu0 0.0
  %1554 = vmatprep.subr.mxu0 0.0
  %1555 = vmatpush1.msra.mxu0 0.0
  %1556 = vmatprep.subr.mxu0 0.0
  %1557 = vmatpush1.msra.mxu0 0.0
  %1558 = vmatprep.subr.mxu0 0.0
  %1559 = vmatpush1.msra.mxu0 0.0
  %1560 = vmatprep.subr.mxu0 0.0
  %1561 = vmatpush1.msra.mxu0 0.0
  %1562 = vmatprep.subr.mxu0 0.0
  %1563 = vmatpush1.msra.mxu0 0.0
  %1564 = vmatprep.subr.mxu0 0.0
  %1565 = vmatpush1.msra.mxu0 0.0
  %1566 = vmatprep.subr.mxu0 0.0
  %1567 = vmatpush1.msra.mxu0 0.0
  %1568 = vmatprep.subr.mxu0 0.0
  %1569 = vmatpush1.msra.mxu0 0.0
  %1570 = vmatprep.mubr.f32.mxu0 0.0
  %1571 = vmatmul.mubr.f32.gmra.mrb[0].mxu0 %v1142
  %v1572 = vpop.f32.mrb[0].mxu0
  %v1573 = vadd.f32 0.0, %v1572
  %v1574 = vpop.f32.mrb[0].mxu0
  %v1575 = vadd.f32 0.0, %v1574
  %1576 = vdwg.mxu0
  %1577 = vmatprep.subr.mxu0 %v1445
  %1578 = vmatpush1.msra.mxu0 %v1444
  %1579 = vmatprep.subr.mxu0 %v1449
  %1580 = vmatpush1.msra.mxu0 %v1448
  %1581 = vmatprep.subr.mxu0 %v1453
  %1582 = vmatpush1.msra.mxu0 %v1452
  %1583 = vmatprep.subr.mxu0 %v1457
  %1584 = vmatpush1.msra.mxu0 %v1456
  %1585 = vmatprep.subr.mxu0 %v1461
  %1586 = vmatpush1.msra.mxu0 %v1460
  %1587 = vmatprep.subr.mxu0 %v1465
  %1588 = vmatpush1.msra.mxu0 %v1464
  %1589 = vmatprep.subr.mxu0 %v1469
  %1590 = vmatpush1.msra.mxu0 %v1468
  %1591 = vmatprep.subr.mxu0 %v1473
  %1592 = vmatpush1.msra.mxu0 %v1472
  %1593 = vmatprep.subr.mxu0 %v1477
  %1594 = vmatpush1.msra.mxu0 %v1476
  %1595 = vmatprep.subr.mxu0 %v1481
  %1596 = vmatpush1.msra.mxu0 %v1480
  %1597 = vmatprep.subr.mxu0 %v1485
  %1598 = vmatpush1.msra.mxu0 %v1484
  %1599 = vmatprep.subr.mxu0 %v1489
  %1600 = vmatpush1.msra.mxu0 %v1488
  %1601 = vmatprep.subr.mxu0 %v1493
  %1602 = vmatpush1.msra.mxu0 %v1492
  %1603 = vmatprep.subr.mxu0 %v1497
  %1604 = vmatpush1.msra.mxu0 %v1496
  %1605 = vmatprep.subr.mxu0 %v1501
  %1606 = vmatpush1.msra.mxu0 %v1500
  %1607 = vmatprep.subr.mxu0 %v1505
  %1608 = vmatpush1.msra.mxu0 %v1504
  %1609 = vmatprep.subr.mxu0 0.0
  %1610 = vmatpush1.msra.mxu0 0.0
  %1611 = vmatprep.subr.mxu0 0.0
  %1612 = vmatpush1.msra.mxu0 0.0
  %1613 = vmatprep.subr.mxu0 0.0
  %1614 = vmatpush1.msra.mxu0 0.0
  %1615 = vmatprep.subr.mxu0 0.0
  %1616 = vmatpush1.msra.mxu0 0.0
  %1617 = vmatprep.subr.mxu0 0.0
  %1618 = vmatpush1.msra.mxu0 0.0
  %1619 = vmatprep.subr.mxu0 0.0
  %1620 = vmatpush1.msra.mxu0 0.0
  %1621 = vmatprep.subr.mxu0 0.0
  %1622 = vmatpush1.msra.mxu0 0.0
  %1623 = vmatprep.subr.mxu0 0.0
  %1624 = vmatpush1.msra.mxu0 0.0
  %1625 = vmatprep.subr.mxu0 0.0
  %1626 = vmatpush1.msra.mxu0 0.0
  %1627 = vmatprep.subr.mxu0 0.0
  %1628 = vmatpush1.msra.mxu0 0.0
  %1629 = vmatprep.subr.mxu0 0.0
  %1630 = vmatpush1.msra.mxu0 0.0
  %1631 = vmatprep.subr.mxu0 0.0
  %1632 = vmatpush1.msra.mxu0 0.0
  %1633 = vmatprep.subr.mxu0 0.0
  %1634 = vmatpush1.msra.mxu0 0.0
  %1635 = vmatprep.subr.mxu0 0.0
  %1636 = vmatpush1.msra.mxu0 0.0
  %1637 = vmatprep.subr.mxu0 0.0
  %1638 = vmatpush1.msra.mxu0 0.0
  %1639 = vmatprep.subr.mxu0 0.0
  %1640 = vmatpush1.msra.mxu0 0.0
  %1641 = vmatprep.mubr.f32.mxu0 0.0
  %1642 = vmatmul.mubr.f32.gmra.mrb[0].mxu0 %v1142
  %v1643 = vpop.f32.mrb[0].mxu0
  %v1644 = vadd.f32 0.0, %v1643
  %v1645 = vpop.f32.mrb[0].mxu0
  %v1646 = vadd.f32 0.0, %v1645
  %1647 = vdwg.mxu0
  %v1648 = vadd.f32 %v1438, %v1573
  %v1649 = vadd.f32 %v1439, %v1575
  %v1650 = vadd.f32 %v1440, %v1644
  %v1651 = vadd.f32 %v1441, %v1646
  %v1652 = vxor.u32 %v1648, 2147483648
  %v1653 = vmul.f32 %v1652, 1.442695
  %v1654 = vpow.pop %v1653
  %v1655 = vadd.f32 %v1654, 1.0
  %v1656 = vrcp.pop %v1655
  %v1657 = vmul.f32 1.0, %v1656
  %v1658 = vxor.u32 %v1649, 2147483648
  %v1659 = vmul.f32 %v1658, 1.442695
  %v1660 = vpow.pop %v1659
  %v1661 = vadd.f32 %v1660, 1.0
  %v1662 = vrcp.pop %v1661
  %v1663 = vmul.f32 1.0, %v1662
  %v1664 = vtanh.pop %v1650
  %v1665 = vxor.u32 %v1651, 2147483648
  %v1666 = vmul.f32 %v1665, 1.442695
  %v1667 = vpow.pop %v1666
  %v1668 = vadd.f32 %v1667, 1.0
  %v1669 = vrcp.pop %v1668
  %v1670 = vmul.f32 1.0, %v1669
  %v1671 = vmul.f32 %v1663, %v1140
  %v1672 = vmul.f32 %v1657, %v1664
  %v1673 = vadd.f32 %v1671, %v1672
  %v1674 = vtanh.pop %v1673
  %v1675 = vmul.f32 %v1670, %v1674
  %v1676 = vld [vmem:[%s4] sm:$0xff]
  %v1677 = vld [vmem:[%s4 + $0x8] sm:$0xff]
  %v1678 = vld [vmem:[%s4 + $0x10] sm:$0xff]
  %v1679 = vld [vmem:[%s4 + $0x18] sm:$0xff]
  %v1680 = vld [vmem:[%s4 + $0x20] sm:$0xff]
  %v1681 = vld [vmem:[%s4 + $0x28] sm:$0xff]
  %v1682 = vld [vmem:[%s4 + $0x30] sm:$0xff]
  %v1683 = vld [vmem:[%s4 + $0x38] sm:$0xff]
  %v1684 = vld [vmem:[%s4 + $0x40] sm:$0xff]
  %v1685 = vld [vmem:[%s4 + $0x48] sm:$0xff]
  %v1686 = vld [vmem:[%s4 + $0x50] sm:$0xff]
  %v1687 = vld [vmem:[%s4 + $0x58] sm:$0xff]
  %v1688 = vld [vmem:[%s4 + $0x60] sm:$0xff]
  %v1689 = vld [vmem:[%s4 + $0x68] sm:$0xff]
  %v1690 = vld [vmem:[%s4 + $0x70] sm:$0xff]
  %v1691 = vld [vmem:[%s4 + $0x78] sm:$0xff]
  %v1692 = vld [vmem:[%s4 + $0x80] sm:$0xff]
  %v1693 = vld [vmem:[%s4 + $0x88] sm:$0xff]
  %v1694 = vld [vmem:[%s4 + $0x90] sm:$0xff]
  %v1695 = vld [vmem:[%s4 + $0x98] sm:$0xff]
  %v1696 = vld [vmem:[%s4 + $0xa0] sm:$0xff]
  %v1697 = vld [vmem:[%s4 + $0xa8] sm:$0xff]
  %v1698 = vld [vmem:[%s4 + $0xb0] sm:$0xff]
  %v1699 = vld [vmem:[%s4 + $0xb8] sm:$0xff]
  %v1700 = vld [vmem:[%s4 + $0xc0] sm:$0xff]
  %v1701 = vld [vmem:[%s4 + $0xc8] sm:$0xff]
  %v1702 = vld [vmem:[%s4 + $0xd0] sm:$0xff]
  %v1703 = vld [vmem:[%s4 + $0xd8] sm:$0xff]
  %v1704 = vld [vmem:[%s4 + $0xe0] sm:$0xff]
  %v1705 = vld [vmem:[%s4 + $0xe8] sm:$0xff]
  %v1706 = vld [vmem:[%s4 + $0xf0] sm:$0xff]
  %v1707 = vld [vmem:[%s4 + $0xf8] sm:$0xff]
  %v1708 = vld [vmem:[%s4 + $0x100] sm:$0xff]
  %v1709 = vld [vmem:[%s4 + $0x108] sm:$0xff]
  %v1710 = vld [vmem:[%s4 + $0x110] sm:$0xff]
  %v1711 = vld [vmem:[%s4 + $0x118] sm:$0xff]
  %v1712 = vld [vmem:[%s4 + $0x120] sm:$0xff]
  %v1713 = vld [vmem:[%s4 + $0x128] sm:$0xff]
  %v1714 = vld [vmem:[%s4 + $0x130] sm:$0xff]
  %v1715 = vld [vmem:[%s4 + $0x138] sm:$0xff]
  %v1716 = vld [vmem:[%s4 + $0x140] sm:$0xff]
  %v1717 = vld [vmem:[%s4 + $0x148] sm:$0xff]
  %v1718 = vld [vmem:[%s4 + $0x150] sm:$0xff]
  %v1719 = vld [vmem:[%s4 + $0x158] sm:$0xff]
  %v1720 = vld [vmem:[%s4 + $0x160] sm:$0xff]
  %v1721 = vld [vmem:[%s4 + $0x168] sm:$0xff]
  %v1722 = vld [vmem:[%s4 + $0x170] sm:$0xff]
  %v1723 = vld [vmem:[%s4 + $0x178] sm:$0xff]
  %v1724 = vld [vmem:[%s4 + $0x180] sm:$0xff]
  %v1725 = vld [vmem:[%s4 + $0x188] sm:$0xff]
  %v1726 = vld [vmem:[%s4 + $0x190] sm:$0xff]
  %v1727 = vld [vmem:[%s4 + $0x198] sm:$0xff]
  %v1728 = vld [vmem:[%s4 + $0x1a0] sm:$0xff]
  %v1729 = vld [vmem:[%s4 + $0x1a8] sm:$0xff]
  %v1730 = vld [vmem:[%s4 + $0x1b0] sm:$0xff]
  %v1731 = vld [vmem:[%s4 + $0x1b8] sm:$0xff]
  %v1732 = vld [vmem:[%s4 + $0x1c0] sm:$0xff]
  %v1733 = vld [vmem:[%s4 + $0x1c8] sm:$0xff]
  %v1734 = vld [vmem:[%s4 + $0x1d0] sm:$0xff]
  %v1735 = vld [vmem:[%s4 + $0x1d8] sm:$0xff]
  %v1736 = vld [vmem:[%s4 + $0x1e0] sm:$0xff]
  %v1737 = vld [vmem:[%s4 + $0x1e8] sm:$0xff]
  %v1738 = vld [vmem:[%s4 + $0x1f0] sm:$0xff]
  %v1739 = vld [vmem:[%s4 + $0x1f8] sm:$0xff]
  %v1740 = vld [vmem:[%s4 + $0x200] sm:$0xff]
  %v1741 = vld [vmem:[%s4 + $0x208] sm:$0xff]
  %v1742 = vld [vmem:[%s4 + $0x210] sm:$0xff]
  %v1743 = vld [vmem:[%s4 + $0x218] sm:$0xff]
  %v1744 = vld [vmem:[%s4 + $0x220] sm:$0xff]
  %v1745 = vld [vmem:[%s4 + $0x228] sm:$0xff]
  %v1746 = vld [vmem:[%s4 + $0x230] sm:$0xff]
  %v1747 = vld [vmem:[%s4 + $0x238] sm:$0xff]
  %v1748 = vld [vmem:[%s4 + $0x240] sm:$0xff]
  %v1749 = vld [vmem:[%s4 + $0x248] sm:$0xff]
  %v1750 = vld [vmem:[%s4 + $0x250] sm:$0xff]
  %v1751 = vld [vmem:[%s4 + $0x258] sm:$0xff]
  %v1752 = vld [vmem:[%s4 + $0x260] sm:$0xff]
  %v1753 = vld [vmem:[%s4 + $0x268] sm:$0xff]
  %v1754 = vld [vmem:[%s4 + $0x270] sm:$0xff]
  %v1755 = vld [vmem:[%s4 + $0x278] sm:$0xff]
  %v1756 = vld [vmem:[%s4 + $0x280] sm:$0xff]
  %v1757 = vld [vmem:[%s4 + $0x288] sm:$0xff]
  %v1758 = vld [vmem:[%s4 + $0x290] sm:$0xff]
  %v1759 = vld [vmem:[%s4 + $0x298] sm:$0xff]
  %v1760 = vld [vmem:[%s4 + $0x2a0] sm:$0xff]
  %v1761 = vld [vmem:[%s4 + $0x2a8] sm:$0xff]
  %v1762 = vld [vmem:[%s4 + $0x2b0] sm:$0xff]
  %v1763 = vld [vmem:[%s4 + $0x2b8] sm:$0xff]
  %v1764 = vld [vmem:[%s4 + $0x2c0] sm:$0xff]
  %v1765 = vld [vmem:[%s4 + $0x2c8] sm:$0xff]
  %v1766 = vld [vmem:[%s4 + $0x2d0] sm:$0xff]
  %v1767 = vld [vmem:[%s4 + $0x2d8] sm:$0xff]
  %v1768 = vld [vmem:[%s4 + $0x2e0] sm:$0xff]
  %v1769 = vld [vmem:[%s4 + $0x2e8] sm:$0xff]
  %v1770 = vld [vmem:[%s4 + $0x2f0] sm:$0xff]
  %v1771 = vld [vmem:[%s4 + $0x2f8] sm:$0xff]
  %v1772 = vld [vmem:[%s4 + $0x300] sm:$0xff]
  %v1773 = vld [vmem:[%s4 + $0x308] sm:$0xff]
  %v1774 = vld [vmem:[%s4 + $0x310] sm:$0xff]
  %v1775 = vld [vmem:[%s4 + $0x318] sm:$0xff]
  %v1776 = vld [vmem:[%s4 + $0x320] sm:$0xff]
  %v1777 = vld [vmem:[%s4 + $0x328] sm:$0xff]
  %v1778 = vld [vmem:[%s4 + $0x330] sm:$0xff]
  %v1779 = vld [vmem:[%s4 + $0x338] sm:$0xff]
  %v1780 = vld [vmem:[%s4 + $0x340] sm:$0xff]
  %v1781 = vld [vmem:[%s4 + $0x348] sm:$0xff]
  %v1782 = vld [vmem:[%s4 + $0x350] sm:$0xff]
  %v1783 = vld [vmem:[%s4 + $0x358] sm:$0xff]
  %v1784 = vld [vmem:[%s4 + $0x360] sm:$0xff]
  %v1785 = vld [vmem:[%s4 + $0x368] sm:$0xff]
  %v1786 = vld [vmem:[%s4 + $0x370] sm:$0xff]
  %v1787 = vld [vmem:[%s4 + $0x378] sm:$0xff]
  %v1788 = vld [vmem:[%s4 + $0x380] sm:$0xff]
  %v1789 = vld [vmem:[%s4 + $0x388] sm:$0xff]
  %v1790 = vld [vmem:[%s4 + $0x390] sm:$0xff]
  %v1791 = vld [vmem:[%s4 + $0x398] sm:$0xff]
  %v1792 = vld [vmem:[%s4 + $0x3a0] sm:$0xff]
  %v1793 = vld [vmem:[%s4 + $0x3a8] sm:$0xff]
  %v1794 = vld [vmem:[%s4 + $0x3b0] sm:$0xff]
  %v1795 = vld [vmem:[%s4 + $0x3b8] sm:$0xff]
  %v1796 = vld [vmem:[%s4 + $0x3c0] sm:$0xff]
  %v1797 = vld [vmem:[%s4 + $0x3c8] sm:$0xff]
  %v1798 = vld [vmem:[%s4 + $0x3d0] sm:$0xff]
  %v1799 = vld [vmem:[%s4 + $0x3d8] sm:$0xff]
  %v1800 = vld [vmem:[%s4 + $0x3e0] sm:$0xff]
  %v1801 = vld [vmem:[%s4 + $0x3e8] sm:$0xff]
  %v1802 = vld [vmem:[%s4 + $0x3f0] sm:$0xff]
  %v1803 = vld [vmem:[%s4 + $0x3f8] sm:$0xff]
  %1804 = vmatprep.subr.mxu0 %v1677
  %1805 = vmatpush1.msra.mxu0 %v1676
  %1806 = vmatprep.subr.mxu0 %v1681
  %1807 = vmatpush1.msra.mxu0 %v1680
  %1808 = vmatprep.subr.mxu0 %v1685
  %1809 = vmatpush1.msra.mxu0 %v1684
  %1810 = vmatprep.subr.mxu0 %v1689
  %1811 = vmatpush1.msra.mxu0 %v1688
  %1812 = vmatprep.subr.mxu0 %v1693
  %1813 = vmatpush1.msra.mxu0 %v1692
  %1814 = vmatprep.subr.mxu0 %v1697
  %1815 = vmatpush1.msra.mxu0 %v1696
  %1816 = vmatprep.subr.mxu0 %v1701
  %1817 = vmatpush1.msra.mxu0 %v1700
  %1818 = vmatprep.subr.mxu0 %v1705
  %1819 = vmatpush1.msra.mxu0 %v1704
  %1820 = vmatprep.subr.mxu0 %v1709
  %1821 = vmatpush1.msra.mxu0 %v1708
  %1822 = vmatprep.subr.mxu0 %v1713
  %1823 = vmatpush1.msra.mxu0 %v1712
  %1824 = vmatprep.subr.mxu0 %v1717
  %1825 = vmatpush1.msra.mxu0 %v1716
  %1826 = vmatprep.subr.mxu0 %v1721
  %1827 = vmatpush1.msra.mxu0 %v1720
  %1828 = vmatprep.subr.mxu0 %v1725
  %1829 = vmatpush1.msra.mxu0 %v1724
  %1830 = vmatprep.subr.mxu0 %v1729
  %1831 = vmatpush1.msra.mxu0 %v1728
  %1832 = vmatprep.subr.mxu0 %v1733
  %1833 = vmatpush1.msra.mxu0 %v1732
  %1834 = vmatprep.subr.mxu0 %v1737
  %1835 = vmatpush1.msra.mxu0 %v1736
  %1836 = vmatprep.subr.mxu0 %v1741
  %1837 = vmatpush1.msra.mxu0 %v1740
  %1838 = vmatprep.subr.mxu0 %v1745
  %1839 = vmatpush1.msra.mxu0 %v1744
  %1840 = vmatprep.subr.mxu0 %v1749
  %1841 = vmatpush1.msra.mxu0 %v1748
  %1842 = vmatprep.subr.mxu0 %v1753
  %1843 = vmatpush1.msra.mxu0 %v1752
  %1844 = vmatprep.subr.mxu0 %v1757
  %1845 = vmatpush1.msra.mxu0 %v1756
  %1846 = vmatprep.subr.mxu0 %v1761
  %1847 = vmatpush1.msra.mxu0 %v1760
  %1848 = vmatprep.subr.mxu0 %v1765
  %1849 = vmatpush1.msra.mxu0 %v1764
  %1850 = vmatprep.subr.mxu0 %v1769
  %1851 = vmatpush1.msra.mxu0 %v1768
  %1852 = vmatprep.subr.mxu0 %v1773
  %1853 = vmatpush1.msra.mxu0 %v1772
  %1854 = vmatprep.subr.mxu0 %v1777
  %1855 = vmatpush1.msra.mxu0 %v1776
  %1856 = vmatprep.subr.mxu0 %v1781
  %1857 = vmatpush1.msra.mxu0 %v1780
  %1858 = vmatprep.subr.mxu0 %v1785
  %1859 = vmatpush1.msra.mxu0 %v1784
  %1860 = vmatprep.subr.mxu0 %v1789
  %1861 = vmatpush1.msra.mxu0 %v1788
  %1862 = vmatprep.subr.mxu0 %v1793
  %1863 = vmatpush1.msra.mxu0 %v1792
  %1864 = vmatprep.subr.mxu0 %v1797
  %1865 = vmatpush1.msra.mxu0 %v1796
  %1866 = vmatprep.subr.mxu0 %v1801
  %1867 = vmatpush1.msra.mxu0 %v1800
  %1868 = vmatprep.mubr.f32.mxu0 %v1436
  %1869 = vmatmul.mubr.f32.gmra.mrb[0].mxu0 %v1675
  %v1870 = vpop.f32.mrb[0].mxu0
  %v1871 = vadd.f32 %v355, %v1870
  %v1872 = vpop.f32.mrb[0].mxu0
  %v1873 = vadd.f32 %v359, %v1872
  %1874 = vdwg.mxu0
  %1875 = vmatprep.subr.mxu0 %v1679
  %1876 = vmatpush1.msra.mxu0 %v1678
  %1877 = vmatprep.subr.mxu0 %v1683
  %1878 = vmatpush1.msra.mxu0 %v1682
  %1879 = vmatprep.subr.mxu0 %v1687
  %1880 = vmatpush1.msra.mxu0 %v1686
  %1881 = vmatprep.subr.mxu0 %v1691
  %1882 = vmatpush1.msra.mxu0 %v1690
  %1883 = vmatprep.subr.mxu0 %v1695
  %1884 = vmatpush1.msra.mxu0 %v1694
  %1885 = vmatprep.subr.mxu0 %v1699
  %1886 = vmatpush1.msra.mxu0 %v1698
  %1887 = vmatprep.subr.mxu0 %v1703
  %1888 = vmatpush1.msra.mxu0 %v1702
  %1889 = vmatprep.subr.mxu0 %v1707
  %1890 = vmatpush1.msra.mxu0 %v1706
  %1891 = vmatprep.subr.mxu0 %v1711
  %1892 = vmatpush1.msra.mxu0 %v1710
  %1893 = vmatprep.subr.mxu0 %v1715
  %1894 = vmatpush1.msra.mxu0 %v1714
  %1895 = vmatprep.subr.mxu0 %v1719
  %1896 = vmatpush1.msra.mxu0 %v1718
  %1897 = vmatprep.subr.mxu0 %v1723
  %1898 = vmatpush1.msra.mxu0 %v1722
  %1899 = vmatprep.subr.mxu0 %v1727
  %1900 = vmatpush1.msra.mxu0 %v1726
  %1901 = vmatprep.subr.mxu0 %v1731
  %1902 = vmatpush1.msra.mxu0 %v1730
  %1903 = vmatprep.subr.mxu0 %v1735
  %1904 = vmatpush1.msra.mxu0 %v1734
  %1905 = vmatprep.subr.mxu0 %v1739
  %1906 = vmatpush1.msra.mxu0 %v1738
  %1907 = vmatprep.subr.mxu0 %v1743
  %1908 = vmatpush1.msra.mxu0 %v1742
  %1909 = vmatprep.subr.mxu0 %v1747
  %1910 = vmatpush1.msra.mxu0 %v1746
  %1911 = vmatprep.subr.mxu0 %v1751
  %1912 = vmatpush1.msra.mxu0 %v1750
  %1913 = vmatprep.subr.mxu0 %v1755
  %1914 = vmatpush1.msra.mxu0 %v1754
  %1915 = vmatprep.subr.mxu0 %v1759
  %1916 = vmatpush1.msra.mxu0 %v1758
  %1917 = vmatprep.subr.mxu0 %v1763
  %1918 = vmatpush1.msra.mxu0 %v1762
  %1919 = vmatprep.subr.mxu0 %v1767
  %1920 = vmatpush1.msra.mxu0 %v1766
  %1921 = vmatprep.subr.mxu0 %v1771
  %1922 = vmatpush1.msra.mxu0 %v1770
  %1923 = vmatprep.subr.mxu0 %v1775
  %1924 = vmatpush1.msra.mxu0 %v1774
  %1925 = vmatprep.subr.mxu0 %v1779
  %1926 = vmatpush1.msra.mxu0 %v1778
  %1927 = vmatprep.subr.mxu0 %v1783
  %1928 = vmatpush1.msra.mxu0 %v1782
  %1929 = vmatprep.subr.mxu0 %v1787
  %1930 = vmatpush1.msra.mxu0 %v1786
  %1931 = vmatprep.subr.mxu0 %v1791
  %1932 = vmatpush1.msra.mxu0 %v1790
  %1933 = vmatprep.subr.mxu0 %v1795
  %1934 = vmatpush1.msra.mxu0 %v1794
  %1935 = vmatprep.subr.mxu0 %v1799
  %1936 = vmatpush1.msra.mxu0 %v1798
  %1937 = vmatprep.subr.mxu0 %v1803
  %1938 = vmatpush1.msra.mxu0 %v1802
  %1939 = vmatprep.mubr.f32.mxu0 %v1436
  %1940 = vmatmul.mubr.f32.gmra.mrb[0].mxu0 %v1675
  %v1941 = vpop.f32.mrb[0].mxu0
  %v1942 = vadd.f32 %v363, %v1941
  %v1943 = vpop.f32.mrb[0].mxu0
  %v1944 = vadd.f32 %v367, %v1943
  %1945 = vdwg.mxu0
  %v1946 = vxor.u32 %v1871, 2147483648
  %v1947 = vmul.f32 %v1946, 1.442695
  %v1948 = vpow.pop %v1947
  %v1949 = vadd.f32 %v1948, 1.0
  %v1950 = vrcp.pop %v1949
  %v1951 = vmul.f32 1.0, %v1950
  %v1952 = vxor.u32 %v1873, 2147483648
  %v1953 = vmul.f32 %v1952, 1.442695
  %v1954 = vpow.pop %v1953
  %v1955 = vadd.f32 %v1954, 1.0
  %v1956 = vrcp.pop %v1955
  %v1957 = vmul.f32 1.0, %v1956
  %v1958 = vtanh.pop %v1942
  %v1959 = vxor.u32 %v1944, 2147483648
  %v1960 = vmul.f32 %v1959, 1.442695
  %v1961 = vpow.pop %v1960
  %v1962 = vadd.f32 %v1961, 1.0
  %v1963 = vrcp.pop %v1962
  %v1964 = vmul.f32 1.0, %v1963
  %v1965 = vmul.f32 %v1957, %v1434
  %v1966 = vmul.f32 %v1951, %v1958
  %v1967 = vadd.f32 %v1965, %v1966
  %v1968 = vtanh.pop %v1967
  %v1969 = vmul.f32 %v1964, %v1968
  %1970 = vst [vmem:[#allocation3 + $0x10] sm:$0xff] %v1969
  %v1971 = vld [vmem:[#allocation2 + $0x60] sm:$0xff]
  %v1972 = vld [vmem:[#allocation2 + $0x68] sm:$0xff]
  %v1973 = vld [vmem:[#allocation2 + $0x70] sm:$0xff]
  %v1974 = vld [vmem:[#allocation2 + $0x78] sm:$0xff]
  %v1975 = vld [vmem:[%s2] sm:$0xff]
  %v1976 = vld [vmem:[%s2 + $0x8] sm:$0xff]
  %v1977 = vld [vmem:[%s2 + $0x10] sm:$0xff]
  %v1978 = vld [vmem:[%s2 + $0x18] sm:$0xff]
  %v1979 = vld [vmem:[%s2 + $0x20] sm:$0xff]
  %v1980 = vld [vmem:[%s2 + $0x28] sm:$0xff]
  %v1981 = vld [vmem:[%s2 + $0x30] sm:$0xff]
  %v1982 = vld [vmem:[%s2 + $0x38] sm:$0xff]
  %v1983 = vld [vmem:[%s2 + $0x40] sm:$0xff]
  %v1984 = vld [vmem:[%s2 + $0x48] sm:$0xff]
  %v1985 = vld [vmem:[%s2 + $0x50] sm:$0xff]
  %v1986 = vld [vmem:[%s2 + $0x58] sm:$0xff]
  %v1987 = vld [vmem:[%s2 + $0x60] sm:$0xff]
  %v1988 = vld [vmem:[%s2 + $0x68] sm:$0xff]
  %v1989 = vld [vmem:[%s2 + $0x70] sm:$0xff]
  %v1990 = vld [vmem:[%s2 + $0x78] sm:$0xff]
  %v1991 = vld [vmem:[%s2 + $0x80] sm:$0xff]
  %v1992 = vld [vmem:[%s2 + $0x88] sm:$0xff]
  %v1993 = vld [vmem:[%s2 + $0x90] sm:$0xff]
  %v1994 = vld [vmem:[%s2 + $0x98] sm:$0xff]
  %v1995 = vld [vmem:[%s2 + $0xa0] sm:$0xff]
  %v1996 = vld [vmem:[%s2 + $0xa8] sm:$0xff]
  %v1997 = vld [vmem:[%s2 + $0xb0] sm:$0xff]
  %v1998 = vld [vmem:[%s2 + $0xb8] sm:$0xff]
  %v1999 = vld [vmem:[%s2 + $0xc0] sm:$0xff]
  %v2000 = vld [vmem:[%s2 + $0xc8] sm:$0xff]
  %v2001 = vld [vmem:[%s2 + $0xd0] sm:$0xff]
  %v2002 = vld [vmem:[%s2 + $0xd8] sm:$0xff]
  %v2003 = vld [vmem:[%s2 + $0xe0] sm:$0xff]
  %v2004 = vld [vmem:[%s2 + $0xe8] sm:$0xff]
  %v2005 = vld [vmem:[%s2 + $0xf0] sm:$0xff]
  %v2006 = vld [vmem:[%s2 + $0xf8] sm:$0xff]
  %v2007 = vld [vmem:[%s2 + $0x100] sm:$0xff]
  %v2008 = vld [vmem:[%s2 + $0x108] sm:$0xff]
  %v2009 = vld [vmem:[%s2 + $0x110] sm:$0xff]
  %v2010 = vld [vmem:[%s2 + $0x118] sm:$0xff]
  %v2011 = vld [vmem:[%s2 + $0x120] sm:$0xff]
  %v2012 = vld [vmem:[%s2 + $0x128] sm:$0xff]
  %v2013 = vld [vmem:[%s2 + $0x130] sm:$0xff]
  %v2014 = vld [vmem:[%s2 + $0x138] sm:$0xff]
  %v2015 = vld [vmem:[%s2 + $0x140] sm:$0xff]
  %v2016 = vld [vmem:[%s2 + $0x148] sm:$0xff]
  %v2017 = vld [vmem:[%s2 + $0x150] sm:$0xff]
  %v2018 = vld [vmem:[%s2 + $0x158] sm:$0xff]
  %v2019 = vld [vmem:[%s2 + $0x160] sm:$0xff]
  %v2020 = vld [vmem:[%s2 + $0x168] sm:$0xff]
  %v2021 = vld [vmem:[%s2 + $0x170] sm:$0xff]
  %v2022 = vld [vmem:[%s2 + $0x178] sm:$0xff]
  %v2023 = vld [vmem:[%s2 + $0x180] sm:$0xff]
  %v2024 = vld [vmem:[%s2 + $0x188] sm:$0xff]
  %v2025 = vld [vmem:[%s2 + $0x190] sm:$0xff]
  %v2026 = vld [vmem:[%s2 + $0x198] sm:$0xff]
  %v2027 = vld [vmem:[%s2 + $0x1a0] sm:$0xff]
  %v2028 = vld [vmem:[%s2 + $0x1a8] sm:$0xff]
  %v2029 = vld [vmem:[%s2 + $0x1b0] sm:$0xff]
  %v2030 = vld [vmem:[%s2 + $0x1b8] sm:$0xff]
  %v2031 = vld [vmem:[%s2 + $0x1c0] sm:$0xff]
  %v2032 = vld [vmem:[%s2 + $0x1c8] sm:$0xff]
  %v2033 = vld [vmem:[%s2 + $0x1d0] sm:$0xff]
  %v2034 = vld [vmem:[%s2 + $0x1d8] sm:$0xff]
  %v2035 = vld [vmem:[%s2 + $0x1e0] sm:$0xff]
  %v2036 = vld [vmem:[%s2 + $0x1e8] sm:$0xff]
  %v2037 = vld [vmem:[%s2 + $0x1f0] sm:$0xff]
  %v2038 = vld [vmem:[%s2 + $0x1f8] sm:$0xff]
  %2039 = vmatprep.subr.mxu0 %v1976
  %2040 = vmatpush1.msra.mxu0 %v1975
  %2041 = vmatprep.subr.mxu0 %v1980
  %2042 = vmatpush1.msra.mxu0 %v1979
  %2043 = vmatprep.subr.mxu0 %v1984
  %2044 = vmatpush1.msra.mxu0 %v1983
  %2045 = vmatprep.subr.mxu0 %v1988
  %2046 = vmatpush1.msra.mxu0 %v1987
  %2047 = vmatprep.subr.mxu0 %v1992
  %2048 = vmatpush1.msra.mxu0 %v1991
  %2049 = vmatprep.subr.mxu0 %v1996
  %2050 = vmatpush1.msra.mxu0 %v1995
  %2051 = vmatprep.subr.mxu0 %v2000
  %2052 = vmatpush1.msra.mxu0 %v1999
  %2053 = vmatprep.subr.mxu0 %v2004
  %2054 = vmatpush1.msra.mxu0 %v2003
  %2055 = vmatprep.subr.mxu0 %v2008
  %2056 = vmatpush1.msra.mxu0 %v2007
  %2057 = vmatprep.subr.mxu0 %v2012
  %2058 = vmatpush1.msra.mxu0 %v2011
  %2059 = vmatprep.subr.mxu0 %v2016
  %2060 = vmatpush1.msra.mxu0 %v2015
  %2061 = vmatprep.subr.mxu0 %v2020
  %2062 = vmatpush1.msra.mxu0 %v2019
  %2063 = vmatprep.subr.mxu0 %v2024
  %2064 = vmatpush1.msra.mxu0 %v2023
  %2065 = vmatprep.subr.mxu0 %v2028
  %2066 = vmatpush1.msra.mxu0 %v2027
  %2067 = vmatprep.subr.mxu0 %v2032
  %2068 = vmatpush1.msra.mxu0 %v2031
  %2069 = vmatprep.subr.mxu0 %v2036
  %2070 = vmatpush1.msra.mxu0 %v2035
  %2071 = vmatprep.subr.mxu0 0.0
  %2072 = vmatpush1.msra.mxu0 0.0
  %2073 = vmatprep.subr.mxu0 0.0
  %2074 = vmatpush1.msra.mxu0 0.0
  %2075 = vmatprep.subr.mxu0 0.0
  %2076 = vmatpush1.msra.mxu0 0.0
  %2077 = vmatprep.subr.mxu0 0.0
  %2078 = vmatpush1.msra.mxu0 0.0
  %2079 = vmatprep.subr.mxu0 0.0
  %2080 = vmatpush1.msra.mxu0 0.0
  %2081 = vmatprep.subr.mxu0 0.0
  %2082 = vmatpush1.msra.mxu0 0.0
  %2083 = vmatprep.subr.mxu0 0.0
  %2084 = vmatpush1.msra.mxu0 0.0
  %2085 = vmatprep.subr.mxu0 0.0
  %2086 = vmatpush1.msra.mxu0 0.0
  %2087 = vmatprep.subr.mxu0 0.0
  %2088 = vmatpush1.msra.mxu0 0.0
  %2089 = vmatprep.subr.mxu0 0.0
  %2090 = vmatpush1.msra.mxu0 0.0
  %2091 = vmatprep.subr.mxu0 0.0
  %2092 = vmatpush1.msra.mxu0 0.0
  %2093 = vmatprep.subr.mxu0 0.0
  %2094 = vmatpush1.msra.mxu0 0.0
  %2095 = vmatprep.subr.mxu0 0.0
  %2096 = vmatpush1.msra.mxu0 0.0
  %2097 = vmatprep.subr.mxu0 0.0
  %2098 = vmatpush1.msra.mxu0 0.0
  %2099 = vmatprep.subr.mxu0 0.0
  %2100 = vmatpush1.msra.mxu0 0.0
  %2101 = vmatprep.subr.mxu0 0.0
  %2102 = vmatpush1.msra.mxu0 0.0
  %2103 = vmatprep.mubr.f32.mxu0 0.0
  %2104 = vmatmul.mubr.f32.gmra.mrb[0].mxu0 %v1675
  %v2105 = vpop.f32.mrb[0].mxu0
  %v2106 = vadd.f32 0.0, %v2105
  %v2107 = vpop.f32.mrb[0].mxu0
  %v2108 = vadd.f32 0.0, %v2107
  %2109 = vdwg.mxu0
  %2110 = vmatprep.subr.mxu0 %v1978
  %2111 = vmatpush1.msra.mxu0 %v1977
  %2112 = vmatprep.subr.mxu0 %v1982
  %2113 = vmatpush1.msra.mxu0 %v1981
  %2114 = vmatprep.subr.mxu0 %v1986
  %2115 = vmatpush1.msra.mxu0 %v1985
  %2116 = vmatprep.subr.mxu0 %v1990
  %2117 = vmatpush1.msra.mxu0 %v1989
  %2118 = vmatprep.subr.mxu0 %v1994
  %2119 = vmatpush1.msra.mxu0 %v1993
  %2120 = vmatprep.subr.mxu0 %v1998
  %2121 = vmatpush1.msra.mxu0 %v1997
  %2122 = vmatprep.subr.mxu0 %v2002
  %2123 = vmatpush1.msra.mxu0 %v2001
  %2124 = vmatprep.subr.mxu0 %v2006
  %2125 = vmatpush1.msra.mxu0 %v2005
  %2126 = vmatprep.subr.mxu0 %v2010
  %2127 = vmatpush1.msra.mxu0 %v2009
  %2128 = vmatprep.subr.mxu0 %v2014
  %2129 = vmatpush1.msra.mxu0 %v2013
  %2130 = vmatprep.subr.mxu0 %v2018
  %2131 = vmatpush1.msra.mxu0 %v2017
  %2132 = vmatprep.subr.mxu0 %v2022
  %2133 = vmatpush1.msra.mxu0 %v2021
  %2134 = vmatprep.subr.mxu0 %v2026
  %2135 = vmatpush1.msra.mxu0 %v2025
  %2136 = vmatprep.subr.mxu0 %v2030
  %2137 = vmatpush1.msra.mxu0 %v2029
  %2138 = vmatprep.subr.mxu0 %v2034
  %2139 = vmatpush1.msra.mxu0 %v2033
  %2140 = vmatprep.subr.mxu0 %v2038
  %2141 = vmatpush1.msra.mxu0 %v2037
  %2142 = vmatprep.subr.mxu0 0.0
  %2143 = vmatpush1.msra.mxu0 0.0
  %2144 = vmatprep.subr.mxu0 0.0
  %2145 = vmatpush1.msra.mxu0 0.0
  %2146 = vmatprep.subr.mxu0 0.0
  %2147 = vmatpush1.msra.mxu0 0.0
  %2148 = vmatprep.subr.mxu0 0.0
  %2149 = vmatpush1.msra.mxu0 0.0
  %2150 = vmatprep.subr.mxu0 0.0
  %2151 = vmatpush1.msra.mxu0 0.0
  %2152 = vmatprep.subr.mxu0 0.0
  %2153 = vmatpush1.msra.mxu0 0.0
  %2154 = vmatprep.subr.mxu0 0.0
  %2155 = vmatpush1.msra.mxu0 0.0
  %2156 = vmatprep.subr.mxu0 0.0
  %2157 = vmatpush1.msra.mxu0 0.0
  %2158 = vmatprep.subr.mxu0 0.0
  %2159 = vmatpush1.msra.mxu0 0.0
  %2160 = vmatprep.subr.mxu0 0.0
  %2161 = vmatpush1.msra.mxu0 0.0
  %2162 = vmatprep.subr.mxu0 0.0
  %2163 = vmatpush1.msra.mxu0 0.0
  %2164 = vmatprep.subr.mxu0 0.0
  %2165 = vmatpush1.msra.mxu0 0.0
  %2166 = vmatprep.subr.mxu0 0.0
  %2167 = vmatpush1.msra.mxu0 0.0
  %2168 = vmatprep.subr.mxu0 0.0
  %2169 = vmatpush1.msra.mxu0 0.0
  %2170 = vmatprep.subr.mxu0 0.0
  %2171 = vmatpush1.msra.mxu0 0.0
  %2172 = vmatprep.subr.mxu0 0.0
  %2173 = vmatpush1.msra.mxu0 0.0
  %2174 = vmatprep.mubr.f32.mxu0 0.0
  %2175 = vmatmul.mubr.f32.gmra.mrb[0].mxu0 %v1675
  %v2176 = vpop.f32.mrb[0].mxu0
  %v2177 = vadd.f32 0.0, %v2176
  %v2178 = vpop.f32.mrb[0].mxu0
  %v2179 = vadd.f32 0.0, %v2178
  %2180 = vdwg.mxu0
  %v2181 = vadd.f32 %v1971, %v2106
  %v2182 = vadd.f32 %v1972, %v2108
  %v2183 = vadd.f32 %v1973, %v2177
  %v2184 = vadd.f32 %v1974, %v2179
  %v2185 = vxor.u32 %v2181, 2147483648
  %v2186 = vmul.f32 %v2185, 1.442695
  %v2187 = vpow.pop %v2186
  %v2188 = vadd.f32 %v2187, 1.0
  %v2189 = vrcp.pop %v2188
  %v2190 = vmul.f32 1.0, %v2189
  %v2191 = vxor.u32 %v2182, 2147483648
  %v2192 = vmul.f32 %v2191, 1.442695
  %v2193 = vpow.pop %v2192
  %v2194 = vadd.f32 %v2193, 1.0
  %v2195 = vrcp.pop %v2194
  %v2196 = vmul.f32 1.0, %v2195
  %v2197 = vtanh.pop %v2183
  %v2198 = vxor.u32 %v2184, 2147483648
  %v2199 = vmul.f32 %v2198, 1.442695
  %v2200 = vpow.pop %v2199
  %v2201 = vadd.f32 %v2200, 1.0
  %v2202 = vrcp.pop %v2201
  %v2203 = vmul.f32 1.0, %v2202
  %v2204 = vmul.f32 %v2196, %v1673
  %v2205 = vmul.f32 %v2190, %v2197
  %v2206 = vadd.f32 %v2204, %v2205
  %v2207 = vtanh.pop %v2206
  %v2208 = vmul.f32 %v2203, %v2207
  %v2209 = vld [vmem:[%s4] sm:$0xff]
  %v2210 = vld [vmem:[%s4 + $0x8] sm:$0xff]
  %v2211 = vld [vmem:[%s4 + $0x10] sm:$0xff]
  %v2212 = vld [vmem:[%s4 + $0x18] sm:$0xff]
  %v2213 = vld [vmem:[%s4 + $0x20] sm:$0xff]
  %v2214 = vld [vmem:[%s4 + $0x28] sm:$0xff]
  %v2215 = vld [vmem:[%s4 + $0x30] sm:$0xff]
  %v2216 = vld [vmem:[%s4 + $0x38] sm:$0xff]
  %v2217 = vld [vmem:[%s4 + $0x40] sm:$0xff]
  %v2218 = vld [vmem:[%s4 + $0x48] sm:$0xff]
  %v2219 = vld [vmem:[%s4 + $0x50] sm:$0xff]
  %v2220 = vld [vmem:[%s4 + $0x58] sm:$0xff]
  %v2221 = vld [vmem:[%s4 + $0x60] sm:$0xff]
  %v2222 = vld [vmem:[%s4 + $0x68] sm:$0xff]
  %v2223 = vld [vmem:[%s4 + $0x70] sm:$0xff]
  %v2224 = vld [vmem:[%s4 + $0x78] sm:$0xff]
  %v2225 = vld [vmem:[%s4 + $0x80] sm:$0xff]
  %v2226 = vld [vmem:[%s4 + $0x88] sm:$0xff]
  %v2227 = vld [vmem:[%s4 + $0x90] sm:$0xff]
  %v2228 = vld [vmem:[%s4 + $0x98] sm:$0xff]
  %v2229 = vld [vmem:[%s4 + $0xa0] sm:$0xff]
  %v2230 = vld [vmem:[%s4 + $0xa8] sm:$0xff]
  %v2231 = vld [vmem:[%s4 + $0xb0] sm:$0xff]
  %v2232 = vld [vmem:[%s4 + $0xb8] sm:$0xff]
  %v2233 = vld [vmem:[%s4 + $0xc0] sm:$0xff]
  %v2234 = vld [vmem:[%s4 + $0xc8] sm:$0xff]
  %v2235 = vld [vmem:[%s4 + $0xd0] sm:$0xff]
  %v2236 = vld [vmem:[%s4 + $0xd8] sm:$0xff]
  %v2237 = vld [vmem:[%s4 + $0xe0] sm:$0xff]
  %v2238 = vld [vmem:[%s4 + $0xe8] sm:$0xff]
  %v2239 = vld [vmem:[%s4 + $0xf0] sm:$0xff]
  %v2240 = vld [vmem:[%s4 + $0xf8] sm:$0xff]
  %v2241 = vld [vmem:[%s4 + $0x100] sm:$0xff]
  %v2242 = vld [vmem:[%s4 + $0x108] sm:$0xff]
  %v2243 = vld [vmem:[%s4 + $0x110] sm:$0xff]
  %v2244 = vld [vmem:[%s4 + $0x118] sm:$0xff]
  %v2245 = vld [vmem:[%s4 + $0x120] sm:$0xff]
  %v2246 = vld [vmem:[%s4 + $0x128] sm:$0xff]
  %v2247 = vld [vmem:[%s4 + $0x130] sm:$0xff]
  %v2248 = vld [vmem:[%s4 + $0x138] sm:$0xff]
  %v2249 = vld [vmem:[%s4 + $0x140] sm:$0xff]
  %v2250 = vld [vmem:[%s4 + $0x148] sm:$0xff]
  %v2251 = vld [vmem:[%s4 + $0x150] sm:$0xff]
  %v2252 = vld [vmem:[%s4 + $0x158] sm:$0xff]
  %v2253 = vld [vmem:[%s4 + $0x160] sm:$0xff]
  %v2254 = vld [vmem:[%s4 + $0x168] sm:$0xff]
  %v2255 = vld [vmem:[%s4 + $0x170] sm:$0xff]
  %v2256 = vld [vmem:[%s4 + $0x178] sm:$0xff]
  %v2257 = vld [vmem:[%s4 + $0x180] sm:$0xff]
  %v2258 = vld [vmem:[%s4 + $0x188] sm:$0xff]
  %v2259 = vld [vmem:[%s4 + $0x190] sm:$0xff]
  %v2260 = vld [vmem:[%s4 + $0x198] sm:$0xff]
  %v2261 = vld [vmem:[%s4 + $0x1a0] sm:$0xff]
  %v2262 = vld [vmem:[%s4 + $0x1a8] sm:$0xff]
  %v2263 = vld [vmem:[%s4 + $0x1b0] sm:$0xff]
  %v2264 = vld [vmem:[%s4 + $0x1b8] sm:$0xff]
  %v2265 = vld [vmem:[%s4 + $0x1c0] sm:$0xff]
  %v2266 = vld [vmem:[%s4 + $0x1c8] sm:$0xff]
  %v2267 = vld [vmem:[%s4 + $0x1d0] sm:$0xff]
  %v2268 = vld [vmem:[%s4 + $0x1d8] sm:$0xff]
  %v2269 = vld [vmem:[%s4 + $0x1e0] sm:$0xff]
  %v2270 = vld [vmem:[%s4 + $0x1e8] sm:$0xff]
  %v2271 = vld [vmem:[%s4 + $0x1f0] sm:$0xff]
  %v2272 = vld [vmem:[%s4 + $0x1f8] sm:$0xff]
  %v2273 = vld [vmem:[%s4 + $0x200] sm:$0xff]
  %v2274 = vld [vmem:[%s4 + $0x208] sm:$0xff]
  %v2275 = vld [vmem:[%s4 + $0x210] sm:$0xff]
  %v2276 = vld [vmem:[%s4 + $0x218] sm:$0xff]
  %v2277 = vld [vmem:[%s4 + $0x220] sm:$0xff]
  %v2278 = vld [vmem:[%s4 + $0x228] sm:$0xff]
  %v2279 = vld [vmem:[%s4 + $0x230] sm:$0xff]
  %v2280 = vld [vmem:[%s4 + $0x238] sm:$0xff]
  %v2281 = vld [vmem:[%s4 + $0x240] sm:$0xff]
  %v2282 = vld [vmem:[%s4 + $0x248] sm:$0xff]
  %v2283 = vld [vmem:[%s4 + $0x250] sm:$0xff]
  %v2284 = vld [vmem:[%s4 + $0x258] sm:$0xff]
  %v2285 = vld [vmem:[%s4 + $0x260] sm:$0xff]
  %v2286 = vld [vmem:[%s4 + $0x268] sm:$0xff]
  %v2287 = vld [vmem:[%s4 + $0x270] sm:$0xff]
  %v2288 = vld [vmem:[%s4 + $0x278] sm:$0xff]
  %v2289 = vld [vmem:[%s4 + $0x280] sm:$0xff]
  %v2290 = vld [vmem:[%s4 + $0x288] sm:$0xff]
  %v2291 = vld [vmem:[%s4 + $0x290] sm:$0xff]
  %v2292 = vld [vmem:[%s4 + $0x298] sm:$0xff]
  %v2293 = vld [vmem:[%s4 + $0x2a0] sm:$0xff]
  %v2294 = vld [vmem:[%s4 + $0x2a8] sm:$0xff]
  %v2295 = vld [vmem:[%s4 + $0x2b0] sm:$0xff]
  %v2296 = vld [vmem:[%s4 + $0x2b8] sm:$0xff]
  %v2297 = vld [vmem:[%s4 + $0x2c0] sm:$0xff]
  %v2298 = vld [vmem:[%s4 + $0x2c8] sm:$0xff]
  %v2299 = vld [vmem:[%s4 + $0x2d0] sm:$0xff]
  %v2300 = vld [vmem:[%s4 + $0x2d8] sm:$0xff]
  %v2301 = vld [vmem:[%s4 + $0x2e0] sm:$0xff]
  %v2302 = vld [vmem:[%s4 + $0x2e8] sm:$0xff]
  %v2303 = vld [vmem:[%s4 + $0x2f0] sm:$0xff]
  %v2304 = vld [vmem:[%s4 + $0x2f8] sm:$0xff]
  %v2305 = vld [vmem:[%s4 + $0x300] sm:$0xff]
  %v2306 = vld [vmem:[%s4 + $0x308] sm:$0xff]
  %v2307 = vld [vmem:[%s4 + $0x310] sm:$0xff]
  %v2308 = vld [vmem:[%s4 + $0x318] sm:$0xff]
  %v2309 = vld [vmem:[%s4 + $0x320] sm:$0xff]
  %v2310 = vld [vmem:[%s4 + $0x328] sm:$0xff]
  %v2311 = vld [vmem:[%s4 + $0x330] sm:$0xff]
  %v2312 = vld [vmem:[%s4 + $0x338] sm:$0xff]
  %v2313 = vld [vmem:[%s4 + $0x340] sm:$0xff]
  %v2314 = vld [vmem:[%s4 + $0x348] sm:$0xff]
  %v2315 = vld [vmem:[%s4 + $0x350] sm:$0xff]
  %v2316 = vld [vmem:[%s4 + $0x358] sm:$0xff]
  %v2317 = vld [vmem:[%s4 + $0x360] sm:$0xff]
  %v2318 = vld [vmem:[%s4 + $0x368] sm:$0xff]
  %v2319 = vld [vmem:[%s4 + $0x370] sm:$0xff]
  %v2320 = vld [vmem:[%s4 + $0x378] sm:$0xff]
  %v2321 = vld [vmem:[%s4 + $0x380] sm:$0xff]
  %v2322 = vld [vmem:[%s4 + $0x388] sm:$0xff]
  %v2323 = vld [vmem:[%s4 + $0x390] sm:$0xff]
  %v2324 = vld [vmem:[%s4 + $0x398] sm:$0xff]
  %v2325 = vld [vmem:[%s4 + $0x3a0] sm:$0xff]
  %v2326 = vld [vmem:[%s4 + $0x3a8] sm:$0xff]
  %v2327 = vld [vmem:[%s4 + $0x3b0] sm:$0xff]
  %v2328 = vld [vmem:[%s4 + $0x3b8] sm:$0xff]
  %v2329 = vld [vmem:[%s4 + $0x3c0] sm:$0xff]
  %v2330 = vld [vmem:[%s4 + $0x3c8] sm:$0xff]
  %v2331 = vld [vmem:[%s4 + $0x3d0] sm:$0xff]
  %v2332 = vld [vmem:[%s4 + $0x3d8] sm:$0xff]
  %v2333 = vld [vmem:[%s4 + $0x3e0] sm:$0xff]
  %v2334 = vld [vmem:[%s4 + $0x3e8] sm:$0xff]
  %v2335 = vld [vmem:[%s4 + $0x3f0] sm:$0xff]
  %v2336 = vld [vmem:[%s4 + $0x3f8] sm:$0xff]
  %2337 = vmatprep.subr.mxu0 %v2210
  %2338 = vmatpush1.msra.mxu0 %v2209
  %2339 = vmatprep.subr.mxu0 %v2214
  %2340 = vmatpush1.msra.mxu0 %v2213
  %2341 = vmatprep.subr.mxu0 %v2218
  %2342 = vmatpush1.msra.mxu0 %v2217
  %2343 = vmatprep.subr.mxu0 %v2222
  %2344 = vmatpush1.msra.mxu0 %v2221
  %2345 = vmatprep.subr.mxu0 %v2226
  %2346 = vmatpush1.msra.mxu0 %v2225
  %2347 = vmatprep.subr.mxu0 %v2230
  %2348 = vmatpush1.msra.mxu0 %v2229
  %2349 = vmatprep.subr.mxu0 %v2234
  %2350 = vmatpush1.msra.mxu0 %v2233
  %2351 = vmatprep.subr.mxu0 %v2238
  %2352 = vmatpush1.msra.mxu0 %v2237
  %2353 = vmatprep.subr.mxu0 %v2242
  %2354 = vmatpush1.msra.mxu0 %v2241
  %2355 = vmatprep.subr.mxu0 %v2246
  %2356 = vmatpush1.msra.mxu0 %v2245
  %2357 = vmatprep.subr.mxu0 %v2250
  %2358 = vmatpush1.msra.mxu0 %v2249
  %2359 = vmatprep.subr.mxu0 %v2254
  %2360 = vmatpush1.msra.mxu0 %v2253
  %2361 = vmatprep.subr.mxu0 %v2258
  %2362 = vmatpush1.msra.mxu0 %v2257
  %2363 = vmatprep.subr.mxu0 %v2262
  %2364 = vmatpush1.msra.mxu0 %v2261
  %2365 = vmatprep.subr.mxu0 %v2266
  %2366 = vmatpush1.msra.mxu0 %v2265
  %2367 = vmatprep.subr.mxu0 %v2270
  %2368 = vmatpush1.msra.mxu0 %v2269
  %2369 = vmatprep.subr.mxu0 %v2274
  %2370 = vmatpush1.msra.mxu0 %v2273
  %2371 = vmatprep.subr.mxu0 %v2278
  %2372 = vmatpush1.msra.mxu0 %v2277
  %2373 = vmatprep.subr.mxu0 %v2282
  %2374 = vmatpush1.msra.mxu0 %v2281
  %2375 = vmatprep.subr.mxu0 %v2286
  %2376 = vmatpush1.msra.mxu0 %v2285
  %2377 = vmatprep.subr.mxu0 %v2290
  %2378 = vmatpush1.msra.mxu0 %v2289
  %2379 = vmatprep.subr.mxu0 %v2294
  %2380 = vmatpush1.msra.mxu0 %v2293
  %2381 = vmatprep.subr.mxu0 %v2298
  %2382 = vmatpush1.msra.mxu0 %v2297
  %2383 = vmatprep.subr.mxu0 %v2302
  %2384 = vmatpush1.msra.mxu0 %v2301
  %2385 = vmatprep.subr.mxu0 %v2306
  %2386 = vmatpush1.msra.mxu0 %v2305
  %2387 = vmatprep.subr.mxu0 %v2310
  %2388 = vmatpush1.msra.mxu0 %v2309
  %2389 = vmatprep.subr.mxu0 %v2314
  %2390 = vmatpush1.msra.mxu0 %v2313
  %2391 = vmatprep.subr.mxu0 %v2318
  %2392 = vmatpush1.msra.mxu0 %v2317
  %2393 = vmatprep.subr.mxu0 %v2322
  %2394 = vmatpush1.msra.mxu0 %v2321
  %2395 = vmatprep.subr.mxu0 %v2326
  %2396 = vmatpush1.msra.mxu0 %v2325
  %2397 = vmatprep.subr.mxu0 %v2330
  %2398 = vmatpush1.msra.mxu0 %v2329
  %2399 = vmatprep.subr.mxu0 %v2334
  %2400 = vmatpush1.msra.mxu0 %v2333
  %2401 = vmatprep.mubr.f32.mxu0 %v1969
  %2402 = vmatmul.mubr.f32.gmra.mrb[0].mxu0 %v2208
  %v2403 = vpop.f32.mrb[0].mxu0
  %v2404 = vadd.f32 %v355, %v2403
  %v2405 = vpop.f32.mrb[0].mxu0
  %v2406 = vadd.f32 %v359, %v2405
  %2407 = vdwg.mxu0
  %2408 = vmatprep.subr.mxu0 %v2212
  %2409 = vmatpush1.msra.mxu0 %v2211
  %2410 = vmatprep.subr.mxu0 %v2216
  %2411 = vmatpush1.msra.mxu0 %v2215
  %2412 = vmatprep.subr.mxu0 %v2220
  %2413 = vmatpush1.msra.mxu0 %v2219
  %2414 = vmatprep.subr.mxu0 %v2224
  %2415 = vmatpush1.msra.mxu0 %v2223
  %2416 = vmatprep.subr.mxu0 %v2228
  %2417 = vmatpush1.msra.mxu0 %v2227
  %2418 = vmatprep.subr.mxu0 %v2232
  %2419 = vmatpush1.msra.mxu0 %v2231
  %2420 = vmatprep.subr.mxu0 %v2236
  %2421 = vmatpush1.msra.mxu0 %v2235
  %2422 = vmatprep.subr.mxu0 %v2240
  %2423 = vmatpush1.msra.mxu0 %v2239
  %2424 = vmatprep.subr.mxu0 %v2244
  %2425 = vmatpush1.msra.mxu0 %v2243
  %2426 = vmatprep.subr.mxu0 %v2248
  %2427 = vmatpush1.msra.mxu0 %v2247
  %2428 = vmatprep.subr.mxu0 %v2252
  %2429 = vmatpush1.msra.mxu0 %v2251
  %2430 = vmatprep.subr.mxu0 %v2256
  %2431 = vmatpush1.msra.mxu0 %v2255
  %2432 = vmatprep.subr.mxu0 %v2260
  %2433 = vmatpush1.msra.mxu0 %v2259
  %2434 = vmatprep.subr.mxu0 %v2264
  %2435 = vmatpush1.msra.mxu0 %v2263
  %2436 = vmatprep.subr.mxu0 %v2268
  %2437 = vmatpush1.msra.mxu0 %v2267
  %2438 = vmatprep.subr.mxu0 %v2272
  %2439 = vmatpush1.msra.mxu0 %v2271
  %2440 = vmatprep.subr.mxu0 %v2276
  %2441 = vmatpush1.msra.mxu0 %v2275
  %2442 = vmatprep.subr.mxu0 %v2280
  %2443 = vmatpush1.msra.mxu0 %v2279
  %2444 = vmatprep.subr.mxu0 %v2284
  %2445 = vmatpush1.msra.mxu0 %v2283
  %2446 = vmatprep.subr.mxu0 %v2288
  %2447 = vmatpush1.msra.mxu0 %v2287
  %2448 = vmatprep.subr.mxu0 %v2292
  %2449 = vmatpush1.msra.mxu0 %v2291
  %2450 = vmatprep.subr.mxu0 %v2296
  %2451 = vmatpush1.msra.mxu0 %v2295
  %2452 = vmatprep.subr.mxu0 %v2300
  %2453 = vmatpush1.msra.mxu0 %v2299
  %2454 = vmatprep.subr.mxu0 %v2304
  %2455 = vmatpush1.msra.mxu0 %v2303
  %2456 = vmatprep.subr.mxu0 %v2308
  %2457 = vmatpush1.msra.mxu0 %v2307
  %2458 = vmatprep.subr.mxu0 %v2312
  %2459 = vmatpush1.msra.mxu0 %v2311
  %2460 = vmatprep.subr.mxu0 %v2316
  %2461 = vmatpush1.msra.mxu0 %v2315
  %2462 = vmatprep.subr.mxu0 %v2320
  %2463 = vmatpush1.msra.mxu0 %v2319
  %2464 = vmatprep.subr.mxu0 %v2324
  %2465 = vmatpush1.msra.mxu0 %v2323
  %2466 = vmatprep.subr.mxu0 %v2328
  %2467 = vmatpush1.msra.mxu0 %v2327
  %2468 = vmatprep.subr.mxu0 %v2332
  %2469 = vmatpush1.msra.mxu0 %v2331
  %2470 = vmatprep.subr.mxu0 %v2336
  %2471 = vmatpush1.msra.mxu0 %v2335
  %2472 = vmatprep.mubr.f32.mxu0 %v1969
  %2473 = vmatmul.mubr.f32.gmra.mrb[0].mxu0 %v2208
  %v2474 = vpop.f32.mrb[0].mxu0
  %v2475 = vadd.f32 %v363, %v2474
  %v2476 = vpop.f32.mrb[0].mxu0
  %v2477 = vadd.f32 %v367, %v2476
  %2478 = vdwg.mxu0
  %v2479 = vxor.u32 %v2404, 2147483648
  %v2480 = vmul.f32 %v2479, 1.442695
  %v2481 = vpow.pop %v2480
  %v2482 = vadd.f32 %v2481, 1.0
  %v2483 = vrcp.pop %v2482
  %v2484 = vmul.f32 1.0, %v2483
  %v2485 = vxor.u32 %v2406, 2147483648
  %v2486 = vmul.f32 %v2485, 1.442695
  %v2487 = vpow.pop %v2486
  %v2488 = vadd.f32 %v2487, 1.0
  %v2489 = vrcp.pop %v2488
  %v2490 = vmul.f32 1.0, %v2489
  %v2491 = vtanh.pop %v2475
  %v2492 = vxor.u32 %v2477, 2147483648
  %v2493 = vmul.f32 %v2492, 1.442695
  %v2494 = vpow.pop %v2493
  %v2495 = vadd.f32 %v2494, 1.0
  %v2496 = vrcp.pop %v2495
  %v2497 = vmul.f32 1.0, %v2496
  %v2498 = vmul.f32 %v2490, %v1967
  %v2499 = vmul.f32 %v2484, %v2491
  %v2500 = vadd.f32 %v2498, %v2499
  %v2501 = vtanh.pop %v2500
  %v2502 = vmul.f32 %v2497, %v2501
  %2503 = vst [vmem:[#allocation3 + $0x18] sm:$0xff] %v2502
  %v2504 = vld [vmem:[#allocation2 + $0x80] sm:$0xff]
  %v2505 = vld [vmem:[#allocation2 + $0x88] sm:$0xff]
  %v2506 = vld [vmem:[#allocation2 + $0x90] sm:$0xff]
  %v2507 = vld [vmem:[#allocation2 + $0x98] sm:$0xff]
  %v2508 = vld [vmem:[%s2] sm:$0xff]
  %v2509 = vld [vmem:[%s2 + $0x8] sm:$0xff]
  %v2510 = vld [vmem:[%s2 + $0x10] sm:$0xff]
  %v2511 = vld [vmem:[%s2 + $0x18] sm:$0xff]
  %v2512 = vld [vmem:[%s2 + $0x20] sm:$0xff]
  %v2513 = vld [vmem:[%s2 + $0x28] sm:$0xff]
  %v2514 = vld [vmem:[%s2 + $0x30] sm:$0xff]
  %v2515 = vld [vmem:[%s2 + $0x38] sm:$0xff]
  %v2516 = vld [vmem:[%s2 + $0x40] sm:$0xff]
  %v2517 = vld [vmem:[%s2 + $0x48] sm:$0xff]
  %v2518 = vld [vmem:[%s2 + $0x50] sm:$0xff]
  %v2519 = vld [vmem:[%s2 + $0x58] sm:$0xff]
  %v2520 = vld [vmem:[%s2 + $0x60] sm:$0xff]
  %v2521 = vld [vmem:[%s2 + $0x68] sm:$0xff]
  %v2522 = vld [vmem:[%s2 + $0x70] sm:$0xff]
  %v2523 = vld [vmem:[%s2 + $0x78] sm:$0xff]
  %v2524 = vld [vmem:[%s2 + $0x80] sm:$0xff]
  %v2525 = vld [vmem:[%s2 + $0x88] sm:$0xff]
  %v2526 = vld [vmem:[%s2 + $0x90] sm:$0xff]
  %v2527 = vld [vmem:[%s2 + $0x98] sm:$0xff]
  %v2528 = vld [vmem:[%s2 + $0xa0] sm:$0xff]
  %v2529 = vld [vmem:[%s2 + $0xa8] sm:$0xff]
  %v2530 = vld [vmem:[%s2 + $0xb0] sm:$0xff]
  %v2531 = vld [vmem:[%s2 + $0xb8] sm:$0xff]
  %v2532 = vld [vmem:[%s2 + $0xc0] sm:$0xff]
  %v2533 = vld [vmem:[%s2 + $0xc8] sm:$0xff]
  %v2534 = vld [vmem:[%s2 + $0xd0] sm:$0xff]
  %v2535 = vld [vmem:[%s2 + $0xd8] sm:$0xff]
  %v2536 = vld [vmem:[%s2 + $0xe0] sm:$0xff]
  %v2537 = vld [vmem:[%s2 + $0xe8] sm:$0xff]
  %v2538 = vld [vmem:[%s2 + $0xf0] sm:$0xff]
  %v2539 = vld [vmem:[%s2 + $0xf8] sm:$0xff]
  %v2540 = vld [vmem:[%s2 + $0x100] sm:$0xff]
  %v2541 = vld [vmem:[%s2 + $0x108] sm:$0xff]
  %v2542 = vld [vmem:[%s2 + $0x110] sm:$0xff]
  %v2543 = vld [vmem:[%s2 + $0x118] sm:$0xff]
  %v2544 = vld [vmem:[%s2 + $0x120] sm:$0xff]
  %v2545 = vld [vmem:[%s2 + $0x128] sm:$0xff]
  %v2546 = vld [vmem:[%s2 + $0x130] sm:$0xff]
  %v2547 = vld [vmem:[%s2 + $0x138] sm:$0xff]
  %v2548 = vld [vmem:[%s2 + $0x140] sm:$0xff]
  %v2549 = vld [vmem:[%s2 + $0x148] sm:$0xff]
  %v2550 = vld [vmem:[%s2 + $0x150] sm:$0xff]
  %v2551 = vld [vmem:[%s2 + $0x158] sm:$0xff]
  %v2552 = vld [vmem:[%s2 + $0x160] sm:$0xff]
  %v2553 = vld [vmem:[%s2 + $0x168] sm:$0xff]
  %v2554 = vld [vmem:[%s2 + $0x170] sm:$0xff]
  %v2555 = vld [vmem:[%s2 + $0x178] sm:$0xff]
  %v2556 = vld [vmem:[%s2 + $0x180] sm:$0xff]
  %v2557 = vld [vmem:[%s2 + $0x188] sm:$0xff]
  %v2558 = vld [vmem:[%s2 + $0x190] sm:$0xff]
  %v2559 = vld [vmem:[%s2 + $0x198] sm:$0xff]
  %v2560 = vld [vmem:[%s2 + $0x1a0] sm:$0xff]
  %v2561 = vld [vmem:[%s2 + $0x1a8] sm:$0xff]
  %v2562 = vld [vmem:[%s2 + $0x1b0] sm:$0xff]
  %v2563 = vld [vmem:[%s2 + $0x1b8] sm:$0xff]
  %v2564 = vld [vmem:[%s2 + $0x1c0] sm:$0xff]
  %v2565 = vld [vmem:[%s2 + $0x1c8] sm:$0xff]
  %v2566 = vld [vmem:[%s2 + $0x1d0] sm:$0xff]
  %v2567 = vld [vmem:[%s2 + $0x1d8] sm:$0xff]
  %v2568 = vld [vmem:[%s2 + $0x1e0] sm:$0xff]
  %v2569 = vld [vmem:[%s2 + $0x1e8] sm:$0xff]
  %v2570 = vld [vmem:[%s2 + $0x1f0] sm:$0xff]
  %v2571 = vld [vmem:[%s2 + $0x1f8] sm:$0xff]
  %2572 = vmatprep.subr.mxu0 %v2509
  %2573 = vmatpush1.msra.mxu0 %v2508
  %2574 = vmatprep.subr.mxu0 %v2513
  %2575 = vmatpush1.msra.mxu0 %v2512
  %2576 = vmatprep.subr.mxu0 %v2517
  %2577 = vmatpush1.msra.mxu0 %v2516
  %2578 = vmatprep.subr.mxu0 %v2521
  %2579 = vmatpush1.msra.mxu0 %v2520
  %2580 = vmatprep.subr.mxu0 %v2525
  %2581 = vmatpush1.msra.mxu0 %v2524
  %2582 = vmatprep.subr.mxu0 %v2529
  %2583 = vmatpush1.msra.mxu0 %v2528
  %2584 = vmatprep.subr.mxu0 %v2533
  %2585 = vmatpush1.msra.mxu0 %v2532
  %2586 = vmatprep.subr.mxu0 %v2537
  %2587 = vmatpush1.msra.mxu0 %v2536
  %2588 = vmatprep.subr.mxu0 %v2541
  %2589 = vmatpush1.msra.mxu0 %v2540
  %2590 = vmatprep.subr.mxu0 %v2545
  %2591 = vmatpush1.msra.mxu0 %v2544
  %2592 = vmatprep.subr.mxu0 %v2549
  %2593 = vmatpush1.msra.mxu0 %v2548
  %2594 = vmatprep.subr.mxu0 %v2553
  %2595 = vmatpush1.msra.mxu0 %v2552
  %2596 = vmatprep.subr.mxu0 %v2557
  %2597 = vmatpush1.msra.mxu0 %v2556
  %2598 = vmatprep.subr.mxu0 %v2561
  %2599 = vmatpush1.msra.mxu0 %v2560
  %2600 = vmatprep.subr.mxu0 %v2565
  %2601 = vmatpush1.msra.mxu0 %v2564
  %2602 = vmatprep.subr.mxu0 %v2569
  %2603 = vmatpush1.msra.mxu0 %v2568
  %2604 = vmatprep.subr.mxu0 0.0
  %2605 = vmatpush1.msra.mxu0 0.0
  %2606 = vmatprep.subr.mxu0 0.0
  %2607 = vmatpush1.msra.mxu0 0.0
  %2608 = vmatprep.subr.mxu0 0.0
  %2609 = vmatpush1.msra.mxu0 0.0
  %2610 = vmatprep.subr.mxu0 0.0
  %2611 = vmatpush1.msra.mxu0 0.0
  %2612 = vmatprep.subr.mxu0 0.0
  %2613 = vmatpush1.msra.mxu0 0.0
  %2614 = vmatprep.subr.mxu0 0.0
  %2615 = vmatpush1.msra.mxu0 0.0
  %2616 = vmatprep.subr.mxu0 0.0
  %2617 = vmatpush1.msra.mxu0 0.0
  %2618 = vmatprep.subr.mxu0 0.0
  %2619 = vmatpush1.msra.mxu0 0.0
  %2620 = vmatprep.subr.mxu0 0.0
  %2621 = vmatpush1.msra.mxu0 0.0
  %2622 = vmatprep.subr.mxu0 0.0
  %2623 = vmatpush1.msra.mxu0 0.0
  %2624 = vmatprep.subr.mxu0 0.0
  %2625 = vmatpush1.msra.mxu0 0.0
  %2626 = vmatprep.subr.mxu0 0.0
  %2627 = vmatpush1.msra.mxu0 0.0
  %2628 = vmatprep.subr.mxu0 0.0
  %2629 = vmatpush1.msra.mxu0 0.0
  %2630 = vmatprep.subr.mxu0 0.0
  %2631 = vmatpush1.msra.mxu0 0.0
  %2632 = vmatprep.subr.mxu0 0.0
  %2633 = vmatpush1.msra.mxu0 0.0
  %2634 = vmatprep.subr.mxu0 0.0
  %2635 = vmatpush1.msra.mxu0 0.0
  %2636 = vmatprep.mubr.f32.mxu0 0.0
  %2637 = vmatmul.mubr.f32.gmra.mrb[0].mxu0 %v2208
  %v2638 = vpop.f32.mrb[0].mxu0
  %v2639 = vadd.f32 0.0, %v2638
  %v2640 = vpop.f32.mrb[0].mxu0
  %v2641 = vadd.f32 0.0, %v2640
  %2642 = vdwg.mxu0
  %2643 = vmatprep.subr.mxu0 %v2511
  %2644 = vmatpush1.msra.mxu0 %v2510
  %2645 = vmatprep.subr.mxu0 %v2515
  %2646 = vmatpush1.msra.mxu0 %v2514
  %2647 = vmatprep.subr.mxu0 %v2519
  %2648 = vmatpush1.msra.mxu0 %v2518
  %2649 = vmatprep.subr.mxu0 %v2523
  %2650 = vmatpush1.msra.mxu0 %v2522
  %2651 = vmatprep.subr.mxu0 %v2527
  %2652 = vmatpush1.msra.mxu0 %v2526
  %2653 = vmatprep.subr.mxu0 %v2531
  %2654 = vmatpush1.msra.mxu0 %v2530
  %2655 = vmatprep.subr.mxu0 %v2535
  %2656 = vmatpush1.msra.mxu0 %v2534
  %2657 = vmatprep.subr.mxu0 %v2539
  %2658 = vmatpush1.msra.mxu0 %v2538
  %2659 = vmatprep.subr.mxu0 %v2543
  %2660 = vmatpush1.msra.mxu0 %v2542
  %2661 = vmatprep.subr.mxu0 %v2547
  %2662 = vmatpush1.msra.mxu0 %v2546
  %2663 = vmatprep.subr.mxu0 %v2551
  %2664 = vmatpush1.msra.mxu0 %v2550
  %2665 = vmatprep.subr.mxu0 %v2555
  %2666 = vmatpush1.msra.mxu0 %v2554
  %2667 = vmatprep.subr.mxu0 %v2559
  %2668 = vmatpush1.msra.mxu0 %v2558
  %2669 = vmatprep.subr.mxu0 %v2563
  %2670 = vmatpush1.msra.mxu0 %v2562
  %2671 = vmatprep.subr.mxu0 %v2567
  %2672 = vmatpush1.msra.mxu0 %v2566
  %2673 = vmatprep.subr.mxu0 %v2571
  %2674 = vmatpush1.msra.mxu0 %v2570
  %2675 = vmatprep.subr.mxu0 0.0
  %2676 = vmatpush1.msra.mxu0 0.0
  %2677 = vmatprep.subr.mxu0 0.0
  %2678 = vmatpush1.msra.mxu0 0.0
  %2679 = vmatprep.subr.mxu0 0.0
  %2680 = vmatpush1.msra.mxu0 0.0
  %2681 = vmatprep.subr.mxu0 0.0
  %2682 = vmatpush1.msra.mxu0 0.0
  %2683 = vmatprep.subr.mxu0 0.0
  %2684 = vmatpush1.msra.mxu0 0.0
  %2685 = vmatprep.subr.mxu0 0.0
  %2686 = vmatpush1.msra.mxu0 0.0
  %2687 = vmatprep.subr.mxu0 0.0
  %2688 = vmatpush1.msra.mxu0 0.0
  %2689 = vmatprep.subr.mxu0 0.0
  %2690 = vmatpush1.msra.mxu0 0.0
  %2691 = vmatprep.subr.mxu0 0.0
  %2692 = vmatpush1.msra.mxu0 0.0
  %2693 = vmatprep.subr.mxu0 0.0
  %2694 = vmatpush1.msra.mxu0 0.0
  %2695 = vmatprep.subr.mxu0 0.0
  %2696 = vmatpush1.msra.mxu0 0.0
  %2697 = vmatprep.subr.mxu0 0.0
  %2698 = vmatpush1.msra.mxu0 0.0
  %2699 = vmatprep.subr.mxu0 0.0
  %2700 = vmatpush1.msra.mxu0 0.0
  %2701 = vmatprep.subr.mxu0 0.0
  %2702 = vmatpush1.msra.mxu0 0.0
  %2703 = vmatprep.subr.mxu0 0.0
  %2704 = vmatpush1.msra.mxu0 0.0
  %2705 = vmatprep.subr.mxu0 0.0
  %2706 = vmatpush1.msra.mxu0 0.0
  %2707 = vmatprep.mubr.f32.mxu0 0.0
  %2708 = vmatmul.mubr.f32.gmra.mrb[0].mxu0 %v2208
  %v2709 = vpop.f32.mrb[0].mxu0
  %v2710 = vadd.f32 0.0, %v2709
  %v2711 = vpop.f32.mrb[0].mxu0
  %v2712 = vadd.f32 0.0, %v2711
  %2713 = vdwg.mxu0
  %v2714 = vadd.f32 %v2504, %v2639
  %v2715 = vadd.f32 %v2505, %v2641
  %v2716 = vadd.f32 %v2506, %v2710
  %v2717 = vadd.f32 %v2507, %v2712
  %v2718 = vxor.u32 %v2714, 2147483648
  %v2719 = vmul.f32 %v2718, 1.442695
  %v2720 = vpow.pop %v2719
  %v2721 = vadd.f32 %v2720, 1.0
  %v2722 = vrcp.pop %v2721
  %v2723 = vmul.f32 1.0, %v2722
  %v2724 = vxor.u32 %v2715, 2147483648
  %v2725 = vmul.f32 %v2724, 1.442695
  %v2726 = vpow.pop %v2725
  %v2727 = vadd.f32 %v2726, 1.0
  %v2728 = vrcp.pop %v2727
  %v2729 = vmul.f32 1.0, %v2728
  %v2730 = vtanh.pop %v2716
  %v2731 = vxor.u32 %v2717, 2147483648
  %v2732 = vmul.f32 %v2731, 1.442695
  %v2733 = vpow.pop %v2732
  %v2734 = vadd.f32 %v2733, 1.0
  %v2735 = vrcp.pop %v2734
  %v2736 = vmul.f32 1.0, %v2735
  %v2737 = vmul.f32 %v2729, %v2206
  %v2738 = vmul.f32 %v2723, %v2730
  %v2739 = vadd.f32 %v2737, %v2738
  %v2740 = vtanh.pop %v2739
  %v2741 = vmul.f32 %v2736, %v2740
  %v2742 = vld [vmem:[%s4] sm:$0xff]
  %v2743 = vld [vmem:[%s4 + $0x8] sm:$0xff]
  %v2744 = vld [vmem:[%s4 + $0x10] sm:$0xff]
  %v2745 = vld [vmem:[%s4 + $0x18] sm:$0xff]
  %v2746 = vld [vmem:[%s4 + $0x20] sm:$0xff]
  %v2747 = vld [vmem:[%s4 + $0x28] sm:$0xff]
  %v2748 = vld [vmem:[%s4 + $0x30] sm:$0xff]
  %v2749 = vld [vmem:[%s4 + $0x38] sm:$0xff]
  %v2750 = vld [vmem:[%s4 + $0x40] sm:$0xff]
  %v2751 = vld [vmem:[%s4 + $0x48] sm:$0xff]
  %v2752 = vld [vmem:[%s4 + $0x50] sm:$0xff]
  %v2753 = vld [vmem:[%s4 + $0x58] sm:$0xff]
  %v2754 = vld [vmem:[%s4 + $0x60] sm:$0xff]
  %v2755 = vld [vmem:[%s4 + $0x68] sm:$0xff]
  %v2756 = vld [vmem:[%s4 + $0x70] sm:$0xff]
  %v2757 = vld [vmem:[%s4 + $0x78] sm:$0xff]
  %v2758 = vld [vmem:[%s4 + $0x80] sm:$0xff]
  %v2759 = vld [vmem:[%s4 + $0x88] sm:$0xff]
  %v2760 = vld [vmem:[%s4 + $0x90] sm:$0xff]
  %v2761 = vld [vmem:[%s4 + $0x98] sm:$0xff]
  %v2762 = vld [vmem:[%s4 + $0xa0] sm:$0xff]
  %v2763 = vld [vmem:[%s4 + $0xa8] sm:$0xff]
  %v2764 = vld [vmem:[%s4 + $0xb0] sm:$0xff]
  %v2765 = vld [vmem:[%s4 + $0xb8] sm:$0xff]
  %v2766 = vld [vmem:[%s4 + $0xc0] sm:$0xff]
  %v2767 = vld [vmem:[%s4 + $0xc8] sm:$0xff]
  %v2768 = vld [vmem:[%s4 + $0xd0] sm:$0xff]
  %v2769 = vld [vmem:[%s4 + $0xd8] sm:$0xff]
  %v2770 = vld [vmem:[%s4 + $0xe0] sm:$0xff]
  %v2771 = vld [vmem:[%s4 + $0xe8] sm:$0xff]
  %v2772 = vld [vmem:[%s4 + $0xf0] sm:$0xff]
  %v2773 = vld [vmem:[%s4 + $0xf8] sm:$0xff]
  %v2774 = vld [vmem:[%s4 + $0x100] sm:$0xff]
  %v2775 = vld [vmem:[%s4 + $0x108] sm:$0xff]
  %v2776 = vld [vmem:[%s4 + $0x110] sm:$0xff]
  %v2777 = vld [vmem:[%s4 + $0x118] sm:$0xff]
  %v2778 = vld [vmem:[%s4 + $0x120] sm:$0xff]
  %v2779 = vld [vmem:[%s4 + $0x128] sm:$0xff]
  %v2780 = vld [vmem:[%s4 + $0x130] sm:$0xff]
  %v2781 = vld [vmem:[%s4 + $0x138] sm:$0xff]
  %v2782 = vld [vmem:[%s4 + $0x140] sm:$0xff]
  %v2783 = vld [vmem:[%s4 + $0x148] sm:$0xff]
  %v2784 = vld [vmem:[%s4 + $0x150] sm:$0xff]
  %v2785 = vld [vmem:[%s4 + $0x158] sm:$0xff]
  %v2786 = vld [vmem:[%s4 + $0x160] sm:$0xff]
  %v2787 = vld [vmem:[%s4 + $0x168] sm:$0xff]
  %v2788 = vld [vmem:[%s4 + $0x170] sm:$0xff]
  %v2789 = vld [vmem:[%s4 + $0x178] sm:$0xff]
  %v2790 = vld [vmem:[%s4 + $0x180] sm:$0xff]
  %v2791 = vld [vmem:[%s4 + $0x188] sm:$0xff]
  %v2792 = vld [vmem:[%s4 + $0x190] sm:$0xff]
  %v2793 = vld [vmem:[%s4 + $0x198] sm:$0xff]
  %v2794 = vld [vmem:[%s4 + $0x1a0] sm:$0xff]
  %v2795 = vld [vmem:[%s4 + $0x1a8] sm:$0xff]
  %v2796 = vld [vmem:[%s4 + $0x1b0] sm:$0xff]
  %v2797 = vld [vmem:[%s4 + $0x1b8] sm:$0xff]
  %v2798 = vld [vmem:[%s4 + $0x1c0] sm:$0xff]
  %v2799 = vld [vmem:[%s4 + $0x1c8] sm:$0xff]
  %v2800 = vld [vmem:[%s4 + $0x1d0] sm:$0xff]
  %v2801 = vld [vmem:[%s4 + $0x1d8] sm:$0xff]
  %v2802 = vld [vmem:[%s4 + $0x1e0] sm:$0xff]
  %v2803 = vld [vmem:[%s4 + $0x1e8] sm:$0xff]
  %v2804 = vld [vmem:[%s4 + $0x1f0] sm:$0xff]
  %v2805 = vld [vmem:[%s4 + $0x1f8] sm:$0xff]
  %v2806 = vld [vmem:[%s4 + $0x200] sm:$0xff]
  %v2807 = vld [vmem:[%s4 + $0x208] sm:$0xff]
  %v2808 = vld [vmem:[%s4 + $0x210] sm:$0xff]
  %v2809 = vld [vmem:[%s4 + $0x218] sm:$0xff]
  %v2810 = vld [vmem:[%s4 + $0x220] sm:$0xff]
  %v2811 = vld [vmem:[%s4 + $0x228] sm:$0xff]
  %v2812 = vld [vmem:[%s4 + $0x230] sm:$0xff]
  %v2813 = vld [vmem:[%s4 + $0x238] sm:$0xff]
  %v2814 = vld [vmem:[%s4 + $0x240] sm:$0xff]
  %v2815 = vld [vmem:[%s4 + $0x248] sm:$0xff]
  %v2816 = vld [vmem:[%s4 + $0x250] sm:$0xff]
  %v2817 = vld [vmem:[%s4 + $0x258] sm:$0xff]
  %v2818 = vld [vmem:[%s4 + $0x260] sm:$0xff]
  %v2819 = vld [vmem:[%s4 + $0x268] sm:$0xff]
  %v2820 = vld [vmem:[%s4 + $0x270] sm:$0xff]
  %v2821 = vld [vmem:[%s4 + $0x278] sm:$0xff]
  %v2822 = vld [vmem:[%s4 + $0x280] sm:$0xff]
  %v2823 = vld [vmem:[%s4 + $0x288] sm:$0xff]
  %v2824 = vld [vmem:[%s4 + $0x290] sm:$0xff]
  %v2825 = vld [vmem:[%s4 + $0x298] sm:$0xff]
  %v2826 = vld [vmem:[%s4 + $0x2a0] sm:$0xff]
  %v2827 = vld [vmem:[%s4 + $0x2a8] sm:$0xff]
  %v2828 = vld [vmem:[%s4 + $0x2b0] sm:$0xff]
  %v2829 = vld [vmem:[%s4 + $0x2b8] sm:$0xff]
  %v2830 = vld [vmem:[%s4 + $0x2c0] sm:$0xff]
  %v2831 = vld [vmem:[%s4 + $0x2c8] sm:$0xff]
  %v2832 = vld [vmem:[%s4 + $0x2d0] sm:$0xff]
  %v2833 = vld [vmem:[%s4 + $0x2d8] sm:$0xff]
  %v2834 = vld [vmem:[%s4 + $0x2e0] sm:$0xff]
  %v2835 = vld [vmem:[%s4 + $0x2e8] sm:$0xff]
  %v2836 = vld [vmem:[%s4 + $0x2f0] sm:$0xff]
  %v2837 = vld [vmem:[%s4 + $0x2f8] sm:$0xff]
  %v2838 = vld [vmem:[%s4 + $0x300] sm:$0xff]
  %v2839 = vld [vmem:[%s4 + $0x308] sm:$0xff]
  %v2840 = vld [vmem:[%s4 + $0x310] sm:$0xff]
  %v2841 = vld [vmem:[%s4 + $0x318] sm:$0xff]
  %v2842 = vld [vmem:[%s4 + $0x320] sm:$0xff]
  %v2843 = vld [vmem:[%s4 + $0x328] sm:$0xff]
  %v2844 = vld [vmem:[%s4 + $0x330] sm:$0xff]
  %v2845 = vld [vmem:[%s4 + $0x338] sm:$0xff]
  %v2846 = vld [vmem:[%s4 + $0x340] sm:$0xff]
  %v2847 = vld [vmem:[%s4 + $0x348] sm:$0xff]
  %v2848 = vld [vmem:[%s4 + $0x350] sm:$0xff]
  %v2849 = vld [vmem:[%s4 + $0x358] sm:$0xff]
  %v2850 = vld [vmem:[%s4 + $0x360] sm:$0xff]
  %v2851 = vld [vmem:[%s4 + $0x368] sm:$0xff]
  %v2852 = vld [vmem:[%s4 + $0x370] sm:$0xff]
  %v2853 = vld [vmem:[%s4 + $0x378] sm:$0xff]
  %v2854 = vld [vmem:[%s4 + $0x380] sm:$0xff]
  %v2855 = vld [vmem:[%s4 + $0x388] sm:$0xff]
  %v2856 = vld [vmem:[%s4 + $0x390] sm:$0xff]
  %v2857 = vld [vmem:[%s4 + $0x398] sm:$0xff]
  %v2858 = vld [vmem:[%s4 + $0x3a0] sm:$0xff]
  %v2859 = vld [vmem:[%s4 + $0x3a8] sm:$0xff]
  %v2860 = vld [vmem:[%s4 + $0x3b0] sm:$0xff]
  %v2861 = vld [vmem:[%s4 + $0x3b8] sm:$0xff]
  %v2862 = vld [vmem:[%s4 + $0x3c0] sm:$0xff]
  %v2863 = vld [vmem:[%s4 + $0x3c8] sm:$0xff]
  %v2864 = vld [vmem:[%s4 + $0x3d0] sm:$0xff]
  %v2865 = vld [vmem:[%s4 + $0x3d8] sm:$0xff]
  %v2866 = vld [vmem:[%s4 + $0x3e0] sm:$0xff]
  %v2867 = vld [vmem:[%s4 + $0x3e8] sm:$0xff]
  %v2868 = vld [vmem:[%s4 + $0x3f0] sm:$0xff]
  %v2869 = vld [vmem:[%s4 + $0x3f8] sm:$0xff]
  %2870 = vmatprep.subr.mxu0 %v2743
  %2871 = vmatpush1.msra.mxu0 %v2742
  %2872 = vmatprep.subr.mxu0 %v2747
  %2873 = vmatpush1.msra.mxu0 %v2746
  %2874 = vmatprep.subr.mxu0 %v2751
  %2875 = vmatpush1.msra.mxu0 %v2750
  %2876 = vmatprep.subr.mxu0 %v2755
  %2877 = vmatpush1.msra.mxu0 %v2754
  %2878 = vmatprep.subr.mxu0 %v2759
  %2879 = vmatpush1.msra.mxu0 %v2758
  %2880 = vmatprep.subr.mxu0 %v2763
  %2881 = vmatpush1.msra.mxu0 %v2762
  %2882 = vmatprep.subr.mxu0 %v2767
  %2883 = vmatpush1.msra.mxu0 %v2766
  %2884 = vmatprep.subr.mxu0 %v2771
  %2885 = vmatpush1.msra.mxu0 %v2770
  %2886 = vmatprep.subr.mxu0 %v2775
  %2887 = vmatpush1.msra.mxu0 %v2774
  %2888 = vmatprep.subr.mxu0 %v2779
  %2889 = vmatpush1.msra.mxu0 %v2778
  %2890 = vmatprep.subr.mxu0 %v2783
  %2891 = vmatpush1.msra.mxu0 %v2782
  %2892 = vmatprep.subr.mxu0 %v2787
  %2893 = vmatpush1.msra.mxu0 %v2786
  %2894 = vmatprep.subr.mxu0 %v2791
  %2895 = vmatpush1.msra.mxu0 %v2790
  %2896 = vmatprep.subr.mxu0 %v2795
  %2897 = vmatpush1.msra.mxu0 %v2794
  %2898 = vmatprep.subr.mxu0 %v2799
  %2899 = vmatpush1.msra.mxu0 %v2798
  %2900 = vmatprep.subr.mxu0 %v2803
  %2901 = vmatpush1.msra.mxu0 %v2802
  %2902 = vmatprep.subr.mxu0 %v2807
  %2903 = vmatpush1.msra.mxu0 %v2806
  %2904 = vmatprep.subr.mxu0 %v2811
  %2905 = vmatpush1.msra.mxu0 %v2810
  %2906 = vmatprep.subr.mxu0 %v2815
  %2907 = vmatpush1.msra.mxu0 %v2814
  %2908 = vmatprep.subr.mxu0 %v2819
  %2909 = vmatpush1.msra.mxu0 %v2818
  %2910 = vmatprep.subr.mxu0 %v2823
  %2911 = vmatpush1.msra.mxu0 %v2822
  %2912 = vmatprep.subr.mxu0 %v2827
  %2913 = vmatpush1.msra.mxu0 %v2826
  %2914 = vmatprep.subr.mxu0 %v2831
  %2915 = vmatpush1.msra.mxu0 %v2830
  %2916 = vmatprep.subr.mxu0 %v2835
  %2917 = vmatpush1.msra.mxu0 %v2834
  %2918 = vmatprep.subr.mxu0 %v2839
  %2919 = vmatpush1.msra.mxu0 %v2838
  %2920 = vmatprep.subr.mxu0 %v2843
  %2921 = vmatpush1.msra.mxu0 %v2842
  %2922 = vmatprep.subr.mxu0 %v2847
  %2923 = vmatpush1.msra.mxu0 %v2846
  %2924 = vmatprep.subr.mxu0 %v2851
  %2925 = vmatpush1.msra.mxu0 %v2850
  %2926 = vmatprep.subr.mxu0 %v2855
  %2927 = vmatpush1.msra.mxu0 %v2854
  %2928 = vmatprep.subr.mxu0 %v2859
  %2929 = vmatpush1.msra.mxu0 %v2858
  %2930 = vmatprep.subr.mxu0 %v2863
  %2931 = vmatpush1.msra.mxu0 %v2862
  %2932 = vmatprep.subr.mxu0 %v2867
  %2933 = vmatpush1.msra.mxu0 %v2866
  %2934 = vmatprep.mubr.f32.mxu0 %v2502
  %2935 = vmatmul.mubr.f32.gmra.mrb[0].mxu0 %v2741
  %v2936 = vpop.f32.mrb[0].mxu0
  %v2937 = vadd.f32 %v355, %v2936
  %v2938 = vpop.f32.mrb[0].mxu0
  %v2939 = vadd.f32 %v359, %v2938
  %2940 = vdwg.mxu0
  %2941 = vmatprep.subr.mxu0 %v2745
  %2942 = vmatpush1.msra.mxu0 %v2744
  %2943 = vmatprep.subr.mxu0 %v2749
  %2944 = vmatpush1.msra.mxu0 %v2748
  %2945 = vmatprep.subr.mxu0 %v2753
  %2946 = vmatpush1.msra.mxu0 %v2752
  %2947 = vmatprep.subr.mxu0 %v2757
  %2948 = vmatpush1.msra.mxu0 %v2756
  %2949 = vmatprep.subr.mxu0 %v2761
  %2950 = vmatpush1.msra.mxu0 %v2760
  %2951 = vmatprep.subr.mxu0 %v2765
  %2952 = vmatpush1.msra.mxu0 %v2764
  %2953 = vmatprep.subr.mxu0 %v2769
  %2954 = vmatpush1.msra.mxu0 %v2768
  %2955 = vmatprep.subr.mxu0 %v2773
  %2956 = vmatpush1.msra.mxu0 %v2772
  %2957 = vmatprep.subr.mxu0 %v2777
  %2958 = vmatpush1.msra.mxu0 %v2776
  %2959 = vmatprep.subr.mxu0 %v2781
  %2960 = vmatpush1.msra.mxu0 %v2780
  %2961 = vmatprep.subr.mxu0 %v2785
  %2962 = vmatpush1.msra.mxu0 %v2784
  %2963 = vmatprep.subr.mxu0 %v2789
  %2964 = vmatpush1.msra.mxu0 %v2788
  %2965 = vmatprep.subr.mxu0 %v2793
  %2966 = vmatpush1.msra.mxu0 %v2792
  %2967 = vmatprep.subr.mxu0 %v2797
  %2968 = vmatpush1.msra.mxu0 %v2796
  %2969 = vmatprep.subr.mxu0 %v2801
  %2970 = vmatpush1.msra.mxu0 %v2800
  %2971 = vmatprep.subr.mxu0 %v2805
  %2972 = vmatpush1.msra.mxu0 %v2804
  %2973 = vmatprep.subr.mxu0 %v2809
  %2974 = vmatpush1.msra.mxu0 %v2808
  %2975 = vmatprep.subr.mxu0 %v2813
  %2976 = vmatpush1.msra.mxu0 %v2812
  %2977 = vmatprep.subr.mxu0 %v2817
  %2978 = vmatpush1.msra.mxu0 %v2816
  %2979 = vmatprep.subr.mxu0 %v2821
  %2980 = vmatpush1.msra.mxu0 %v2820
  %2981 = vmatprep.subr.mxu0 %v2825
  %2982 = vmatpush1.msra.mxu0 %v2824
  %2983 = vmatprep.subr.mxu0 %v2829
  %2984 = vmatpush1.msra.mxu0 %v2828
  %2985 = vmatprep.subr.mxu0 %v2833
  %2986 = vmatpush1.msra.mxu0 %v2832
  %2987 = vmatprep.subr.mxu0 %v2837
  %2988 = vmatpush1.msra.mxu0 %v2836
  %2989 = vmatprep.subr.mxu0 %v2841
  %2990 = vmatpush1.msra.mxu0 %v2840
  %2991 = vmatprep.subr.mxu0 %v2845
  %2992 = vmatpush1.msra.mxu0 %v2844
  %2993 = vmatprep.subr.mxu0 %v2849
  %2994 = vmatpush1.msra.mxu0 %v2848
  %2995 = vmatprep.subr.mxu0 %v2853
  %2996 = vmatpush1.msra.mxu0 %v2852
  %2997 = vmatprep.subr.mxu0 %v2857
  %2998 = vmatpush1.msra.mxu0 %v2856
  %2999 = vmatprep.subr.mxu0 %v2861
  %3000 = vmatpush1.msra.mxu0 %v2860
  %3001 = vmatprep.subr.mxu0 %v2865
  %3002 = vmatpush1.msra.mxu0 %v2864
  %3003 = vmatprep.subr.mxu0 %v2869
  %3004 = vmatpush1.msra.mxu0 %v2868
  %3005 = vmatprep.mubr.f32.mxu0 %v2502
  %3006 = vmatmul.mubr.f32.gmra.mrb[0].mxu0 %v2741
  %v3007 = vpop.f32.mrb[0].mxu0
  %v3008 = vadd.f32 %v363, %v3007
  %v3009 = vpop.f32.mrb[0].mxu0
  %v3010 = vadd.f32 %v367, %v3009
  %3011 = vdwg.mxu0
  %v3012 = vxor.u32 %v2937, 2147483648
  %v3013 = vmul.f32 %v3012, 1.442695
  %v3014 = vpow.pop %v3013
  %v3015 = vadd.f32 %v3014, 1.0
  %v3016 = vrcp.pop %v3015
  %v3017 = vmul.f32 1.0, %v3016
  %v3018 = vxor.u32 %v2939, 2147483648
  %v3019 = vmul.f32 %v3018, 1.442695
  %v3020 = vpow.pop %v3019
  %v3021 = vadd.f32 %v3020, 1.0
  %v3022 = vrcp.pop %v3021
  %v3023 = vmul.f32 1.0, %v3022
  %v3024 = vtanh.pop %v3008
  %v3025 = vxor.u32 %v3010, 2147483648
  %v3026 = vmul.f32 %v3025, 1.442695
  %v3027 = vpow.pop %v3026
  %v3028 = vadd.f32 %v3027, 1.0
  %v3029 = vrcp.pop %v3028
  %v3030 = vmul.f32 1.0, %v3029
  %v3031 = vmul.f32 %v3023, %v2500
  %v3032 = vmul.f32 %v3017, %v3024
  %v3033 = vadd.f32 %v3031, %v3032
  %v3034 = vtanh.pop %v3033
  %v3035 = vmul.f32 %v3030, %v3034
  %3036 = vst [vmem:[#allocation3 + $0x20] sm:$0xff] %v3035
  %v3037 = vld [vmem:[#allocation2 + $0xa0] sm:$0xff]
  %v3038 = vld [vmem:[#allocation2 + $0xa8] sm:$0xff]
  %v3039 = vld [vmem:[#allocation2 + $0xb0] sm:$0xff]
  %v3040 = vld [vmem:[#allocation2 + $0xb8] sm:$0xff]
  %v3041 = vld [vmem:[%s2] sm:$0xff]
  %v3042 = vld [vmem:[%s2 + $0x8] sm:$0xff]
  %v3043 = vld [vmem:[%s2 + $0x10] sm:$0xff]
  %v3044 = vld [vmem:[%s2 + $0x18] sm:$0xff]
  %v3045 = vld [vmem:[%s2 + $0x20] sm:$0xff]
  %v3046 = vld [vmem:[%s2 + $0x28] sm:$0xff]
  %v3047 = vld [vmem:[%s2 + $0x30] sm:$0xff]
  %v3048 = vld [vmem:[%s2 + $0x38] sm:$0xff]
  %v3049 = vld [vmem:[%s2 + $0x40] sm:$0xff]
  %v3050 = vld [vmem:[%s2 + $0x48] sm:$0xff]
  %v3051 = vld [vmem:[%s2 + $0x50] sm:$0xff]
  %v3052 = vld [vmem:[%s2 + $0x58] sm:$0xff]
  %v3053 = vld [vmem:[%s2 + $0x60] sm:$0xff]
  %v3054 = vld [vmem:[%s2 + $0x68] sm:$0xff]
  %v3055 = vld [vmem:[%s2 + $0x70] sm:$0xff]
  %v3056 = vld [vmem:[%s2 + $0x78] sm:$0xff]
  %v3057 = vld [vmem:[%s2 + $0x80] sm:$0xff]
  %v3058 = vld [vmem:[%s2 + $0x88] sm:$0xff]
  %v3059 = vld [vmem:[%s2 + $0x90] sm:$0xff]
  %v3060 = vld [vmem:[%s2 + $0x98] sm:$0xff]
  %v3061 = vld [vmem:[%s2 + $0xa0] sm:$0xff]
  %v3062 = vld [vmem:[%s2 + $0xa8] sm:$0xff]
  %v3063 = vld [vmem:[%s2 + $0xb0] sm:$0xff]
  %v3064 = vld [vmem:[%s2 + $0xb8] sm:$0xff]
  %v3065 = vld [vmem:[%s2 + $0xc0] sm:$0xff]
  %v3066 = vld [vmem:[%s2 + $0xc8] sm:$0xff]
  %v3067 = vld [vmem:[%s2 + $0xd0] sm:$0xff]
  %v3068 = vld [vmem:[%s2 + $0xd8] sm:$0xff]
  %v3069 = vld [vmem:[%s2 + $0xe0] sm:$0xff]
  %v3070 = vld [vmem:[%s2 + $0xe8] sm:$0xff]
  %v3071 = vld [vmem:[%s2 + $0xf0] sm:$0xff]
  %v3072 = vld [vmem:[%s2 + $0xf8] sm:$0xff]
  %v3073 = vld [vmem:[%s2 + $0x100] sm:$0xff]
  %v3074 = vld [vmem:[%s2 + $0x108] sm:$0xff]
  %v3075 = vld [vmem:[%s2 + $0x110] sm:$0xff]
  %v3076 = vld [vmem:[%s2 + $0x118] sm:$0xff]
  %v3077 = vld [vmem:[%s2 + $0x120] sm:$0xff]
  %v3078 = vld [vmem:[%s2 + $0x128] sm:$0xff]
  %v3079 = vld [vmem:[%s2 + $0x130] sm:$0xff]
  %v3080 = vld [vmem:[%s2 + $0x138] sm:$0xff]
  %v3081 = vld [vmem:[%s2 + $0x140] sm:$0xff]
  %v3082 = vld [vmem:[%s2 + $0x148] sm:$0xff]
  %v3083 = vld [vmem:[%s2 + $0x150] sm:$0xff]
  %v3084 = vld [vmem:[%s2 + $0x158] sm:$0xff]
  %v3085 = vld [vmem:[%s2 + $0x160] sm:$0xff]
  %v3086 = vld [vmem:[%s2 + $0x168] sm:$0xff]
  %v3087 = vld [vmem:[%s2 + $0x170] sm:$0xff]
  %v3088 = vld [vmem:[%s2 + $0x178] sm:$0xff]
  %v3089 = vld [vmem:[%s2 + $0x180] sm:$0xff]
  %v3090 = vld [vmem:[%s2 + $0x188] sm:$0xff]
  %v3091 = vld [vmem:[%s2 + $0x190] sm:$0xff]
  %v3092 = vld [vmem:[%s2 + $0x198] sm:$0xff]
  %v3093 = vld [vmem:[%s2 + $0x1a0] sm:$0xff]
  %v3094 = vld [vmem:[%s2 + $0x1a8] sm:$0xff]
  %v3095 = vld [vmem:[%s2 + $0x1b0] sm:$0xff]
  %v3096 = vld [vmem:[%s2 + $0x1b8] sm:$0xff]
  %v3097 = vld [vmem:[%s2 + $0x1c0] sm:$0xff]
  %v3098 = vld [vmem:[%s2 + $0x1c8] sm:$0xff]
  %v3099 = vld [vmem:[%s2 + $0x1d0] sm:$0xff]
  %v3100 = vld [vmem:[%s2 + $0x1d8] sm:$0xff]
  %v3101 = vld [vmem:[%s2 + $0x1e0] sm:$0xff]
  %v3102 = vld [vmem:[%s2 + $0x1e8] sm:$0xff]
  %v3103 = vld [vmem:[%s2 + $0x1f0] sm:$0xff]
  %v3104 = vld [vmem:[%s2 + $0x1f8] sm:$0xff]
  %3105 = vmatprep.subr.mxu0 %v3042
  %3106 = vmatpush1.msra.mxu0 %v3041
  %3107 = vmatprep.subr.mxu0 %v3046
  %3108 = vmatpush1.msra.mxu0 %v3045
  %3109 = vmatprep.subr.mxu0 %v3050
  %3110 = vmatpush1.msra.mxu0 %v3049
  %3111 = vmatprep.subr.mxu0 %v3054
  %3112 = vmatpush1.msra.mxu0 %v3053
  %3113 = vmatprep.subr.mxu0 %v3058
  %3114 = vmatpush1.msra.mxu0 %v3057
  %3115 = vmatprep.subr.mxu0 %v3062
  %3116 = vmatpush1.msra.mxu0 %v3061
  %3117 = vmatprep.subr.mxu0 %v3066
  %3118 = vmatpush1.msra.mxu0 %v3065
  %3119 = vmatprep.subr.mxu0 %v3070
  %3120 = vmatpush1.msra.mxu0 %v3069
  %3121 = vmatprep.subr.mxu0 %v3074
  %3122 = vmatpush1.msra.mxu0 %v3073
  %3123 = vmatprep.subr.mxu0 %v3078
  %3124 = vmatpush1.msra.mxu0 %v3077
  %3125 = vmatprep.subr.mxu0 %v3082
  %3126 = vmatpush1.msra.mxu0 %v3081
  %3127 = vmatprep.subr.mxu0 %v3086
  %3128 = vmatpush1.msra.mxu0 %v3085
  %3129 = vmatprep.subr.mxu0 %v3090
  %3130 = vmatpush1.msra.mxu0 %v3089
  %3131 = vmatprep.subr.mxu0 %v3094
  %3132 = vmatpush1.msra.mxu0 %v3093
  %3133 = vmatprep.subr.mxu0 %v3098
  %3134 = vmatpush1.msra.mxu0 %v3097
  %3135 = vmatprep.subr.mxu0 %v3102
  %3136 = vmatpush1.msra.mxu0 %v3101
  %3137 = vmatprep.subr.mxu0 0.0
  %3138 = vmatpush1.msra.mxu0 0.0
  %3139 = vmatprep.subr.mxu0 0.0
  %3140 = vmatpush1.msra.mxu0 0.0
  %3141 = vmatprep.subr.mxu0 0.0
  %3142 = vmatpush1.msra.mxu0 0.0
  %3143 = vmatprep.subr.mxu0 0.0
  %3144 = vmatpush1.msra.mxu0 0.0
  %3145 = vmatprep.subr.mxu0 0.0
  %3146 = vmatpush1.msra.mxu0 0.0
  %3147 = vmatprep.subr.mxu0 0.0
  %3148 = vmatpush1.msra.mxu0 0.0
  %3149 = vmatprep.subr.mxu0 0.0
  %3150 = vmatpush1.msra.mxu0 0.0
  %3151 = vmatprep.subr.mxu0 0.0
  %3152 = vmatpush1.msra.mxu0 0.0
  %3153 = vmatprep.subr.mxu0 0.0
  %3154 = vmatpush1.msra.mxu0 0.0
  %3155 = vmatprep.subr.mxu0 0.0
  %3156 = vmatpush1.msra.mxu0 0.0
  %3157 = vmatprep.subr.mxu0 0.0
  %3158 = vmatpush1.msra.mxu0 0.0
  %3159 = vmatprep.subr.mxu0 0.0
  %3160 = vmatpush1.msra.mxu0 0.0
  %3161 = vmatprep.subr.mxu0 0.0
  %3162 = vmatpush1.msra.mxu0 0.0
  %3163 = vmatprep.subr.mxu0 0.0
  %3164 = vmatpush1.msra.mxu0 0.0
  %3165 = vmatprep.subr.mxu0 0.0
  %3166 = vmatpush1.msra.mxu0 0.0
  %3167 = vmatprep.subr.mxu0 0.0
  %3168 = vmatpush1.msra.mxu0 0.0
  %3169 = vmatprep.mubr.f32.mxu0 0.0
  %3170 = vmatmul.mubr.f32.gmra.mrb[0].mxu0 %v2741
  %v3171 = vpop.f32.mrb[0].mxu0
  %v3172 = vadd.f32 0.0, %v3171
  %v3173 = vpop.f32.mrb[0].mxu0
  %v3174 = vadd.f32 0.0, %v3173
  %3175 = vdwg.mxu0
  %3176 = vmatprep.subr.mxu0 %v3044
  %3177 = vmatpush1.msra.mxu0 %v3043
  %3178 = vmatprep.subr.mxu0 %v3048
  %3179 = vmatpush1.msra.mxu0 %v3047
  %3180 = vmatprep.subr.mxu0 %v3052
  %3181 = vmatpush1.msra.mxu0 %v3051
  %3182 = vmatprep.subr.mxu0 %v3056
  %3183 = vmatpush1.msra.mxu0 %v3055
  %3184 = vmatprep.subr.mxu0 %v3060
  %3185 = vmatpush1.msra.mxu0 %v3059
  %3186 = vmatprep.subr.mxu0 %v3064
  %3187 = vmatpush1.msra.mxu0 %v3063
  %3188 = vmatprep.subr.mxu0 %v3068
  %3189 = vmatpush1.msra.mxu0 %v3067
  %3190 = vmatprep.subr.mxu0 %v3072
  %3191 = vmatpush1.msra.mxu0 %v3071
  %3192 = vmatprep.subr.mxu0 %v3076
  %3193 = vmatpush1.msra.mxu0 %v3075
  %3194 = vmatprep.subr.mxu0 %v3080
  %3195 = vmatpush1.msra.mxu0 %v3079
  %3196 = vmatprep.subr.mxu0 %v3084
  %3197 = vmatpush1.msra.mxu0 %v3083
  %3198 = vmatprep.subr.mxu0 %v3088
  %3199 = vmatpush1.msra.mxu0 %v3087
  %3200 = vmatprep.subr.mxu0 %v3092
  %3201 = vmatpush1.msra.mxu0 %v3091
  %3202 = vmatprep.subr.mxu0 %v3096
  %3203 = vmatpush1.msra.mxu0 %v3095
  %3204 = vmatprep.subr.mxu0 %v3100
  %3205 = vmatpush1.msra.mxu0 %v3099
  %3206 = vmatprep.subr.mxu0 %v3104
  %3207 = vmatpush1.msra.mxu0 %v3103
  %3208 = vmatprep.subr.mxu0 0.0
  %3209 = vmatpush1.msra.mxu0 0.0
  %3210 = vmatprep.subr.mxu0 0.0
  %3211 = vmatpush1.msra.mxu0 0.0
  %3212 = vmatprep.subr.mxu0 0.0
  %3213 = vmatpush1.msra.mxu0 0.0
  %3214 = vmatprep.subr.mxu0 0.0
  %3215 = vmatpush1.msra.mxu0 0.0
  %3216 = vmatprep.subr.mxu0 0.0
  %3217 = vmatpush1.msra.mxu0 0.0
  %3218 = vmatprep.subr.mxu0 0.0
  %3219 = vmatpush1.msra.mxu0 0.0
  %3220 = vmatprep.subr.mxu0 0.0
  %3221 = vmatpush1.msra.mxu0 0.0
  %3222 = vmatprep.subr.mxu0 0.0
  %3223 = vmatpush1.msra.mxu0 0.0
  %3224 = vmatprep.subr.mxu0 0.0
  %3225 = vmatpush1.msra.mxu0 0.0
  %3226 = vmatprep.subr.mxu0 0.0
  %3227 = vmatpush1.msra.mxu0 0.0
  %3228 = vmatprep.subr.mxu0 0.0
  %3229 = vmatpush1.msra.mxu0 0.0
  %3230 = vmatprep.subr.mxu0 0.0
  %3231 = vmatpush1.msra.mxu0 0.0
  %3232 = vmatprep.subr.mxu0 0.0
  %3233 = vmatpush1.msra.mxu0 0.0
  %3234 = vmatprep.subr.mxu0 0.0
  %3235 = vmatpush1.msra.mxu0 0.0
  %3236 = vmatprep.subr.mxu0 0.0
  %3237 = vmatpush1.msra.mxu0 0.0
  %3238 = vmatprep.subr.mxu0 0.0
  %3239 = vmatpush1.msra.mxu0 0.0
  %3240 = vmatprep.mubr.f32.mxu0 0.0
  %3241 = vmatmul.mubr.f32.gmra.mrb[0].mxu0 %v2741
  %v3242 = vpop.f32.mrb[0].mxu0
  %v3243 = vadd.f32 0.0, %v3242
  %v3244 = vpop.f32.mrb[0].mxu0
  %v3245 = vadd.f32 0.0, %v3244
  %3246 = vdwg.mxu0
  %v3247 = vadd.f32 %v3037, %v3172
  %v3248 = vadd.f32 %v3038, %v3174
  %v3249 = vadd.f32 %v3039, %v3243
  %v3250 = vadd.f32 %v3040, %v3245
  %v3251 = vxor.u32 %v3247, 2147483648
  %v3252 = vmul.f32 %v3251, 1.442695
  %v3253 = vpow.pop %v3252
  %v3254 = vadd.f32 %v3253, 1.0
  %v3255 = vrcp.pop %v3254
  %v3256 = vmul.f32 1.0, %v3255
  %v3257 = vxor.u32 %v3248, 2147483648
  %v3258 = vmul.f32 %v3257, 1.442695
  %v3259 = vpow.pop %v3258
  %v3260 = vadd.f32 %v3259, 1.0
  %v3261 = vrcp.pop %v3260
  %v3262 = vmul.f32 1.0, %v3261
  %v3263 = vtanh.pop %v3249
  %v3264 = vxor.u32 %v3250, 2147483648
  %v3265 = vmul.f32 %v3264, 1.442695
  %v3266 = vpow.pop %v3265
  %v3267 = vadd.f32 %v3266, 1.0
  %v3268 = vrcp.pop %v3267
  %v3269 = vmul.f32 1.0, %v3268
  %v3270 = vmul.f32 %v3262, %v2739
  %v3271 = vmul.f32 %v3256, %v3263
  %v3272 = vadd.f32 %v3270, %v3271
  %v3273 = vtanh.pop %v3272
  %v3274 = vmul.f32 %v3269, %v3273
  %v3275 = vld [vmem:[%s4] sm:$0xff]
  %v3276 = vld [vmem:[%s4 + $0x8] sm:$0xff]
  %v3277 = vld [vmem:[%s4 + $0x10] sm:$0xff]
  %v3278 = vld [vmem:[%s4 + $0x18] sm:$0xff]
  %v3279 = vld [vmem:[%s4 + $0x20] sm:$0xff]
  %v3280 = vld [vmem:[%s4 + $0x28] sm:$0xff]
  %v3281 = vld [vmem:[%s4 + $0x30] sm:$0xff]
  %v3282 = vld [vmem:[%s4 + $0x38] sm:$0xff]
  %v3283 = vld [vmem:[%s4 + $0x40] sm:$0xff]
  %v3284 = vld [vmem:[%s4 + $0x48] sm:$0xff]
  %v3285 = vld [vmem:[%s4 + $0x50] sm:$0xff]
  %v3286 = vld [vmem:[%s4 + $0x58] sm:$0xff]
  %v3287 = vld [vmem:[%s4 + $0x60] sm:$0xff]
  %v3288 = vld [vmem:[%s4 + $0x68] sm:$0xff]
  %v3289 = vld [vmem:[%s4 + $0x70] sm:$0xff]
  %v3290 = vld [vmem:[%s4 + $0x78] sm:$0xff]
  %v3291 = vld [vmem:[%s4 + $0x80] sm:$0xff]
  %v3292 = vld [vmem:[%s4 + $0x88] sm:$0xff]
  %v3293 = vld [vmem:[%s4 + $0x90] sm:$0xff]
  %v3294 = vld [vmem:[%s4 + $0x98] sm:$0xff]
  %v3295 = vld [vmem:[%s4 + $0xa0] sm:$0xff]
  %v3296 = vld [vmem:[%s4 + $0xa8] sm:$0xff]
  %v3297 = vld [vmem:[%s4 + $0xb0] sm:$0xff]
  %v3298 = vld [vmem:[%s4 + $0xb8] sm:$0xff]
  %v3299 = vld [vmem:[%s4 + $0xc0] sm:$0xff]
  %v3300 = vld [vmem:[%s4 + $0xc8] sm:$0xff]
  %v3301 = vld [vmem:[%s4 + $0xd0] sm:$0xff]
  %v3302 = vld [vmem:[%s4 + $0xd8] sm:$0xff]
  %v3303 = vld [vmem:[%s4 + $0xe0] sm:$0xff]
  %v3304 = vld [vmem:[%s4 + $0xe8] sm:$0xff]
  %v3305 = vld [vmem:[%s4 + $0xf0] sm:$0xff]
  %v3306 = vld [vmem:[%s4 + $0xf8] sm:$0xff]
  %v3307 = vld [vmem:[%s4 + $0x100] sm:$0xff]
  %v3308 = vld [vmem:[%s4 + $0x108] sm:$0xff]
  %v3309 = vld [vmem:[%s4 + $0x110] sm:$0xff]
  %v3310 = vld [vmem:[%s4 + $0x118] sm:$0xff]
  %v3311 = vld [vmem:[%s4 + $0x120] sm:$0xff]
  %v3312 = vld [vmem:[%s4 + $0x128] sm:$0xff]
  %v3313 = vld [vmem:[%s4 + $0x130] sm:$0xff]
  %v3314 = vld [vmem:[%s4 + $0x138] sm:$0xff]
  %v3315 = vld [vmem:[%s4 + $0x140] sm:$0xff]
  %v3316 = vld [vmem:[%s4 + $0x148] sm:$0xff]
  %v3317 = vld [vmem:[%s4 + $0x150] sm:$0xff]
  %v3318 = vld [vmem:[%s4 + $0x158] sm:$0xff]
  %v3319 = vld [vmem:[%s4 + $0x160] sm:$0xff]
  %v3320 = vld [vmem:[%s4 + $0x168] sm:$0xff]
  %v3321 = vld [vmem:[%s4 + $0x170] sm:$0xff]
  %v3322 = vld [vmem:[%s4 + $0x178] sm:$0xff]
  %v3323 = vld [vmem:[%s4 + $0x180] sm:$0xff]
  %v3324 = vld [vmem:[%s4 + $0x188] sm:$0xff]
  %v3325 = vld [vmem:[%s4 + $0x190] sm:$0xff]
  %v3326 = vld [vmem:[%s4 + $0x198] sm:$0xff]
  %v3327 = vld [vmem:[%s4 + $0x1a0] sm:$0xff]
  %v3328 = vld [vmem:[%s4 + $0x1a8] sm:$0xff]
  %v3329 = vld [vmem:[%s4 + $0x1b0] sm:$0xff]
  %v3330 = vld [vmem:[%s4 + $0x1b8] sm:$0xff]
  %v3331 = vld [vmem:[%s4 + $0x1c0] sm:$0xff]
  %v3332 = vld [vmem:[%s4 + $0x1c8] sm:$0xff]
  %v3333 = vld [vmem:[%s4 + $0x1d0] sm:$0xff]
  %v3334 = vld [vmem:[%s4 + $0x1d8] sm:$0xff]
  %v3335 = vld [vmem:[%s4 + $0x1e0] sm:$0xff]
  %v3336 = vld [vmem:[%s4 + $0x1e8] sm:$0xff]
  %v3337 = vld [vmem:[%s4 + $0x1f0] sm:$0xff]
  %v3338 = vld [vmem:[%s4 + $0x1f8] sm:$0xff]
  %v3339 = vld [vmem:[%s4 + $0x200] sm:$0xff]
  %v3340 = vld [vmem:[%s4 + $0x208] sm:$0xff]
  %v3341 = vld [vmem:[%s4 + $0x210] sm:$0xff]
  %v3342 = vld [vmem:[%s4 + $0x218] sm:$0xff]
  %v3343 = vld [vmem:[%s4 + $0x220] sm:$0xff]
  %v3344 = vld [vmem:[%s4 + $0x228] sm:$0xff]
  %v3345 = vld [vmem:[%s4 + $0x230] sm:$0xff]
  %v3346 = vld [vmem:[%s4 + $0x238] sm:$0xff]
  %v3347 = vld [vmem:[%s4 + $0x240] sm:$0xff]
  %v3348 = vld [vmem:[%s4 + $0x248] sm:$0xff]
  %v3349 = vld [vmem:[%s4 + $0x250] sm:$0xff]
  %v3350 = vld [vmem:[%s4 + $0x258] sm:$0xff]
  %v3351 = vld [vmem:[%s4 + $0x260] sm:$0xff]
  %v3352 = vld [vmem:[%s4 + $0x268] sm:$0xff]
  %v3353 = vld [vmem:[%s4 + $0x270] sm:$0xff]
  %v3354 = vld [vmem:[%s4 + $0x278] sm:$0xff]
  %v3355 = vld [vmem:[%s4 + $0x280] sm:$0xff]
  %v3356 = vld [vmem:[%s4 + $0x288] sm:$0xff]
  %v3357 = vld [vmem:[%s4 + $0x290] sm:$0xff]
  %v3358 = vld [vmem:[%s4 + $0x298] sm:$0xff]
  %v3359 = vld [vmem:[%s4 + $0x2a0] sm:$0xff]
  %v3360 = vld [vmem:[%s4 + $0x2a8] sm:$0xff]
  %v3361 = vld [vmem:[%s4 + $0x2b0] sm:$0xff]
  %v3362 = vld [vmem:[%s4 + $0x2b8] sm:$0xff]
  %v3363 = vld [vmem:[%s4 + $0x2c0] sm:$0xff]
  %v3364 = vld [vmem:[%s4 + $0x2c8] sm:$0xff]
  %v3365 = vld [vmem:[%s4 + $0x2d0] sm:$0xff]
  %v3366 = vld [vmem:[%s4 + $0x2d8] sm:$0xff]
  %v3367 = vld [vmem:[%s4 + $0x2e0] sm:$0xff]
  %v3368 = vld [vmem:[%s4 + $0x2e8] sm:$0xff]
  %v3369 = vld [vmem:[%s4 + $0x2f0] sm:$0xff]
  %v3370 = vld [vmem:[%s4 + $0x2f8] sm:$0xff]
  %v3371 = vld [vmem:[%s4 + $0x300] sm:$0xff]
  %v3372 = vld [vmem:[%s4 + $0x308] sm:$0xff]
  %v3373 = vld [vmem:[%s4 + $0x310] sm:$0xff]
  %v3374 = vld [vmem:[%s4 + $0x318] sm:$0xff]
  %v3375 = vld [vmem:[%s4 + $0x320] sm:$0xff]
  %v3376 = vld [vmem:[%s4 + $0x328] sm:$0xff]
  %v3377 = vld [vmem:[%s4 + $0x330] sm:$0xff]
  %v3378 = vld [vmem:[%s4 + $0x338] sm:$0xff]
  %v3379 = vld [vmem:[%s4 + $0x340] sm:$0xff]
  %v3380 = vld [vmem:[%s4 + $0x348] sm:$0xff]
  %v3381 = vld [vmem:[%s4 + $0x350] sm:$0xff]
  %v3382 = vld [vmem:[%s4 + $0x358] sm:$0xff]
  %v3383 = vld [vmem:[%s4 + $0x360] sm:$0xff]
  %v3384 = vld [vmem:[%s4 + $0x368] sm:$0xff]
  %v3385 = vld [vmem:[%s4 + $0x370] sm:$0xff]
  %v3386 = vld [vmem:[%s4 + $0x378] sm:$0xff]
  %v3387 = vld [vmem:[%s4 + $0x380] sm:$0xff]
  %v3388 = vld [vmem:[%s4 + $0x388] sm:$0xff]
  %v3389 = vld [vmem:[%s4 + $0x390] sm:$0xff]
  %v3390 = vld [vmem:[%s4 + $0x398] sm:$0xff]
  %v3391 = vld [vmem:[%s4 + $0x3a0] sm:$0xff]
  %v3392 = vld [vmem:[%s4 + $0x3a8] sm:$0xff]
  %v3393 = vld [vmem:[%s4 + $0x3b0] sm:$0xff]
  %v3394 = vld [vmem:[%s4 + $0x3b8] sm:$0xff]
  %v3395 = vld [vmem:[%s4 + $0x3c0] sm:$0xff]
  %v3396 = vld [vmem:[%s4 + $0x3c8] sm:$0xff]
  %v3397 = vld [vmem:[%s4 + $0x3d0] sm:$0xff]
  %v3398 = vld [vmem:[%s4 + $0x3d8] sm:$0xff]
  %v3399 = vld [vmem:[%s4 + $0x3e0] sm:$0xff]
  %v3400 = vld [vmem:[%s4 + $0x3e8] sm:$0xff]
  %v3401 = vld [vmem:[%s4 + $0x3f0] sm:$0xff]
  %v3402 = vld [vmem:[%s4 + $0x3f8] sm:$0xff]
  %3403 = vmatprep.subr.mxu0 %v3276
  %3404 = vmatpush1.msra.mxu0 %v3275
  %3405 = vmatprep.subr.mxu0 %v3280
  %3406 = vmatpush1.msra.mxu0 %v3279
  %3407 = vmatprep.subr.mxu0 %v3284
  %3408 = vmatpush1.msra.mxu0 %v3283
  %3409 = vmatprep.subr.mxu0 %v3288
  %3410 = vmatpush1.msra.mxu0 %v3287
  %3411 = vmatprep.subr.mxu0 %v3292
  %3412 = vmatpush1.msra.mxu0 %v3291
  %3413 = vmatprep.subr.mxu0 %v3296
  %3414 = vmatpush1.msra.mxu0 %v3295
  %3415 = vmatprep.subr.mxu0 %v3300
  %3416 = vmatpush1.msra.mxu0 %v3299
  %3417 = vmatprep.subr.mxu0 %v3304
  %3418 = vmatpush1.msra.mxu0 %v3303
  %3419 = vmatprep.subr.mxu0 %v3308
  %3420 = vmatpush1.msra.mxu0 %v3307
  %3421 = vmatprep.subr.mxu0 %v3312
  %3422 = vmatpush1.msra.mxu0 %v3311
  %3423 = vmatprep.subr.mxu0 %v3316
  %3424 = vmatpush1.msra.mxu0 %v3315
  %3425 = vmatprep.subr.mxu0 %v3320
  %3426 = vmatpush1.msra.mxu0 %v3319
  %3427 = vmatprep.subr.mxu0 %v3324
  %3428 = vmatpush1.msra.mxu0 %v3323
  %3429 = vmatprep.subr.mxu0 %v3328
  %3430 = vmatpush1.msra.mxu0 %v3327
  %3431 = vmatprep.subr.mxu0 %v3332
  %3432 = vmatpush1.msra.mxu0 %v3331
  %3433 = vmatprep.subr.mxu0 %v3336
  %3434 = vmatpush1.msra.mxu0 %v3335
  %3435 = vmatprep.subr.mxu0 %v3340
  %3436 = vmatpush1.msra.mxu0 %v3339
  %3437 = vmatprep.subr.mxu0 %v3344
  %3438 = vmatpush1.msra.mxu0 %v3343
  %3439 = vmatprep.subr.mxu0 %v3348
  %3440 = vmatpush1.msra.mxu0 %v3347
  %3441 = vmatprep.subr.mxu0 %v3352
  %3442 = vmatpush1.msra.mxu0 %v3351
  %3443 = vmatprep.subr.mxu0 %v3356
  %3444 = vmatpush1.msra.mxu0 %v3355
  %3445 = vmatprep.subr.mxu0 %v3360
  %3446 = vmatpush1.msra.mxu0 %v3359
  %3447 = vmatprep.subr.mxu0 %v3364
  %3448 = vmatpush1.msra.mxu0 %v3363
  %3449 = vmatprep.subr.mxu0 %v3368
  %3450 = vmatpush1.msra.mxu0 %v3367
  %3451 = vmatprep.subr.mxu0 %v3372
  %3452 = vmatpush1.msra.mxu0 %v3371
  %3453 = vmatprep.subr.mxu0 %v3376
  %3454 = vmatpush1.msra.mxu0 %v3375
  %3455 = vmatprep.subr.mxu0 %v3380
  %3456 = vmatpush1.msra.mxu0 %v3379
  %3457 = vmatprep.subr.mxu0 %v3384
  %3458 = vmatpush1.msra.mxu0 %v3383
  %3459 = vmatprep.subr.mxu0 %v3388
  %3460 = vmatpush1.msra.mxu0 %v3387
  %3461 = vmatprep.subr.mxu0 %v3392
  %3462 = vmatpush1.msra.mxu0 %v3391
  %3463 = vmatprep.subr.mxu0 %v3396
  %3464 = vmatpush1.msra.mxu0 %v3395
  %3465 = vmatprep.subr.mxu0 %v3400
  %3466 = vmatpush1.msra.mxu0 %v3399
  %3467 = vmatprep.mubr.f32.mxu0 %v3035
  %3468 = vmatmul.mubr.f32.gmra.mrb[0].mxu0 %v3274
  %v3469 = vpop.f32.mrb[0].mxu0
  %v3470 = vadd.f32 %v355, %v3469
  %v3471 = vpop.f32.mrb[0].mxu0
  %v3472 = vadd.f32 %v359, %v3471
  %3473 = vdwg.mxu0
  %3474 = vmatprep.subr.mxu0 %v3278
  %3475 = vmatpush1.msra.mxu0 %v3277
  %3476 = vmatprep.subr.mxu0 %v3282
  %3477 = vmatpush1.msra.mxu0 %v3281
  %3478 = vmatprep.subr.mxu0 %v3286
  %3479 = vmatpush1.msra.mxu0 %v3285
  %3480 = vmatprep.subr.mxu0 %v3290
  %3481 = vmatpush1.msra.mxu0 %v3289
  %3482 = vmatprep.subr.mxu0 %v3294
  %3483 = vmatpush1.msra.mxu0 %v3293
  %3484 = vmatprep.subr.mxu0 %v3298
  %3485 = vmatpush1.msra.mxu0 %v3297
  %3486 = vmatprep.subr.mxu0 %v3302
  %3487 = vmatpush1.msra.mxu0 %v3301
  %3488 = vmatprep.subr.mxu0 %v3306
  %3489 = vmatpush1.msra.mxu0 %v3305
  %3490 = vmatprep.subr.mxu0 %v3310
  %3491 = vmatpush1.msra.mxu0 %v3309
  %3492 = vmatprep.subr.mxu0 %v3314
  %3493 = vmatpush1.msra.mxu0 %v3313
  %3494 = vmatprep.subr.mxu0 %v3318
  %3495 = vmatpush1.msra.mxu0 %v3317
  %3496 = vmatprep.subr.mxu0 %v3322
  %3497 = vmatpush1.msra.mxu0 %v3321
  %3498 = vmatprep.subr.mxu0 %v3326
  %3499 = vmatpush1.msra.mxu0 %v3325
  %3500 = vmatprep.subr.mxu0 %v3330
  %3501 = vmatpush1.msra.mxu0 %v3329
  %3502 = vmatprep.subr.mxu0 %v3334
  %3503 = vmatpush1.msra.mxu0 %v3333
  %3504 = vmatprep.subr.mxu0 %v3338
  %3505 = vmatpush1.msra.mxu0 %v3337
  %3506 = vmatprep.subr.mxu0 %v3342
  %3507 = vmatpush1.msra.mxu0 %v3341
  %3508 = vmatprep.subr.mxu0 %v3346
  %3509 = vmatpush1.msra.mxu0 %v3345
  %3510 = vmatprep.subr.mxu0 %v3350
  %3511 = vmatpush1.msra.mxu0 %v3349
  %3512 = vmatprep.subr.mxu0 %v3354
  %3513 = vmatpush1.msra.mxu0 %v3353
  %3514 = vmatprep.subr.mxu0 %v3358
  %3515 = vmatpush1.msra.mxu0 %v3357
  %3516 = vmatprep.subr.mxu0 %v3362
  %3517 = vmatpush1.msra.mxu0 %v3361
  %3518 = vmatprep.subr.mxu0 %v3366
  %3519 = vmatpush1.msra.mxu0 %v3365
  %3520 = vmatprep.subr.mxu0 %v3370
  %3521 = vmatpush1.msra.mxu0 %v3369
  %3522 = vmatprep.subr.mxu0 %v3374
  %3523 = vmatpush1.msra.mxu0 %v3373
  %3524 = vmatprep.subr.mxu0 %v3378
  %3525 = vmatpush1.msra.mxu0 %v3377
  %3526 = vmatprep.subr.mxu0 %v3382
  %3527 = vmatpush1.msra.mxu0 %v3381
  %3528 = vmatprep.subr.mxu0 %v3386
  %3529 = vmatpush1.msra.mxu0 %v3385
  %3530 = vmatprep.subr.mxu0 %v3390
  %3531 = vmatpush1.msra.mxu0 %v3389
  %3532 = vmatprep.subr.mxu0 %v3394
  %3533 = vmatpush1.msra.mxu0 %v3393
  %3534 = vmatprep.subr.mxu0 %v3398
  %3535 = vmatpush1.msra.mxu0 %v3397
  %3536 = vmatprep.subr.mxu0 %v3402
  %3537 = vmatpush1.msra.mxu0 %v3401
  %3538 = vmatprep.mubr.f32.mxu0 %v3035
  %3539 = vmatmul.mubr.f32.gmra.mrb[0].mxu0 %v3274
  %v3540 = vpop.f32.mrb[0].mxu0
  %v3541 = vadd.f32 %v363, %v3540
  %v3542 = vpop.f32.mrb[0].mxu0
  %v3543 = vadd.f32 %v367, %v3542
  %3544 = vdwg.mxu0
  %v3545 = vxor.u32 %v3470, 2147483648
  %v3546 = vmul.f32 %v3545, 1.442695
  %v3547 = vpow.pop %v3546
  %v3548 = vadd.f32 %v3547, 1.0
  %v3549 = vrcp.pop %v3548
  %v3550 = vmul.f32 1.0, %v3549
  %v3551 = vxor.u32 %v3472, 2147483648
  %v3552 = vmul.f32 %v3551, 1.442695
  %v3553 = vpow.pop %v3552
  %v3554 = vadd.f32 %v3553, 1.0
  %v3555 = vrcp.pop %v3554
  %v3556 = vmul.f32 1.0, %v3555
  %v3557 = vtanh.pop %v3541
  %v3558 = vxor.u32 %v3543, 2147483648
  %v3559 = vmul.f32 %v3558, 1.442695
  %v3560 = vpow.pop %v3559
  %v3561 = vadd.f32 %v3560, 1.0
  %v3562 = vrcp.pop %v3561
  %v3563 = vmul.f32 1.0, %v3562
  %v3564 = vmul.f32 %v3556, %v3033
  %v3565 = vmul.f32 %v3550, %v3557
  %v3566 = vadd.f32 %v3564, %v3565
  %v3567 = vtanh.pop %v3566
  %v3568 = vmul.f32 %v3563, %v3567
  %3569 = vst [vmem:[#allocation3 + $0x28] sm:$0xff] %v3568
  %v3570 = vld [vmem:[#allocation2 + $0xc0] sm:$0xff]
  %v3571 = vld [vmem:[#allocation2 + $0xc8] sm:$0xff]
  %v3572 = vld [vmem:[#allocation2 + $0xd0] sm:$0xff]
  %v3573 = vld [vmem:[#allocation2 + $0xd8] sm:$0xff]
  %v3574 = vld [vmem:[%s2] sm:$0xff]
  %v3575 = vld [vmem:[%s2 + $0x8] sm:$0xff]
  %v3576 = vld [vmem:[%s2 + $0x10] sm:$0xff]
  %v3577 = vld [vmem:[%s2 + $0x18] sm:$0xff]
  %v3578 = vld [vmem:[%s2 + $0x20] sm:$0xff]
  %v3579 = vld [vmem:[%s2 + $0x28] sm:$0xff]
  %v3580 = vld [vmem:[%s2 + $0x30] sm:$0xff]
  %v3581 = vld [vmem:[%s2 + $0x38] sm:$0xff]
  %v3582 = vld [vmem:[%s2 + $0x40] sm:$0xff]
  %v3583 = vld [vmem:[%s2 + $0x48] sm:$0xff]
  %v3584 = vld [vmem:[%s2 + $0x50] sm:$0xff]
  %v3585 = vld [vmem:[%s2 + $0x58] sm:$0xff]
  %v3586 = vld [vmem:[%s2 + $0x60] sm:$0xff]
  %v3587 = vld [vmem:[%s2 + $0x68] sm:$0xff]
  %v3588 = vld [vmem:[%s2 + $0x70] sm:$0xff]
  %v3589 = vld [vmem:[%s2 + $0x78] sm:$0xff]
  %v3590 = vld [vmem:[%s2 + $0x80] sm:$0xff]
  %v3591 = vld [vmem:[%s2 + $0x88] sm:$0xff]
  %v3592 = vld [vmem:[%s2 + $0x90] sm:$0xff]
  %v3593 = vld [vmem:[%s2 + $0x98] sm:$0xff]
  %v3594 = vld [vmem:[%s2 + $0xa0] sm:$0xff]
  %v3595 = vld [vmem:[%s2 + $0xa8] sm:$0xff]
  %v3596 = vld [vmem:[%s2 + $0xb0] sm:$0xff]
  %v3597 = vld [vmem:[%s2 + $0xb8] sm:$0xff]
  %v3598 = vld [vmem:[%s2 + $0xc0] sm:$0xff]
  %v3599 = vld [vmem:[%s2 + $0xc8] sm:$0xff]
  %v3600 = vld [vmem:[%s2 + $0xd0] sm:$0xff]
  %v3601 = vld [vmem:[%s2 + $0xd8] sm:$0xff]
  %v3602 = vld [vmem:[%s2 + $0xe0] sm:$0xff]
  %v3603 = vld [vmem:[%s2 + $0xe8] sm:$0xff]
  %v3604 = vld [vmem:[%s2 + $0xf0] sm:$0xff]
  %v3605 = vld [vmem:[%s2 + $0xf8] sm:$0xff]
  %v3606 = vld [vmem:[%s2 + $0x100] sm:$0xff]
  %v3607 = vld [vmem:[%s2 + $0x108] sm:$0xff]
  %v3608 = vld [vmem:[%s2 + $0x110] sm:$0xff]
  %v3609 = vld [vmem:[%s2 + $0x118] sm:$0xff]
  %v3610 = vld [vmem:[%s2 + $0x120] sm:$0xff]
  %v3611 = vld [vmem:[%s2 + $0x128] sm:$0xff]
  %v3612 = vld [vmem:[%s2 + $0x130] sm:$0xff]
  %v3613 = vld [vmem:[%s2 + $0x138] sm:$0xff]
  %v3614 = vld [vmem:[%s2 + $0x140] sm:$0xff]
  %v3615 = vld [vmem:[%s2 + $0x148] sm:$0xff]
  %v3616 = vld [vmem:[%s2 + $0x150] sm:$0xff]
  %v3617 = vld [vmem:[%s2 + $0x158] sm:$0xff]
  %v3618 = vld [vmem:[%s2 + $0x160] sm:$0xff]
  %v3619 = vld [vmem:[%s2 + $0x168] sm:$0xff]
  %v3620 = vld [vmem:[%s2 + $0x170] sm:$0xff]
  %v3621 = vld [vmem:[%s2 + $0x178] sm:$0xff]
  %v3622 = vld [vmem:[%s2 + $0x180] sm:$0xff]
  %v3623 = vld [vmem:[%s2 + $0x188] sm:$0xff]
  %v3624 = vld [vmem:[%s2 + $0x190] sm:$0xff]
  %v3625 = vld [vmem:[%s2 + $0x198] sm:$0xff]
  %v3626 = vld [vmem:[%s2 + $0x1a0] sm:$0xff]
  %v3627 = vld [vmem:[%s2 + $0x1a8] sm:$0xff]
  %v3628 = vld [vmem:[%s2 + $0x1b0] sm:$0xff]
  %v3629 = vld [vmem:[%s2 + $0x1b8] sm:$0xff]
  %v3630 = vld [vmem:[%s2 + $0x1c0] sm:$0xff]
  %v3631 = vld [vmem:[%s2 + $0x1c8] sm:$0xff]
  %v3632 = vld [vmem:[%s2 + $0x1d0] sm:$0xff]
  %v3633 = vld [vmem:[%s2 + $0x1d8] sm:$0xff]
  %v3634 = vld [vmem:[%s2 + $0x1e0] sm:$0xff]
  %v3635 = vld [vmem:[%s2 + $0x1e8] sm:$0xff]
  %v3636 = vld [vmem:[%s2 + $0x1f0] sm:$0xff]
  %v3637 = vld [vmem:[%s2 + $0x1f8] sm:$0xff]
  %3638 = vmatprep.subr.mxu0 %v3575
  %3639 = vmatpush1.msra.mxu0 %v3574
  %3640 = vmatprep.subr.mxu0 %v3579
  %3641 = vmatpush1.msra.mxu0 %v3578
  %3642 = vmatprep.subr.mxu0 %v3583
  %3643 = vmatpush1.msra.mxu0 %v3582
  %3644 = vmatprep.subr.mxu0 %v3587
  %3645 = vmatpush1.msra.mxu0 %v3586
  %3646 = vmatprep.subr.mxu0 %v3591
  %3647 = vmatpush1.msra.mxu0 %v3590
  %3648 = vmatprep.subr.mxu0 %v3595
  %3649 = vmatpush1.msra.mxu0 %v3594
  %3650 = vmatprep.subr.mxu0 %v3599
  %3651 = vmatpush1.msra.mxu0 %v3598
  %3652 = vmatprep.subr.mxu0 %v3603
  %3653 = vmatpush1.msra.mxu0 %v3602
  %3654 = vmatprep.subr.mxu0 %v3607
  %3655 = vmatpush1.msra.mxu0 %v3606
  %3656 = vmatprep.subr.mxu0 %v3611
  %3657 = vmatpush1.msra.mxu0 %v3610
  %3658 = vmatprep.subr.mxu0 %v3615
  %3659 = vmatpush1.msra.mxu0 %v3614
  %3660 = vmatprep.subr.mxu0 %v3619
  %3661 = vmatpush1.msra.mxu0 %v3618
  %3662 = vmatprep.subr.mxu0 %v3623
  %3663 = vmatpush1.msra.mxu0 %v3622
  %3664 = vmatprep.subr.mxu0 %v3627
  %3665 = vmatpush1.msra.mxu0 %v3626
  %3666 = vmatprep.subr.mxu0 %v3631
  %3667 = vmatpush1.msra.mxu0 %v3630
  %3668 = vmatprep.subr.mxu0 %v3635
  %3669 = vmatpush1.msra.mxu0 %v3634
  %3670 = vmatprep.subr.mxu0 0.0
  %3671 = vmatpush1.msra.mxu0 0.0
  %3672 = vmatprep.subr.mxu0 0.0
  %3673 = vmatpush1.msra.mxu0 0.0
  %3674 = vmatprep.subr.mxu0 0.0
  %3675 = vmatpush1.msra.mxu0 0.0
  %3676 = vmatprep.subr.mxu0 0.0
  %3677 = vmatpush1.msra.mxu0 0.0
  %3678 = vmatprep.subr.mxu0 0.0
  %3679 = vmatpush1.msra.mxu0 0.0
  %3680 = vmatprep.subr.mxu0 0.0
  %3681 = vmatpush1.msra.mxu0 0.0
  %3682 = vmatprep.subr.mxu0 0.0
  %3683 = vmatpush1.msra.mxu0 0.0
  %3684 = vmatprep.subr.mxu0 0.0
  %3685 = vmatpush1.msra.mxu0 0.0
  %3686 = vmatprep.subr.mxu0 0.0
  %3687 = vmatpush1.msra.mxu0 0.0
  %3688 = vmatprep.subr.mxu0 0.0
  %3689 = vmatpush1.msra.mxu0 0.0
  %3690 = vmatprep.subr.mxu0 0.0
  %3691 = vmatpush1.msra.mxu0 0.0
  %3692 = vmatprep.subr.mxu0 0.0
  %3693 = vmatpush1.msra.mxu0 0.0
  %3694 = vmatprep.subr.mxu0 0.0
  %3695 = vmatpush1.msra.mxu0 0.0
  %3696 = vmatprep.subr.mxu0 0.0
  %3697 = vmatpush1.msra.mxu0 0.0
  %3698 = vmatprep.subr.mxu0 0.0
  %3699 = vmatpush1.msra.mxu0 0.0
  %3700 = vmatprep.subr.mxu0 0.0
  %3701 = vmatpush1.msra.mxu0 0.0
  %3702 = vmatprep.mubr.f32.mxu0 0.0
  %3703 = vmatmul.mubr.f32.gmra.mrb[0].mxu0 %v3274
  %v3704 = vpop.f32.mrb[0].mxu0
  %v3705 = vadd.f32 0.0, %v3704
  %v3706 = vpop.f32.mrb[0].mxu0
  %v3707 = vadd.f32 0.0, %v3706
  %3708 = vdwg.mxu0
  %3709 = vmatprep.subr.mxu0 %v3577
  %3710 = vmatpush1.msra.mxu0 %v3576
  %3711 = vmatprep.subr.mxu0 %v3581
  %3712 = vmatpush1.msra.mxu0 %v3580
  %3713 = vmatprep.subr.mxu0 %v3585
  %3714 = vmatpush1.msra.mxu0 %v3584
  %3715 = vmatprep.subr.mxu0 %v3589
  %3716 = vmatpush1.msra.mxu0 %v3588
  %3717 = vmatprep.subr.mxu0 %v3593
  %3718 = vmatpush1.msra.mxu0 %v3592
  %3719 = vmatprep.subr.mxu0 %v3597
  %3720 = vmatpush1.msra.mxu0 %v3596
  %3721 = vmatprep.subr.mxu0 %v3601
  %3722 = vmatpush1.msra.mxu0 %v3600
  %3723 = vmatprep.subr.mxu0 %v3605
  %3724 = vmatpush1.msra.mxu0 %v3604
  %3725 = vmatprep.subr.mxu0 %v3609
  %3726 = vmatpush1.msra.mxu0 %v3608
  %3727 = vmatprep.subr.mxu0 %v3613
  %3728 = vmatpush1.msra.mxu0 %v3612
  %3729 = vmatprep.subr.mxu0 %v3617
  %3730 = vmatpush1.msra.mxu0 %v3616
  %3731 = vmatprep.subr.mxu0 %v3621
  %3732 = vmatpush1.msra.mxu0 %v3620
  %3733 = vmatprep.subr.mxu0 %v3625
  %3734 = vmatpush1.msra.mxu0 %v3624
  %3735 = vmatprep.subr.mxu0 %v3629
  %3736 = vmatpush1.msra.mxu0 %v3628
  %3737 = vmatprep.subr.mxu0 %v3633
  %3738 = vmatpush1.msra.mxu0 %v3632
  %3739 = vmatprep.subr.mxu0 %v3637
  %3740 = vmatpush1.msra.mxu0 %v3636
  %3741 = vmatprep.subr.mxu0 0.0
  %3742 = vmatpush1.msra.mxu0 0.0
  %3743 = vmatprep.subr.mxu0 0.0
  %3744 = vmatpush1.msra.mxu0 0.0
  %3745 = vmatprep.subr.mxu0 0.0
  %3746 = vmatpush1.msra.mxu0 0.0
  %3747 = vmatprep.subr.mxu0 0.0
  %3748 = vmatpush1.msra.mxu0 0.0
  %3749 = vmatprep.subr.mxu0 0.0
  %3750 = vmatpush1.msra.mxu0 0.0
  %3751 = vmatprep.subr.mxu0 0.0
  %3752 = vmatpush1.msra.mxu0 0.0
  %3753 = vmatprep.subr.mxu0 0.0
  %3754 = vmatpush1.msra.mxu0 0.0
  %3755 = vmatprep.subr.mxu0 0.0
  %3756 = vmatpush1.msra.mxu0 0.0
  %3757 = vmatprep.subr.mxu0 0.0
  %3758 = vmatpush1.msra.mxu0 0.0
  %3759 = vmatprep.subr.mxu0 0.0
  %3760 = vmatpush1.msra.mxu0 0.0
  %3761 = vmatprep.subr.mxu0 0.0
  %3762 = vmatpush1.msra.mxu0 0.0
  %3763 = vmatprep.subr.mxu0 0.0
  %3764 = vmatpush1.msra.mxu0 0.0
  %3765 = vmatprep.subr.mxu0 0.0
  %3766 = vmatpush1.msra.mxu0 0.0
  %3767 = vmatprep.subr.mxu0 0.0
  %3768 = vmatpush1.msra.mxu0 0.0
  %3769 = vmatprep.subr.mxu0 0.0
  %3770 = vmatpush1.msra.mxu0 0.0
  %3771 = vmatprep.subr.mxu0 0.0
  %3772 = vmatpush1.msra.mxu0 0.0
  %3773 = vmatprep.mubr.f32.mxu0 0.0
  %3774 = vmatmul.mubr.f32.gmra.mrb[0].mxu0 %v3274
  %v3775 = vpop.f32.mrb[0].mxu0
  %v3776 = vadd.f32 0.0, %v3775
  %v3777 = vpop.f32.mrb[0].mxu0
  %v3778 = vadd.f32 0.0, %v3777
  %3779 = vdwg.mxu0
  %v3780 = vadd.f32 %v3570, %v3705
  %v3781 = vadd.f32 %v3571, %v3707
  %v3782 = vadd.f32 %v3572, %v3776
  %v3783 = vadd.f32 %v3573, %v3778
  %v3784 = vxor.u32 %v3780, 2147483648
  %v3785 = vmul.f32 %v3784, 1.442695
  %v3786 = vpow.pop %v3785
  %v3787 = vadd.f32 %v3786, 1.0
  %v3788 = vrcp.pop %v3787
  %v3789 = vmul.f32 1.0, %v3788
  %v3790 = vxor.u32 %v3781, 2147483648
  %v3791 = vmul.f32 %v3790, 1.442695
  %v3792 = vpow.pop %v3791
  %v3793 = vadd.f32 %v3792, 1.0
  %v3794 = vrcp.pop %v3793
  %v3795 = vmul.f32 1.0, %v3794
  %v3796 = vtanh.pop %v3782
  %v3797 = vxor.u32 %v3783, 2147483648
  %v3798 = vmul.f32 %v3797, 1.442695
  %v3799 = vpow.pop %v3798
  %v3800 = vadd.f32 %v3799, 1.0
  %v3801 = vrcp.pop %v3800
  %v3802 = vmul.f32 1.0, %v3801
  %v3803 = vmul.f32 %v3795, %v3272
  %v3804 = vmul.f32 %v3789, %v3796
  %v3805 = vadd.f32 %v3803, %v3804
  %v3806 = vtanh.pop %v3805
  %v3807 = vmul.f32 %v3802, %v3806
  %v3808 = vld [vmem:[%s4] sm:$0xff]
  %v3809 = vld [vmem:[%s4 + $0x8] sm:$0xff]
  %v3810 = vld [vmem:[%s4 + $0x10] sm:$0xff]
  %v3811 = vld [vmem:[%s4 + $0x18] sm:$0xff]
  %v3812 = vld [vmem:[%s4 + $0x20] sm:$0xff]
  %v3813 = vld [vmem:[%s4 + $0x28] sm:$0xff]
  %v3814 = vld [vmem:[%s4 + $0x30] sm:$0xff]
  %v3815 = vld [vmem:[%s4 + $0x38] sm:$0xff]
  %v3816 = vld [vmem:[%s4 + $0x40] sm:$0xff]
  %v3817 = vld [vmem:[%s4 + $0x48] sm:$0xff]
  %v3818 = vld [vmem:[%s4 + $0x50] sm:$0xff]
  %v3819 = vld [vmem:[%s4 + $0x58] sm:$0xff]
  %v3820 = vld [vmem:[%s4 + $0x60] sm:$0xff]
  %v3821 = vld [vmem:[%s4 + $0x68] sm:$0xff]
  %v3822 = vld [vmem:[%s4 + $0x70] sm:$0xff]
  %v3823 = vld [vmem:[%s4 + $0x78] sm:$0xff]
  %v3824 = vld [vmem:[%s4 + $0x80] sm:$0xff]
  %v3825 = vld [vmem:[%s4 + $0x88] sm:$0xff]
  %v3826 = vld [vmem:[%s4 + $0x90] sm:$0xff]
  %v3827 = vld [vmem:[%s4 + $0x98] sm:$0xff]
  %v3828 = vld [vmem:[%s4 + $0xa0] sm:$0xff]
  %v3829 = vld [vmem:[%s4 + $0xa8] sm:$0xff]
  %v3830 = vld [vmem:[%s4 + $0xb0] sm:$0xff]
  %v3831 = vld [vmem:[%s4 + $0xb8] sm:$0xff]
  %v3832 = vld [vmem:[%s4 + $0xc0] sm:$0xff]
  %v3833 = vld [vmem:[%s4 + $0xc8] sm:$0xff]
  %v3834 = vld [vmem:[%s4 + $0xd0] sm:$0xff]
  %v3835 = vld [vmem:[%s4 + $0xd8] sm:$0xff]
  %v3836 = vld [vmem:[%s4 + $0xe0] sm:$0xff]
  %v3837 = vld [vmem:[%s4 + $0xe8] sm:$0xff]
  %v3838 = vld [vmem:[%s4 + $0xf0] sm:$0xff]
  %v3839 = vld [vmem:[%s4 + $0xf8] sm:$0xff]
  %v3840 = vld [vmem:[%s4 + $0x100] sm:$0xff]
  %v3841 = vld [vmem:[%s4 + $0x108] sm:$0xff]
  %v3842 = vld [vmem:[%s4 + $0x110] sm:$0xff]
  %v3843 = vld [vmem:[%s4 + $0x118] sm:$0xff]
  %v3844 = vld [vmem:[%s4 + $0x120] sm:$0xff]
  %v3845 = vld [vmem:[%s4 + $0x128] sm:$0xff]
  %v3846 = vld [vmem:[%s4 + $0x130] sm:$0xff]
  %v3847 = vld [vmem:[%s4 + $0x138] sm:$0xff]
  %v3848 = vld [vmem:[%s4 + $0x140] sm:$0xff]
  %v3849 = vld [vmem:[%s4 + $0x148] sm:$0xff]
  %v3850 = vld [vmem:[%s4 + $0x150] sm:$0xff]
  %v3851 = vld [vmem:[%s4 + $0x158] sm:$0xff]
  %v3852 = vld [vmem:[%s4 + $0x160] sm:$0xff]
  %v3853 = vld [vmem:[%s4 + $0x168] sm:$0xff]
  %v3854 = vld [vmem:[%s4 + $0x170] sm:$0xff]
  %v3855 = vld [vmem:[%s4 + $0x178] sm:$0xff]
  %v3856 = vld [vmem:[%s4 + $0x180] sm:$0xff]
  %v3857 = vld [vmem:[%s4 + $0x188] sm:$0xff]
  %v3858 = vld [vmem:[%s4 + $0x190] sm:$0xff]
  %v3859 = vld [vmem:[%s4 + $0x198] sm:$0xff]
  %v3860 = vld [vmem:[%s4 + $0x1a0] sm:$0xff]
  %v3861 = vld [vmem:[%s4 + $0x1a8] sm:$0xff]
  %v3862 = vld [vmem:[%s4 + $0x1b0] sm:$0xff]
  %v3863 = vld [vmem:[%s4 + $0x1b8] sm:$0xff]
  %v3864 = vld [vmem:[%s4 + $0x1c0] sm:$0xff]
  %v3865 = vld [vmem:[%s4 + $0x1c8] sm:$0xff]
  %v3866 = vld [vmem:[%s4 + $0x1d0] sm:$0xff]
  %v3867 = vld [vmem:[%s4 + $0x1d8] sm:$0xff]
  %v3868 = vld [vmem:[%s4 + $0x1e0] sm:$0xff]
  %v3869 = vld [vmem:[%s4 + $0x1e8] sm:$0xff]
  %v3870 = vld [vmem:[%s4 + $0x1f0] sm:$0xff]
  %v3871 = vld [vmem:[%s4 + $0x1f8] sm:$0xff]
  %v3872 = vld [vmem:[%s4 + $0x200] sm:$0xff]
  %v3873 = vld [vmem:[%s4 + $0x208] sm:$0xff]
  %v3874 = vld [vmem:[%s4 + $0x210] sm:$0xff]
  %v3875 = vld [vmem:[%s4 + $0x218] sm:$0xff]
  %v3876 = vld [vmem:[%s4 + $0x220] sm:$0xff]
  %v3877 = vld [vmem:[%s4 + $0x228] sm:$0xff]
  %v3878 = vld [vmem:[%s4 + $0x230] sm:$0xff]
  %v3879 = vld [vmem:[%s4 + $0x238] sm:$0xff]
  %v3880 = vld [vmem:[%s4 + $0x240] sm:$0xff]
  %v3881 = vld [vmem:[%s4 + $0x248] sm:$0xff]
  %v3882 = vld [vmem:[%s4 + $0x250] sm:$0xff]
  %v3883 = vld [vmem:[%s4 + $0x258] sm:$0xff]
  %v3884 = vld [vmem:[%s4 + $0x260] sm:$0xff]
  %v3885 = vld [vmem:[%s4 + $0x268] sm:$0xff]
  %v3886 = vld [vmem:[%s4 + $0x270] sm:$0xff]
  %v3887 = vld [vmem:[%s4 + $0x278] sm:$0xff]
  %v3888 = vld [vmem:[%s4 + $0x280] sm:$0xff]
  %v3889 = vld [vmem:[%s4 + $0x288] sm:$0xff]
  %v3890 = vld [vmem:[%s4 + $0x290] sm:$0xff]
  %v3891 = vld [vmem:[%s4 + $0x298] sm:$0xff]
  %v3892 = vld [vmem:[%s4 + $0x2a0] sm:$0xff]
  %v3893 = vld [vmem:[%s4 + $0x2a8] sm:$0xff]
  %v3894 = vld [vmem:[%s4 + $0x2b0] sm:$0xff]
  %v3895 = vld [vmem:[%s4 + $0x2b8] sm:$0xff]
  %v3896 = vld [vmem:[%s4 + $0x2c0] sm:$0xff]
  %v3897 = vld [vmem:[%s4 + $0x2c8] sm:$0xff]
  %v3898 = vld [vmem:[%s4 + $0x2d0] sm:$0xff]
  %v3899 = vld [vmem:[%s4 + $0x2d8] sm:$0xff]
  %v3900 = vld [vmem:[%s4 + $0x2e0] sm:$0xff]
  %v3901 = vld [vmem:[%s4 + $0x2e8] sm:$0xff]
  %v3902 = vld [vmem:[%s4 + $0x2f0] sm:$0xff]
  %v3903 = vld [vmem:[%s4 + $0x2f8] sm:$0xff]
  %v3904 = vld [vmem:[%s4 + $0x300] sm:$0xff]
  %v3905 = vld [vmem:[%s4 + $0x308] sm:$0xff]
  %v3906 = vld [vmem:[%s4 + $0x310] sm:$0xff]
  %v3907 = vld [vmem:[%s4 + $0x318] sm:$0xff]
  %v3908 = vld [vmem:[%s4 + $0x320] sm:$0xff]
  %v3909 = vld [vmem:[%s4 + $0x328] sm:$0xff]
  %v3910 = vld [vmem:[%s4 + $0x330] sm:$0xff]
  %v3911 = vld [vmem:[%s4 + $0x338] sm:$0xff]
  %v3912 = vld [vmem:[%s4 + $0x340] sm:$0xff]
  %v3913 = vld [vmem:[%s4 + $0x348] sm:$0xff]
  %v3914 = vld [vmem:[%s4 + $0x350] sm:$0xff]
  %v3915 = vld [vmem:[%s4 + $0x358] sm:$0xff]
  %v3916 = vld [vmem:[%s4 + $0x360] sm:$0xff]
  %v3917 = vld [vmem:[%s4 + $0x368] sm:$0xff]
  %v3918 = vld [vmem:[%s4 + $0x370] sm:$0xff]
  %v3919 = vld [vmem:[%s4 + $0x378] sm:$0xff]
  %v3920 = vld [vmem:[%s4 + $0x380] sm:$0xff]
  %v3921 = vld [vmem:[%s4 + $0x388] sm:$0xff]
  %v3922 = vld [vmem:[%s4 + $0x390] sm:$0xff]
  %v3923 = vld [vmem:[%s4 + $0x398] sm:$0xff]
  %v3924 = vld [vmem:[%s4 + $0x3a0] sm:$0xff]
  %v3925 = vld [vmem:[%s4 + $0x3a8] sm:$0xff]
  %v3926 = vld [vmem:[%s4 + $0x3b0] sm:$0xff]
  %v3927 = vld [vmem:[%s4 + $0x3b8] sm:$0xff]
  %v3928 = vld [vmem:[%s4 + $0x3c0] sm:$0xff]
  %v3929 = vld [vmem:[%s4 + $0x3c8] sm:$0xff]
  %v3930 = vld [vmem:[%s4 + $0x3d0] sm:$0xff]
  %v3931 = vld [vmem:[%s4 + $0x3d8] sm:$0xff]
  %v3932 = vld [vmem:[%s4 + $0x3e0] sm:$0xff]
  %v3933 = vld [vmem:[%s4 + $0x3e8] sm:$0xff]
  %v3934 = vld [vmem:[%s4 + $0x3f0] sm:$0xff]
  %v3935 = vld [vmem:[%s4 + $0x3f8] sm:$0xff]
  %3936 = vmatprep.subr.mxu0 %v3809
  %3937 = vmatpush1.msra.mxu0 %v3808
  %3938 = vmatprep.subr.mxu0 %v3813
  %3939 = vmatpush1.msra.mxu0 %v3812
  %3940 = vmatprep.subr.mxu0 %v3817
  %3941 = vmatpush1.msra.mxu0 %v3816
  %3942 = vmatprep.subr.mxu0 %v3821
  %3943 = vmatpush1.msra.mxu0 %v3820
  %3944 = vmatprep.subr.mxu0 %v3825
  %3945 = vmatpush1.msra.mxu0 %v3824
  %3946 = vmatprep.subr.mxu0 %v3829
  %3947 = vmatpush1.msra.mxu0 %v3828
  %3948 = vmatprep.subr.mxu0 %v3833
  %3949 = vmatpush1.msra.mxu0 %v3832
  %3950 = vmatprep.subr.mxu0 %v3837
  %3951 = vmatpush1.msra.mxu0 %v3836
  %3952 = vmatprep.subr.mxu0 %v3841
  %3953 = vmatpush1.msra.mxu0 %v3840
  %3954 = vmatprep.subr.mxu0 %v3845
  %3955 = vmatpush1.msra.mxu0 %v3844
  %3956 = vmatprep.subr.mxu0 %v3849
  %3957 = vmatpush1.msra.mxu0 %v3848
  %3958 = vmatprep.subr.mxu0 %v3853
  %3959 = vmatpush1.msra.mxu0 %v3852
  %3960 = vmatprep.subr.mxu0 %v3857
  %3961 = vmatpush1.msra.mxu0 %v3856
  %3962 = vmatprep.subr.mxu0 %v3861
  %3963 = vmatpush1.msra.mxu0 %v3860
  %3964 = vmatprep.subr.mxu0 %v3865
  %3965 = vmatpush1.msra.mxu0 %v3864
  %3966 = vmatprep.subr.mxu0 %v3869
  %3967 = vmatpush1.msra.mxu0 %v3868
  %3968 = vmatprep.subr.mxu0 %v3873
  %3969 = vmatpush1.msra.mxu0 %v3872
  %3970 = vmatprep.subr.mxu0 %v3877
  %3971 = vmatpush1.msra.mxu0 %v3876
  %3972 = vmatprep.subr.mxu0 %v3881
  %3973 = vmatpush1.msra.mxu0 %v3880
  %3974 = vmatprep.subr.mxu0 %v3885
  %3975 = vmatpush1.msra.mxu0 %v3884
  %3976 = vmatprep.subr.mxu0 %v3889
  %3977 = vmatpush1.msra.mxu0 %v3888
  %3978 = vmatprep.subr.mxu0 %v3893
  %3979 = vmatpush1.msra.mxu0 %v3892
  %3980 = vmatprep.subr.mxu0 %v3897
  %3981 = vmatpush1.msra.mxu0 %v3896
  %3982 = vmatprep.subr.mxu0 %v3901
  %3983 = vmatpush1.msra.mxu0 %v3900
  %3984 = vmatprep.subr.mxu0 %v3905
  %3985 = vmatpush1.msra.mxu0 %v3904
  %3986 = vmatprep.subr.mxu0 %v3909
  %3987 = vmatpush1.msra.mxu0 %v3908
  %3988 = vmatprep.subr.mxu0 %v3913
  %3989 = vmatpush1.msra.mxu0 %v3912
  %3990 = vmatprep.subr.mxu0 %v3917
  %3991 = vmatpush1.msra.mxu0 %v3916
  %3992 = vmatprep.subr.mxu0 %v3921
  %3993 = vmatpush1.msra.mxu0 %v3920
  %3994 = vmatprep.subr.mxu0 %v3925
  %3995 = vmatpush1.msra.mxu0 %v3924
  %3996 = vmatprep.subr.mxu0 %v3929
  %3997 = vmatpush1.msra.mxu0 %v3928
  %3998 = vmatprep.subr.mxu0 %v3933
  %3999 = vmatpush1.msra.mxu0 %v3932
  %4000 = vmatprep.mubr.f32.mxu0 %v3568
  %4001 = vmatmul.mubr.f32.gmra.mrb[0].mxu0 %v3807
  %v4002 = vpop.f32.mrb[0].mxu0
  %v4003 = vadd.f32 %v355, %v4002
  %v4004 = vpop.f32.mrb[0].mxu0
  %v4005 = vadd.f32 %v359, %v4004
  %4006 = vdwg.mxu0
  %4007 = vmatprep.subr.mxu0 %v3811
  %4008 = vmatpush1.msra.mxu0 %v3810
  %4009 = vmatprep.subr.mxu0 %v3815
  %4010 = vmatpush1.msra.mxu0 %v3814
  %4011 = vmatprep.subr.mxu0 %v3819
  %4012 = vmatpush1.msra.mxu0 %v3818
  %4013 = vmatprep.subr.mxu0 %v3823
  %4014 = vmatpush1.msra.mxu0 %v3822
  %4015 = vmatprep.subr.mxu0 %v3827
  %4016 = vmatpush1.msra.mxu0 %v3826
  %4017 = vmatprep.subr.mxu0 %v3831
  %4018 = vmatpush1.msra.mxu0 %v3830
  %4019 = vmatprep.subr.mxu0 %v3835
  %4020 = vmatpush1.msra.mxu0 %v3834
  %4021 = vmatprep.subr.mxu0 %v3839
  %4022 = vmatpush1.msra.mxu0 %v3838
  %4023 = vmatprep.subr.mxu0 %v3843
  %4024 = vmatpush1.msra.mxu0 %v3842
  %4025 = vmatprep.subr.mxu0 %v3847
  %4026 = vmatpush1.msra.mxu0 %v3846
  %4027 = vmatprep.subr.mxu0 %v3851
  %4028 = vmatpush1.msra.mxu0 %v3850
  %4029 = vmatprep.subr.mxu0 %v3855
  %4030 = vmatpush1.msra.mxu0 %v3854
  %4031 = vmatprep.subr.mxu0 %v3859
  %4032 = vmatpush1.msra.mxu0 %v3858
  %4033 = vmatprep.subr.mxu0 %v3863
  %4034 = vmatpush1.msra.mxu0 %v3862
  %4035 = vmatprep.subr.mxu0 %v3867
  %4036 = vmatpush1.msra.mxu0 %v3866
  %4037 = vmatprep.subr.mxu0 %v3871
  %4038 = vmatpush1.msra.mxu0 %v3870
  %4039 = vmatprep.subr.mxu0 %v3875
  %4040 = vmatpush1.msra.mxu0 %v3874
  %4041 = vmatprep.subr.mxu0 %v3879
  %4042 = vmatpush1.msra.mxu0 %v3878
  %4043 = vmatprep.subr.mxu0 %v3883
  %4044 = vmatpush1.msra.mxu0 %v3882
  %4045 = vmatprep.subr.mxu0 %v3887
  %4046 = vmatpush1.msra.mxu0 %v3886
  %4047 = vmatprep.subr.mxu0 %v3891
  %4048 = vmatpush1.msra.mxu0 %v3890
  %4049 = vmatprep.subr.mxu0 %v3895
  %4050 = vmatpush1.msra.mxu0 %v3894
  %4051 = vmatprep.subr.mxu0 %v3899
  %4052 = vmatpush1.msra.mxu0 %v3898
  %4053 = vmatprep.subr.mxu0 %v3903
  %4054 = vmatpush1.msra.mxu0 %v3902
  %4055 = vmatprep.subr.mxu0 %v3907
  %4056 = vmatpush1.msra.mxu0 %v3906
  %4057 = vmatprep.subr.mxu0 %v3911
  %4058 = vmatpush1.msra.mxu0 %v3910
  %4059 = vmatprep.subr.mxu0 %v3915
  %4060 = vmatpush1.msra.mxu0 %v3914
  %4061 = vmatprep.subr.mxu0 %v3919
  %4062 = vmatpush1.msra.mxu0 %v3918
  %4063 = vmatprep.subr.mxu0 %v3923
  %4064 = vmatpush1.msra.mxu0 %v3922
  %4065 = vmatprep.subr.mxu0 %v3927
  %4066 = vmatpush1.msra.mxu0 %v3926
  %4067 = vmatprep.subr.mxu0 %v3931
  %4068 = vmatpush1.msra.mxu0 %v3930
  %4069 = vmatprep.subr.mxu0 %v3935
  %4070 = vmatpush1.msra.mxu0 %v3934
  %4071 = vmatprep.mubr.f32.mxu0 %v3568
  %4072 = vmatmul.mubr.f32.gmra.mrb[0].mxu0 %v3807
  %v4073 = vpop.f32.mrb[0].mxu0
  %v4074 = vadd.f32 %v363, %v4073
  %v4075 = vpop.f32.mrb[0].mxu0
  %v4076 = vadd.f32 %v367, %v4075
  %4077 = vdwg.mxu0
  %v4078 = vxor.u32 %v4003, 2147483648
  %v4079 = vmul.f32 %v4078, 1.442695
  %v4080 = vpow.pop %v4079
  %v4081 = vadd.f32 %v4080, 1.0
  %v4082 = vrcp.pop %v4081
  %v4083 = vmul.f32 1.0, %v4082
  %v4084 = vxor.u32 %v4005, 2147483648
  %v4085 = vmul.f32 %v4084, 1.442695
  %v4086 = vpow.pop %v4085
  %v4087 = vadd.f32 %v4086, 1.0
  %v4088 = vrcp.pop %v4087
  %v4089 = vmul.f32 1.0, %v4088
  %v4090 = vtanh.pop %v4074
  %v4091 = vxor.u32 %v4076, 2147483648
  %v4092 = vmul.f32 %v4091, 1.442695
  %v4093 = vpow.pop %v4092
  %v4094 = vadd.f32 %v4093, 1.0
  %v4095 = vrcp.pop %v4094
  %v4096 = vmul.f32 1.0, %v4095
  %v4097 = vmul.f32 %v4089, %v3566
  %v4098 = vmul.f32 %v4083, %v4090
  %v4099 = vadd.f32 %v4097, %v4098
  %v4100 = vtanh.pop %v4099
  %v4101 = vmul.f32 %v4096, %v4100
  %4102 = vst [vmem:[#allocation3 + $0x30] sm:$0xff] %v4101
  %v4103 = vld [vmem:[#allocation2 + $0xe0] sm:$0xff]
  %v4104 = vld [vmem:[#allocation2 + $0xe8] sm:$0xff]
  %v4105 = vld [vmem:[#allocation2 + $0xf0] sm:$0xff]
  %v4106 = vld [vmem:[#allocation2 + $0xf8] sm:$0xff]
  %v4107 = vld [vmem:[%s2] sm:$0xff]
  %v4108 = vld [vmem:[%s2 + $0x8] sm:$0xff]
  %v4109 = vld [vmem:[%s2 + $0x10] sm:$0xff]
  %v4110 = vld [vmem:[%s2 + $0x18] sm:$0xff]
  %v4111 = vld [vmem:[%s2 + $0x20] sm:$0xff]
  %v4112 = vld [vmem:[%s2 + $0x28] sm:$0xff]
  %v4113 = vld [vmem:[%s2 + $0x30] sm:$0xff]
  %v4114 = vld [vmem:[%s2 + $0x38] sm:$0xff]
  %v4115 = vld [vmem:[%s2 + $0x40] sm:$0xff]
  %v4116 = vld [vmem:[%s2 + $0x48] sm:$0xff]
  %v4117 = vld [vmem:[%s2 + $0x50] sm:$0xff]
  %v4118 = vld [vmem:[%s2 + $0x58] sm:$0xff]
  %v4119 = vld [vmem:[%s2 + $0x60] sm:$0xff]
  %v4120 = vld [vmem:[%s2 + $0x68] sm:$0xff]
  %v4121 = vld [vmem:[%s2 + $0x70] sm:$0xff]
  %v4122 = vld [vmem:[%s2 + $0x78] sm:$0xff]
  %v4123 = vld [vmem:[%s2 + $0x80] sm:$0xff]
  %v4124 = vld [vmem:[%s2 + $0x88] sm:$0xff]
  %v4125 = vld [vmem:[%s2 + $0x90] sm:$0xff]
  %v4126 = vld [vmem:[%s2 + $0x98] sm:$0xff]
  %v4127 = vld [vmem:[%s2 + $0xa0] sm:$0xff]
  %v4128 = vld [vmem:[%s2 + $0xa8] sm:$0xff]
  %v4129 = vld [vmem:[%s2 + $0xb0] sm:$0xff]
  %v4130 = vld [vmem:[%s2 + $0xb8] sm:$0xff]
  %v4131 = vld [vmem:[%s2 + $0xc0] sm:$0xff]
  %v4132 = vld [vmem:[%s2 + $0xc8] sm:$0xff]
  %v4133 = vld [vmem:[%s2 + $0xd0] sm:$0xff]
  %v4134 = vld [vmem:[%s2 + $0xd8] sm:$0xff]
  %v4135 = vld [vmem:[%s2 + $0xe0] sm:$0xff]
  %v4136 = vld [vmem:[%s2 + $0xe8] sm:$0xff]
  %v4137 = vld [vmem:[%s2 + $0xf0] sm:$0xff]
  %v4138 = vld [vmem:[%s2 + $0xf8] sm:$0xff]
  %v4139 = vld [vmem:[%s2 + $0x100] sm:$0xff]
  %v4140 = vld [vmem:[%s2 + $0x108] sm:$0xff]
  %v4141 = vld [vmem:[%s2 + $0x110] sm:$0xff]
  %v4142 = vld [vmem:[%s2 + $0x118] sm:$0xff]
  %v4143 = vld [vmem:[%s2 + $0x120] sm:$0xff]
  %v4144 = vld [vmem:[%s2 + $0x128] sm:$0xff]
  %v4145 = vld [vmem:[%s2 + $0x130] sm:$0xff]
  %v4146 = vld [vmem:[%s2 + $0x138] sm:$0xff]
  %v4147 = vld [vmem:[%s2 + $0x140] sm:$0xff]
  %v4148 = vld [vmem:[%s2 + $0x148] sm:$0xff]
  %v4149 = vld [vmem:[%s2 + $0x150] sm:$0xff]
  %v4150 = vld [vmem:[%s2 + $0x158] sm:$0xff]
  %v4151 = vld [vmem:[%s2 + $0x160] sm:$0xff]
  %v4152 = vld [vmem:[%s2 + $0x168] sm:$0xff]
  %v4153 = vld [vmem:[%s2 + $0x170] sm:$0xff]
  %v4154 = vld [vmem:[%s2 + $0x178] sm:$0xff]
  %v4155 = vld [vmem:[%s2 + $0x180] sm:$0xff]
  %v4156 = vld [vmem:[%s2 + $0x188] sm:$0xff]
  %v4157 = vld [vmem:[%s2 + $0x190] sm:$0xff]
  %v4158 = vld [vmem:[%s2 + $0x198] sm:$0xff]
  %v4159 = vld [vmem:[%s2 + $0x1a0] sm:$0xff]
  %v4160 = vld [vmem:[%s2 + $0x1a8] sm:$0xff]
  %v4161 = vld [vmem:[%s2 + $0x1b0] sm:$0xff]
  %v4162 = vld [vmem:[%s2 + $0x1b8] sm:$0xff]
  %v4163 = vld [vmem:[%s2 + $0x1c0] sm:$0xff]
  %v4164 = vld [vmem:[%s2 + $0x1c8] sm:$0xff]
  %v4165 = vld [vmem:[%s2 + $0x1d0] sm:$0xff]
  %v4166 = vld [vmem:[%s2 + $0x1d8] sm:$0xff]
  %v4167 = vld [vmem:[%s2 + $0x1e0] sm:$0xff]
  %v4168 = vld [vmem:[%s2 + $0x1e8] sm:$0xff]
  %v4169 = vld [vmem:[%s2 + $0x1f0] sm:$0xff]
  %v4170 = vld [vmem:[%s2 + $0x1f8] sm:$0xff]
  %4171 = vmatprep.subr.mxu0 %v4108
  %4172 = vmatpush1.msra.mxu0 %v4107
  %4173 = vmatprep.subr.mxu0 %v4112
  %4174 = vmatpush1.msra.mxu0 %v4111
  %4175 = vmatprep.subr.mxu0 %v4116
  %4176 = vmatpush1.msra.mxu0 %v4115
  %4177 = vmatprep.subr.mxu0 %v4120
  %4178 = vmatpush1.msra.mxu0 %v4119
  %4179 = vmatprep.subr.mxu0 %v4124
  %4180 = vmatpush1.msra.mxu0 %v4123
  %4181 = vmatprep.subr.mxu0 %v4128
  %4182 = vmatpush1.msra.mxu0 %v4127
  %4183 = vmatprep.subr.mxu0 %v4132
  %4184 = vmatpush1.msra.mxu0 %v4131
  %4185 = vmatprep.subr.mxu0 %v4136
  %4186 = vmatpush1.msra.mxu0 %v4135
  %4187 = vmatprep.subr.mxu0 %v4140
  %4188 = vmatpush1.msra.mxu0 %v4139
  %4189 = vmatprep.subr.mxu0 %v4144
  %4190 = vmatpush1.msra.mxu0 %v4143
  %4191 = vmatprep.subr.mxu0 %v4148
  %4192 = vmatpush1.msra.mxu0 %v4147
  %4193 = vmatprep.subr.mxu0 %v4152
  %4194 = vmatpush1.msra.mxu0 %v4151
  %4195 = vmatprep.subr.mxu0 %v4156
  %4196 = vmatpush1.msra.mxu0 %v4155
  %4197 = vmatprep.subr.mxu0 %v4160
  %4198 = vmatpush1.msra.mxu0 %v4159
  %4199 = vmatprep.subr.mxu0 %v4164
  %4200 = vmatpush1.msra.mxu0 %v4163
  %4201 = vmatprep.subr.mxu0 %v4168
  %4202 = vmatpush1.msra.mxu0 %v4167
  %4203 = vmatprep.subr.mxu0 0.0
  %4204 = vmatpush1.msra.mxu0 0.0
  %4205 = vmatprep.subr.mxu0 0.0
  %4206 = vmatpush1.msra.mxu0 0.0
  %4207 = vmatprep.subr.mxu0 0.0
  %4208 = vmatpush1.msra.mxu0 0.0
  %4209 = vmatprep.subr.mxu0 0.0
  %4210 = vmatpush1.msra.mxu0 0.0
  %4211 = vmatprep.subr.mxu0 0.0
  %4212 = vmatpush1.msra.mxu0 0.0
  %4213 = vmatprep.subr.mxu0 0.0
  %4214 = vmatpush1.msra.mxu0 0.0
  %4215 = vmatprep.subr.mxu0 0.0
  %4216 = vmatpush1.msra.mxu0 0.0
  %4217 = vmatprep.subr.mxu0 0.0
  %4218 = vmatpush1.msra.mxu0 0.0
  %4219 = vmatprep.subr.mxu0 0.0
  %4220 = vmatpush1.msra.mxu0 0.0
  %4221 = vmatprep.subr.mxu0 0.0
  %4222 = vmatpush1.msra.mxu0 0.0
  %4223 = vmatprep.subr.mxu0 0.0
  %4224 = vmatpush1.msra.mxu0 0.0
  %4225 = vmatprep.subr.mxu0 0.0
  %4226 = vmatpush1.msra.mxu0 0.0
  %4227 = vmatprep.subr.mxu0 0.0
  %4228 = vmatpush1.msra.mxu0 0.0
  %4229 = vmatprep.subr.mxu0 0.0
  %4230 = vmatpush1.msra.mxu0 0.0
  %4231 = vmatprep.subr.mxu0 0.0
  %4232 = vmatpush1.msra.mxu0 0.0
  %4233 = vmatprep.subr.mxu0 0.0
  %4234 = vmatpush1.msra.mxu0 0.0
  %4235 = vmatprep.mubr.f32.mxu0 0.0
  %4236 = vmatmul.mubr.f32.gmra.mrb[0].mxu0 %v3807
  %v4237 = vpop.f32.mrb[0].mxu0
  %v4238 = vadd.f32 0.0, %v4237
  %v4239 = vpop.f32.mrb[0].mxu0
  %v4240 = vadd.f32 0.0, %v4239
  %4241 = vdwg.mxu0
  %4242 = vmatprep.subr.mxu0 %v4110
  %4243 = vmatpush1.msra.mxu0 %v4109
  %4244 = vmatprep.subr.mxu0 %v4114
  %4245 = vmatpush1.msra.mxu0 %v4113
  %4246 = vmatprep.subr.mxu0 %v4118
  %4247 = vmatpush1.msra.mxu0 %v4117
  %4248 = vmatprep.subr.mxu0 %v4122
  %4249 = vmatpush1.msra.mxu0 %v4121
  %4250 = vmatprep.subr.mxu0 %v4126
  %4251 = vmatpush1.msra.mxu0 %v4125
  %4252 = vmatprep.subr.mxu0 %v4130
  %4253 = vmatpush1.msra.mxu0 %v4129
  %4254 = vmatprep.subr.mxu0 %v4134
  %4255 = vmatpush1.msra.mxu0 %v4133
  %4256 = vmatprep.subr.mxu0 %v4138
  %4257 = vmatpush1.msra.mxu0 %v4137
  %4258 = vmatprep.subr.mxu0 %v4142
  %4259 = vmatpush1.msra.mxu0 %v4141
  %4260 = vmatprep.subr.mxu0 %v4146
  %4261 = vmatpush1.msra.mxu0 %v4145
  %4262 = vmatprep.subr.mxu0 %v4150
  %4263 = vmatpush1.msra.mxu0 %v4149
  %4264 = vmatprep.subr.mxu0 %v4154
  %4265 = vmatpush1.msra.mxu0 %v4153
  %4266 = vmatprep.subr.mxu0 %v4158
  %4267 = vmatpush1.msra.mxu0 %v4157
  %4268 = vmatprep.subr.mxu0 %v4162
  %4269 = vmatpush1.msra.mxu0 %v4161
  %4270 = vmatprep.subr.mxu0 %v4166
  %4271 = vmatpush1.msra.mxu0 %v4165
  %4272 = vmatprep.subr.mxu0 %v4170
  %4273 = vmatpush1.msra.mxu0 %v4169
  %4274 = vmatprep.subr.mxu0 0.0
  %4275 = vmatpush1.msra.mxu0 0.0
  %4276 = vmatprep.subr.mxu0 0.0
  %4277 = vmatpush1.msra.mxu0 0.0
  %4278 = vmatprep.subr.mxu0 0.0
  %4279 = vmatpush1.msra.mxu0 0.0
  %4280 = vmatprep.subr.mxu0 0.0
  %4281 = vmatpush1.msra.mxu0 0.0
  %4282 = vmatprep.subr.mxu0 0.0
  %4283 = vmatpush1.msra.mxu0 0.0
  %4284 = vmatprep.subr.mxu0 0.0
  %4285 = vmatpush1.msra.mxu0 0.0
  %4286 = vmatprep.subr.mxu0 0.0
  %4287 = vmatpush1.msra.mxu0 0.0
  %4288 = vmatprep.subr.mxu0 0.0
  %4289 = vmatpush1.msra.mxu0 0.0
  %4290 = vmatprep.subr.mxu0 0.0
  %4291 = vmatpush1.msra.mxu0 0.0
  %4292 = vmatprep.subr.mxu0 0.0
  %4293 = vmatpush1.msra.mxu0 0.0
  %4294 = vmatprep.subr.mxu0 0.0
  %4295 = vmatpush1.msra.mxu0 0.0
  %4296 = vmatprep.subr.mxu0 0.0
  %4297 = vmatpush1.msra.mxu0 0.0
  %4298 = vmatprep.subr.mxu0 0.0
  %4299 = vmatpush1.msra.mxu0 0.0
  %4300 = vmatprep.subr.mxu0 0.0
  %4301 = vmatpush1.msra.mxu0 0.0
  %4302 = vmatprep.subr.mxu0 0.0
  %4303 = vmatpush1.msra.mxu0 0.0
  %4304 = vmatprep.subr.mxu0 0.0
  %4305 = vmatpush1.msra.mxu0 0.0
  %4306 = vmatprep.mubr.f32.mxu0 0.0
  %4307 = vmatmul.mubr.f32.gmra.mrb[0].mxu0 %v3807
  %v4308 = vpop.f32.mrb[0].mxu0
  %v4309 = vadd.f32 0.0, %v4308
  %v4310 = vpop.f32.mrb[0].mxu0
  %v4311 = vadd.f32 0.0, %v4310
  %4312 = vdwg.mxu0
  %v4313 = vadd.f32 %v4103, %v4238
  %v4314 = vadd.f32 %v4104, %v4240
  %v4315 = vadd.f32 %v4105, %v4309
  %v4316 = vadd.f32 %v4106, %v4311
  %v4317 = vxor.u32 %v4313, 2147483648
  %v4318 = vmul.f32 %v4317, 1.442695
  %v4319 = vpow.pop %v4318
  %v4320 = vadd.f32 %v4319, 1.0
  %v4321 = vrcp.pop %v4320
  %v4322 = vmul.f32 1.0, %v4321
  %v4323 = vxor.u32 %v4314, 2147483648
  %v4324 = vmul.f32 %v4323, 1.442695
  %v4325 = vpow.pop %v4324
  %v4326 = vadd.f32 %v4325, 1.0
  %v4327 = vrcp.pop %v4326
  %v4328 = vmul.f32 1.0, %v4327
  %v4329 = vtanh.pop %v4315
  %v4330 = vxor.u32 %v4316, 2147483648
  %v4331 = vmul.f32 %v4330, 1.442695
  %v4332 = vpow.pop %v4331
  %v4333 = vadd.f32 %v4332, 1.0
  %v4334 = vrcp.pop %v4333
  %v4335 = vmul.f32 1.0, %v4334
  %v4336 = vmul.f32 %v4328, %v3805
  %v4337 = vmul.f32 %v4322, %v4329
  %v4338 = vadd.f32 %v4336, %v4337
  %v4339 = vtanh.pop %v4338
  %v4340 = vmul.f32 %v4335, %v4339
  %v4341 = vld [vmem:[%s4] sm:$0xff]
  %v4342 = vld [vmem:[%s4 + $0x8] sm:$0xff]
  %v4343 = vld [vmem:[%s4 + $0x10] sm:$0xff]
  %v4344 = vld [vmem:[%s4 + $0x18] sm:$0xff]
  %v4345 = vld [vmem:[%s4 + $0x20] sm:$0xff]
  %v4346 = vld [vmem:[%s4 + $0x28] sm:$0xff]
  %v4347 = vld [vmem:[%s4 + $0x30] sm:$0xff]
  %v4348 = vld [vmem:[%s4 + $0x38] sm:$0xff]
  %v4349 = vld [vmem:[%s4 + $0x40] sm:$0xff]
  %v4350 = vld [vmem:[%s4 + $0x48] sm:$0xff]
  %v4351 = vld [vmem:[%s4 + $0x50] sm:$0xff]
  %v4352 = vld [vmem:[%s4 + $0x58] sm:$0xff]
  %v4353 = vld [vmem:[%s4 + $0x60] sm:$0xff]
  %v4354 = vld [vmem:[%s4 + $0x68] sm:$0xff]
  %v4355 = vld [vmem:[%s4 + $0x70] sm:$0xff]
  %v4356 = vld [vmem:[%s4 + $0x78] sm:$0xff]
  %v4357 = vld [vmem:[%s4 + $0x80] sm:$0xff]
  %v4358 = vld [vmem:[%s4 + $0x88] sm:$0xff]
  %v4359 = vld [vmem:[%s4 + $0x90] sm:$0xff]
  %v4360 = vld [vmem:[%s4 + $0x98] sm:$0xff]
  %v4361 = vld [vmem:[%s4 + $0xa0] sm:$0xff]
  %v4362 = vld [vmem:[%s4 + $0xa8] sm:$0xff]
  %v4363 = vld [vmem:[%s4 + $0xb0] sm:$0xff]
  %v4364 = vld [vmem:[%s4 + $0xb8] sm:$0xff]
  %v4365 = vld [vmem:[%s4 + $0xc0] sm:$0xff]
  %v4366 = vld [vmem:[%s4 + $0xc8] sm:$0xff]
  %v4367 = vld [vmem:[%s4 + $0xd0] sm:$0xff]
  %v4368 = vld [vmem:[%s4 + $0xd8] sm:$0xff]
  %v4369 = vld [vmem:[%s4 + $0xe0] sm:$0xff]
  %v4370 = vld [vmem:[%s4 + $0xe8] sm:$0xff]
  %v4371 = vld [vmem:[%s4 + $0xf0] sm:$0xff]
  %v4372 = vld [vmem:[%s4 + $0xf8] sm:$0xff]
  %v4373 = vld [vmem:[%s4 + $0x100] sm:$0xff]
  %v4374 = vld [vmem:[%s4 + $0x108] sm:$0xff]
  %v4375 = vld [vmem:[%s4 + $0x110] sm:$0xff]
  %v4376 = vld [vmem:[%s4 + $0x118] sm:$0xff]
  %v4377 = vld [vmem:[%s4 + $0x120] sm:$0xff]
  %v4378 = vld [vmem:[%s4 + $0x128] sm:$0xff]
  %v4379 = vld [vmem:[%s4 + $0x130] sm:$0xff]
  %v4380 = vld [vmem:[%s4 + $0x138] sm:$0xff]
  %v4381 = vld [vmem:[%s4 + $0x140] sm:$0xff]
  %v4382 = vld [vmem:[%s4 + $0x148] sm:$0xff]
  %v4383 = vld [vmem:[%s4 + $0x150] sm:$0xff]
  %v4384 = vld [vmem:[%s4 + $0x158] sm:$0xff]
  %v4385 = vld [vmem:[%s4 + $0x160] sm:$0xff]
  %v4386 = vld [vmem:[%s4 + $0x168] sm:$0xff]
  %v4387 = vld [vmem:[%s4 + $0x170] sm:$0xff]
  %v4388 = vld [vmem:[%s4 + $0x178] sm:$0xff]
  %v4389 = vld [vmem:[%s4 + $0x180] sm:$0xff]
  %v4390 = vld [vmem:[%s4 + $0x188] sm:$0xff]
  %v4391 = vld [vmem:[%s4 + $0x190] sm:$0xff]
  %v4392 = vld [vmem:[%s4 + $0x198] sm:$0xff]
  %v4393 = vld [vmem:[%s4 + $0x1a0] sm:$0xff]
  %v4394 = vld [vmem:[%s4 + $0x1a8] sm:$0xff]
  %v4395 = vld [vmem:[%s4 + $0x1b0] sm:$0xff]
  %v4396 = vld [vmem:[%s4 + $0x1b8] sm:$0xff]
  %v4397 = vld [vmem:[%s4 + $0x1c0] sm:$0xff]
  %v4398 = vld [vmem:[%s4 + $0x1c8] sm:$0xff]
  %v4399 = vld [vmem:[%s4 + $0x1d0] sm:$0xff]
  %v4400 = vld [vmem:[%s4 + $0x1d8] sm:$0xff]
  %v4401 = vld [vmem:[%s4 + $0x1e0] sm:$0xff]
  %v4402 = vld [vmem:[%s4 + $0x1e8] sm:$0xff]
  %v4403 = vld [vmem:[%s4 + $0x1f0] sm:$0xff]
  %v4404 = vld [vmem:[%s4 + $0x1f8] sm:$0xff]
  %v4405 = vld [vmem:[%s4 + $0x200] sm:$0xff]
  %v4406 = vld [vmem:[%s4 + $0x208] sm:$0xff]
  %v4407 = vld [vmem:[%s4 + $0x210] sm:$0xff]
  %v4408 = vld [vmem:[%s4 + $0x218] sm:$0xff]
  %v4409 = vld [vmem:[%s4 + $0x220] sm:$0xff]
  %v4410 = vld [vmem:[%s4 + $0x228] sm:$0xff]
  %v4411 = vld [vmem:[%s4 + $0x230] sm:$0xff]
  %v4412 = vld [vmem:[%s4 + $0x238] sm:$0xff]
  %v4413 = vld [vmem:[%s4 + $0x240] sm:$0xff]
  %v4414 = vld [vmem:[%s4 + $0x248] sm:$0xff]
  %v4415 = vld [vmem:[%s4 + $0x250] sm:$0xff]
  %v4416 = vld [vmem:[%s4 + $0x258] sm:$0xff]
  %v4417 = vld [vmem:[%s4 + $0x260] sm:$0xff]
  %v4418 = vld [vmem:[%s4 + $0x268] sm:$0xff]
  %v4419 = vld [vmem:[%s4 + $0x270] sm:$0xff]
  %v4420 = vld [vmem:[%s4 + $0x278] sm:$0xff]
  %v4421 = vld [vmem:[%s4 + $0x280] sm:$0xff]
  %v4422 = vld [vmem:[%s4 + $0x288] sm:$0xff]
  %v4423 = vld [vmem:[%s4 + $0x290] sm:$0xff]
  %v4424 = vld [vmem:[%s4 + $0x298] sm:$0xff]
  %v4425 = vld [vmem:[%s4 + $0x2a0] sm:$0xff]
  %v4426 = vld [vmem:[%s4 + $0x2a8] sm:$0xff]
  %v4427 = vld [vmem:[%s4 + $0x2b0] sm:$0xff]
  %v4428 = vld [vmem:[%s4 + $0x2b8] sm:$0xff]
  %v4429 = vld [vmem:[%s4 + $0x2c0] sm:$0xff]
  %v4430 = vld [vmem:[%s4 + $0x2c8] sm:$0xff]
  %v4431 = vld [vmem:[%s4 + $0x2d0] sm:$0xff]
  %v4432 = vld [vmem:[%s4 + $0x2d8] sm:$0xff]
  %v4433 = vld [vmem:[%s4 + $0x2e0] sm:$0xff]
  %v4434 = vld [vmem:[%s4 + $0x2e8] sm:$0xff]
  %v4435 = vld [vmem:[%s4 + $0x2f0] sm:$0xff]
  %v4436 = vld [vmem:[%s4 + $0x2f8] sm:$0xff]
  %v4437 = vld [vmem:[%s4 + $0x300] sm:$0xff]
  %v4438 = vld [vmem:[%s4 + $0x308] sm:$0xff]
  %v4439 = vld [vmem:[%s4 + $0x310] sm:$0xff]
  %v4440 = vld [vmem:[%s4 + $0x318] sm:$0xff]
  %v4441 = vld [vmem:[%s4 + $0x320] sm:$0xff]
  %v4442 = vld [vmem:[%s4 + $0x328] sm:$0xff]
  %v4443 = vld [vmem:[%s4 + $0x330] sm:$0xff]
  %v4444 = vld [vmem:[%s4 + $0x338] sm:$0xff]
  %v4445 = vld [vmem:[%s4 + $0x340] sm:$0xff]
  %v4446 = vld [vmem:[%s4 + $0x348] sm:$0xff]
  %v4447 = vld [vmem:[%s4 + $0x350] sm:$0xff]
  %v4448 = vld [vmem:[%s4 + $0x358] sm:$0xff]
  %v4449 = vld [vmem:[%s4 + $0x360] sm:$0xff]
  %v4450 = vld [vmem:[%s4 + $0x368] sm:$0xff]
  %v4451 = vld [vmem:[%s4 + $0x370] sm:$0xff]
  %v4452 = vld [vmem:[%s4 + $0x378] sm:$0xff]
  %v4453 = vld [vmem:[%s4 + $0x380] sm:$0xff]
  %v4454 = vld [vmem:[%s4 + $0x388] sm:$0xff]
  %v4455 = vld [vmem:[%s4 + $0x390] sm:$0xff]
  %v4456 = vld [vmem:[%s4 + $0x398] sm:$0xff]
  %v4457 = vld [vmem:[%s4 + $0x3a0] sm:$0xff]
  %v4458 = vld [vmem:[%s4 + $0x3a8] sm:$0xff]
  %v4459 = vld [vmem:[%s4 + $0x3b0] sm:$0xff]
  %v4460 = vld [vmem:[%s4 + $0x3b8] sm:$0xff]
  %v4461 = vld [vmem:[%s4 + $0x3c0] sm:$0xff]
  %v4462 = vld [vmem:[%s4 + $0x3c8] sm:$0xff]
  %v4463 = vld [vmem:[%s4 + $0x3d0] sm:$0xff]
  %v4464 = vld [vmem:[%s4 + $0x3d8] sm:$0xff]
  %v4465 = vld [vmem:[%s4 + $0x3e0] sm:$0xff]
  %v4466 = vld [vmem:[%s4 + $0x3e8] sm:$0xff]
  %v4467 = vld [vmem:[%s4 + $0x3f0] sm:$0xff]
  %v4468 = vld [vmem:[%s4 + $0x3f8] sm:$0xff]
  %4469 = vmatprep.subr.mxu0 %v4342
  %4470 = vmatpush1.msra.mxu0 %v4341
  %4471 = vmatprep.subr.mxu0 %v4346
  %4472 = vmatpush1.msra.mxu0 %v4345
  %4473 = vmatprep.subr.mxu0 %v4350
  %4474 = vmatpush1.msra.mxu0 %v4349
  %4475 = vmatprep.subr.mxu0 %v4354
  %4476 = vmatpush1.msra.mxu0 %v4353
  %4477 = vmatprep.subr.mxu0 %v4358
  %4478 = vmatpush1.msra.mxu0 %v4357
  %4479 = vmatprep.subr.mxu0 %v4362
  %4480 = vmatpush1.msra.mxu0 %v4361
  %4481 = vmatprep.subr.mxu0 %v4366
  %4482 = vmatpush1.msra.mxu0 %v4365
  %4483 = vmatprep.subr.mxu0 %v4370
  %4484 = vmatpush1.msra.mxu0 %v4369
  %4485 = vmatprep.subr.mxu0 %v4374
  %4486 = vmatpush1.msra.mxu0 %v4373
  %4487 = vmatprep.subr.mxu0 %v4378
  %4488 = vmatpush1.msra.mxu0 %v4377
  %4489 = vmatprep.subr.mxu0 %v4382
  %4490 = vmatpush1.msra.mxu0 %v4381
  %4491 = vmatprep.subr.mxu0 %v4386
  %4492 = vmatpush1.msra.mxu0 %v4385
  %4493 = vmatprep.subr.mxu0 %v4390
  %4494 = vmatpush1.msra.mxu0 %v4389
  %4495 = vmatprep.subr.mxu0 %v4394
  %4496 = vmatpush1.msra.mxu0 %v4393
  %4497 = vmatprep.subr.mxu0 %v4398
  %4498 = vmatpush1.msra.mxu0 %v4397
  %4499 = vmatprep.subr.mxu0 %v4402
  %4500 = vmatpush1.msra.mxu0 %v4401
  %4501 = vmatprep.subr.mxu0 %v4406
  %4502 = vmatpush1.msra.mxu0 %v4405
  %4503 = vmatprep.subr.mxu0 %v4410
  %4504 = vmatpush1.msra.mxu0 %v4409
  %4505 = vmatprep.subr.mxu0 %v4414
  %4506 = vmatpush1.msra.mxu0 %v4413
  %4507 = vmatprep.subr.mxu0 %v4418
  %4508 = vmatpush1.msra.mxu0 %v4417
  %4509 = vmatprep.subr.mxu0 %v4422
  %4510 = vmatpush1.msra.mxu0 %v4421
  %4511 = vmatprep.subr.mxu0 %v4426
  %4512 = vmatpush1.msra.mxu0 %v4425
  %4513 = vmatprep.subr.mxu0 %v4430
  %4514 = vmatpush1.msra.mxu0 %v4429
  %4515 = vmatprep.subr.mxu0 %v4434
  %4516 = vmatpush1.msra.mxu0 %v4433
  %4517 = vmatprep.subr.mxu0 %v4438
  %4518 = vmatpush1.msra.mxu0 %v4437
  %4519 = vmatprep.subr.mxu0 %v4442
  %4520 = vmatpush1.msra.mxu0 %v4441
  %4521 = vmatprep.subr.mxu0 %v4446
  %4522 = vmatpush1.msra.mxu0 %v4445
  %4523 = vmatprep.subr.mxu0 %v4450
  %4524 = vmatpush1.msra.mxu0 %v4449
  %4525 = vmatprep.subr.mxu0 %v4454
  %4526 = vmatpush1.msra.mxu0 %v4453
  %4527 = vmatprep.subr.mxu0 %v4458
  %4528 = vmatpush1.msra.mxu0 %v4457
  %4529 = vmatprep.subr.mxu0 %v4462
  %4530 = vmatpush1.msra.mxu0 %v4461
  %4531 = vmatprep.subr.mxu0 %v4466
  %4532 = vmatpush1.msra.mxu0 %v4465
  %4533 = vmatprep.mubr.f32.mxu0 %v4101
  %4534 = vmatmul.mubr.f32.gmra.mrb[0].mxu0 %v4340
  %v4535 = vpop.f32.mrb[0].mxu0
  %v4536 = vadd.f32 %v355, %v4535
  %v4537 = vpop.f32.mrb[0].mxu0
  %v4538 = vadd.f32 %v359, %v4537
  %4539 = vdwg.mxu0
  %4540 = vmatprep.subr.mxu0 %v4344
  %4541 = vmatpush1.msra.mxu0 %v4343
  %4542 = vmatprep.subr.mxu0 %v4348
  %4543 = vmatpush1.msra.mxu0 %v4347
  %4544 = vmatprep.subr.mxu0 %v4352
  %4545 = vmatpush1.msra.mxu0 %v4351
  %4546 = vmatprep.subr.mxu0 %v4356
  %4547 = vmatpush1.msra.mxu0 %v4355
  %4548 = vmatprep.subr.mxu0 %v4360
  %4549 = vmatpush1.msra.mxu0 %v4359
  %4550 = vmatprep.subr.mxu0 %v4364
  %4551 = vmatpush1.msra.mxu0 %v4363
  %4552 = vmatprep.subr.mxu0 %v4368
  %4553 = vmatpush1.msra.mxu0 %v4367
  %4554 = vmatprep.subr.mxu0 %v4372
  %4555 = vmatpush1.msra.mxu0 %v4371
  %4556 = vmatprep.subr.mxu0 %v4376
  %4557 = vmatpush1.msra.mxu0 %v4375
  %4558 = vmatprep.subr.mxu0 %v4380
  %4559 = vmatpush1.msra.mxu0 %v4379
  %4560 = vmatprep.subr.mxu0 %v4384
  %4561 = vmatpush1.msra.mxu0 %v4383
  %4562 = vmatprep.subr.mxu0 %v4388
  %4563 = vmatpush1.msra.mxu0 %v4387
  %4564 = vmatprep.subr.mxu0 %v4392
  %4565 = vmatpush1.msra.mxu0 %v4391
  %4566 = vmatprep.subr.mxu0 %v4396
  %4567 = vmatpush1.msra.mxu0 %v4395
  %4568 = vmatprep.subr.mxu0 %v4400
  %4569 = vmatpush1.msra.mxu0 %v4399
  %4570 = vmatprep.subr.mxu0 %v4404
  %4571 = vmatpush1.msra.mxu0 %v4403
  %4572 = vmatprep.subr.mxu0 %v4408
  %4573 = vmatpush1.msra.mxu0 %v4407
  %4574 = vmatprep.subr.mxu0 %v4412
  %4575 = vmatpush1.msra.mxu0 %v4411
  %4576 = vmatprep.subr.mxu0 %v4416
  %4577 = vmatpush1.msra.mxu0 %v4415
  %4578 = vmatprep.subr.mxu0 %v4420
  %4579 = vmatpush1.msra.mxu0 %v4419
  %4580 = vmatprep.subr.mxu0 %v4424
  %4581 = vmatpush1.msra.mxu0 %v4423
  %4582 = vmatprep.subr.mxu0 %v4428
  %4583 = vmatpush1.msra.mxu0 %v4427
  %4584 = vmatprep.subr.mxu0 %v4432
  %4585 = vmatpush1.msra.mxu0 %v4431
  %4586 = vmatprep.subr.mxu0 %v4436
  %4587 = vmatpush1.msra.mxu0 %v4435
  %4588 = vmatprep.subr.mxu0 %v4440
  %4589 = vmatpush1.msra.mxu0 %v4439
  %4590 = vmatprep.subr.mxu0 %v4444
  %4591 = vmatpush1.msra.mxu0 %v4443
  %4592 = vmatprep.subr.mxu0 %v4448
  %4593 = vmatpush1.msra.mxu0 %v4447
  %4594 = vmatprep.subr.mxu0 %v4452
  %4595 = vmatpush1.msra.mxu0 %v4451
  %4596 = vmatprep.subr.mxu0 %v4456
  %4597 = vmatpush1.msra.mxu0 %v4455
  %4598 = vmatprep.subr.mxu0 %v4460
  %4599 = vmatpush1.msra.mxu0 %v4459
  %4600 = vmatprep.subr.mxu0 %v4464
  %4601 = vmatpush1.msra.mxu0 %v4463
  %4602 = vmatprep.subr.mxu0 %v4468
  %4603 = vmatpush1.msra.mxu0 %v4467
  %4604 = vmatprep.mubr.f32.mxu0 %v4101
  %4605 = vmatmul.mubr.f32.gmra.mrb[0].mxu0 %v4340
  %v4606 = vpop.f32.mrb[0].mxu0
  %v4607 = vadd.f32 %v363, %v4606
  %v4608 = vpop.f32.mrb[0].mxu0
  %v4609 = vadd.f32 %v367, %v4608
  %4610 = vdwg.mxu0
  %v4611 = vxor.u32 %v4536, 2147483648
  %v4612 = vmul.f32 %v4611, 1.442695
  %v4613 = vpow.pop %v4612
  %v4614 = vadd.f32 %v4613, 1.0
  %v4615 = vrcp.pop %v4614
  %v4616 = vmul.f32 1.0, %v4615
  %v4617 = vxor.u32 %v4538, 2147483648
  %v4618 = vmul.f32 %v4617, 1.442695
  %v4619 = vpow.pop %v4618
  %v4620 = vadd.f32 %v4619, 1.0
  %v4621 = vrcp.pop %v4620
  %v4622 = vmul.f32 1.0, %v4621
  %v4623 = vtanh.pop %v4607
  %v4624 = vxor.u32 %v4609, 2147483648
  %v4625 = vmul.f32 %v4624, 1.442695
  %v4626 = vpow.pop %v4625
  %v4627 = vadd.f32 %v4626, 1.0
  %v4628 = vrcp.pop %v4627
  %v4629 = vmul.f32 1.0, %v4628
  %v4630 = vmul.f32 %v4622, %v4099
  %v4631 = vmul.f32 %v4616, %v4623
  %v4632 = vadd.f32 %v4630, %v4631
  %v4633 = vtanh.pop %v4632
  %v4634 = vmul.f32 %v4629, %v4633
  %4635 = vst [vmem:[#allocation3 + $0x38] sm:$0xff] %v4634
  %v4636 = vld [vmem:[#allocation3] sm:$0xff]
  %v4637 = vld [vmem:[#allocation3 + $0x8] sm:$0xff]
  %v4638 = vld [vmem:[#allocation3 + $0x10] sm:$0xff]
  %v4639 = vld [vmem:[#allocation3 + $0x18] sm:$0xff]
  %v4640 = vld [vmem:[#allocation3 + $0x20] sm:$0xff]
  %v4641 = vld [vmem:[#allocation3 + $0x28] sm:$0xff]
  %v4642 = vld [vmem:[#allocation3 + $0x30] sm:$0xff]
  %v4643 = vld [vmem:[#allocation3 + $0x38] sm:$0xff]
  %v4644 = vld [vmem:[%s6] sm:$0xff]
  %v4645 = vld [vmem:[%s6 + $0x8] sm:$0xff]
  %v4646 = vld [vmem:[%s6 + $0x10] sm:$0xff]
  %v4647 = vld [vmem:[%s6 + $0x18] sm:$0xff]
  %v4648 = vld [vmem:[%s6 + $0x20] sm:$0xff]
  %v4649 = vld [vmem:[%s6 + $0x28] sm:$0xff]
  %v4650 = vld [vmem:[%s6 + $0x30] sm:$0xff]
  %v4651 = vld [vmem:[%s6 + $0x38] sm:$0xff]
  %v4652 = vld [vmem:[%s6 + $0x40] sm:$0xff]
  %v4653 = vld [vmem:[%s6 + $0x48] sm:$0xff]
  %v4654 = vld [vmem:[%s6 + $0x50] sm:$0xff]
  %v4655 = vld [vmem:[%s6 + $0x58] sm:$0xff]
  %v4656 = vld [vmem:[%s6 + $0x60] sm:$0xff]
  %v4657 = vld [vmem:[%s6 + $0x68] sm:$0xff]
  %v4658 = vld [vmem:[%s6 + $0x70] sm:$0xff]
  %v4659 = vld [vmem:[%s6 + $0x78] sm:$0xff]
  %v4660 = vld [vmem:[%s7] sm:$0x1]
  %v4662 = vlaneseq
  %v4663 = vshrl.u32 %v4662, 7
  %v4664 = vsub.s32 0, %v4663
  %v4665 = vrot.slane %v4660, %v4664
  %4667 = vmatprep.subr.mxu0 0.0
  %4668 = vmatpush1.msra.mxu0 %v4644
  %4669 = vmatprep.subr.mxu0 0.0
  %4670 = vmatpush1.msra.mxu0 %v4645
  %4671 = vmatprep.subr.mxu0 0.0
  %4672 = vmatpush1.msra.mxu0 %v4646
  %4673 = vmatprep.subr.mxu0 0.0
  %4674 = vmatpush1.msra.mxu0 %v4647
  %4675 = vmatprep.subr.mxu0 0.0
  %4676 = vmatpush1.msra.mxu0 %v4648
  %4677 = vmatprep.subr.mxu0 0.0
  %4678 = vmatpush1.msra.mxu0 %v4649
  %4679 = vmatprep.subr.mxu0 0.0
  %4680 = vmatpush1.msra.mxu0 %v4650
  %4681 = vmatprep.subr.mxu0 0.0
  %4682 = vmatpush1.msra.mxu0 %v4651
  %4683 = vmatprep.subr.mxu0 0.0
  %4684 = vmatpush1.msra.mxu0 %v4652
  %4685 = vmatprep.subr.mxu0 0.0
  %4686 = vmatpush1.msra.mxu0 %v4653
  %4687 = vmatprep.subr.mxu0 0.0
  %4688 = vmatpush1.msra.mxu0 %v4654
  %4689 = vmatprep.subr.mxu0 0.0
  %4690 = vmatpush1.msra.mxu0 %v4655
  %4691 = vmatprep.subr.mxu0 0.0
  %4692 = vmatpush1.msra.mxu0 %v4656
  %4693 = vmatprep.subr.mxu0 0.0
  %4694 = vmatpush1.msra.mxu0 %v4657
  %4695 = vmatprep.subr.mxu0 0.0
  %4696 = vmatpush1.msra.mxu0 %v4658
  %4697 = vmatprep.subr.mxu0 0.0
  %4698 = vmatpush1.msra.mxu0 %v4659
  %4699 = vmatprep.subr.mxu0 0.0
  %4700 = vmatpush1.msra.mxu0 0.0
  %4701 = vmatprep.subr.mxu0 0.0
  %4702 = vmatpush1.msra.mxu0 0.0
  %4703 = vmatprep.subr.mxu0 0.0
  %4704 = vmatpush1.msra.mxu0 0.0
  %4705 = vmatprep.subr.mxu0 0.0
  %4706 = vmatpush1.msra.mxu0 0.0
  %4707 = vmatprep.subr.mxu0 0.0
  %4708 = vmatpush1.msra.mxu0 0.0
  %4709 = vmatprep.subr.mxu0 0.0
  %4710 = vmatpush1.msra.mxu0 0.0
  %4711 = vmatprep.subr.mxu0 0.0
  %4712 = vmatpush1.msra.mxu0 0.0
  %4713 = vmatprep.subr.mxu0 0.0
  %4714 = vmatpush1.msra.mxu0 0.0
  %4715 = vmatprep.subr.mxu0 0.0
  %4716 = vmatpush1.msra.mxu0 0.0
  %4717 = vmatprep.subr.mxu0 0.0
  %4718 = vmatpush1.msra.mxu0 0.0
  %4719 = vmatprep.subr.mxu0 0.0
  %4720 = vmatpush1.msra.mxu0 0.0
  %4721 = vmatprep.subr.mxu0 0.0
  %4722 = vmatpush1.msra.mxu0 0.0
  %4723 = vmatprep.subr.mxu0 0.0
  %4724 = vmatpush1.msra.mxu0 0.0
  %4725 = vmatprep.subr.mxu0 0.0
  %4726 = vmatpush1.msra.mxu0 0.0
  %4727 = vmatprep.subr.mxu0 0.0
  %4728 = vmatpush1.msra.mxu0 0.0
  %4729 = vmatprep.subr.mxu0 0.0
  %4730 = vmatpush1.msra.mxu0 0.0
  %4731 = vmatprep.mubr.f32.mxu0 0.0
  %4732 = vmatmul.mubr.f32.gmra.mrb[0].mxu0 %v4636
  %v4733 = vpop.f32.mrb[0].mxu0
  %v4734 = vadd.f32 %v4665, %v4733
  %v4735 = vpop.f32.mrb[0].mxu0
  %4736 = vmatprep.mubr.f32.mxu0 0.0
  %4737 = vmatmul.mubr.f32.gmra.mrb[0].mxu0 %v4637
  %v4738 = vpop.f32.mrb[0].mxu0
  %v4739 = vadd.f32 %v4665, %v4738
  %v4740 = vpop.f32.mrb[0].mxu0
  %4741 = vmatprep.mubr.f32.mxu0 0.0
  %4742 = vmatmul.mubr.f32.gmra.mrb[0].mxu0 %v4638
  %v4743 = vpop.f32.mrb[0].mxu0
  %v4744 = vadd.f32 %v4665, %v4743
  %v4745 = vpop.f32.mrb[0].mxu0
  %4746 = vmatprep.mubr.f32.mxu0 0.0
  %4747 = vmatmul.mubr.f32.gmra.mrb[0].mxu0 %v4639
  %v4748 = vpop.f32.mrb[0].mxu0
  %v4749 = vadd.f32 %v4665, %v4748
  %v4750 = vpop.f32.mrb[0].mxu0
  %4751 = vmatprep.mubr.f32.mxu0 0.0
  %4752 = vmatmul.mubr.f32.gmra.mrb[0].mxu0 %v4640
  %v4753 = vpop.f32.mrb[0].mxu0
  %v4754 = vadd.f32 %v4665, %v4753
  %v4755 = vpop.f32.mrb[0].mxu0
  %4756 = vmatprep.mubr.f32.mxu0 0.0
  %4757 = vmatmul.mubr.f32.gmra.mrb[0].mxu0 %v4641
  %v4758 = vpop.f32.mrb[0].mxu0
  %v4759 = vadd.f32 %v4665, %v4758
  %v4760 = vpop.f32.mrb[0].mxu0
  %4761 = vmatprep.mubr.f32.mxu0 0.0
  %4762 = vmatmul.mubr.f32.gmra.mrb[0].mxu0 %v4642
  %v4763 = vpop.f32.mrb[0].mxu0
  %v4764 = vadd.f32 %v4665, %v4763
  %v4765 = vpop.f32.mrb[0].mxu0
  %4766 = vmatprep.mubr.f32.mxu0 0.0
  %4767 = vmatmul.mubr.f32.gmra.mrb[0].mxu0 %v4643
  %v4768 = vpop.f32.mrb[0].mxu0
  %v4769 = vadd.f32 %v4665, %v4768
  %v4770 = vpop.f32.mrb[0].mxu0
  %4771 = vdwg.mxu0
  %4772 = vst.msk [vmem:[%s8] sm:$0xff] %vm67, %v4734
  %4773 = vst.msk [vmem:[%s8 + $0x8] sm:$0xff] %vm67, %v4739
  %4774 = vst.msk [vmem:[%s8 + $0x10] sm:$0xff] %vm67, %v4744
  %4775 = vst.msk [vmem:[%s8 + $0x18] sm:$0xff] %vm67, %v4749
  %4776 = vst.msk [vmem:[%s8 + $0x20] sm:$0xff] %vm67, %v4754
  %4777 = vst.msk [vmem:[%s8 + $0x28] sm:$0xff] %vm67, %v4759
  %4778 = vst.msk [vmem:[%s8 + $0x30] sm:$0xff] %vm67, %v4764
  %4779 = vst.msk [vmem:[%s8 + $0x38] sm:$0xff] %vm67, %v4769
  // Predicated region
  $region34: #{lstm_model_forward.1} parent=0 // pred_check
    _
  $region35: #{lstm_model_forward.1} parent=0 // pred_check_branch
    %4781 = sbr.rel (0) target = $region37
  $region36: #{lstm_model_forward.1} parent=0 // pred_region
    _
  $region37: #{lstm_model_forward.1} parent=0 // pred_fallthru
    _
  // Predicated region
  $region38: #{lstm_model_forward.1} parent=0 // pred_check
    _
  $region39: #{lstm_model_forward.1} parent=0 // pred_check_branch
    %4783 = sbr.rel (0) target = $region41
  $region40: #{lstm_model_forward.1} parent=0 // pred_region
    _
  $region41: #{lstm_model_forward.1} parent=0 // pred_fallthru
    _

</llo_original>
